<compile_context>
chip_gen: v7x
topology: tpu7x:2x2x1
jax: 0.10.0
libtpu: 0.0.40
codegen_flags: <defaults>
</compile_context>

<pallas_src>
import functools

import numpy as np
import jax
import jax.numpy as jnp
from jax import lax
from jax.experimental import pallas as pl
from jax.experimental.pallas import tpu as pltpu


def _round_up(x, m):
    return ((x + m - 1) // m) * m


def _fused_tile(n_vox, bhw_pad, c, n_imgs, budget_bytes=24 * 1024 * 1024):
    """Voxel-tile size for the fused kernel, sized against a conservative VMEM budget."""
    # Dominant per-voxel VMEM in a tile: a few live copies of the (BHW_pad, T)
    # one-hot sampling slab, the (C, T) accumulator, and the small I/O rows.
    per_vox = 3 * bhw_pad * 4 + c * 4 + 8 * (3 + 1 + 4 * n_imgs + 4)
    t = (budget_bytes // max(per_vox, 1)) // 128 * 128
    t = max(128, min(2048, t))
    return min(t, _round_up(max(n_vox, 1), 128))


# ----------------------------------------------------------------------------
# Fused kernel: project + bilinear sample + MVFusionMean + LayerNorm + 1x1 conv
# ----------------------------------------------------------------------------
def _ioar_fused_kernel(coords_ref, bidx_ref, pm_ref, feats_ref,
                       gamma_ref, beta_ref, w_ref, b_ref,
                       bp_ref, logits_ref,
                       *, n_imgs, n_batch, H, W, c_real, eps):
    T = coords_ref.shape[1]
    bhw_pad = feats_ref.shape[2]

    cx = coords_ref[0:1, :]                                   # (1, T) world x
    cy = coords_ref[1:2, :]
    cz = coords_ref[2:3, :]
    bidx = bidx_ref[...]                                      # (1, T) int32 batch index

    sel = [(bidx == b).astype(jnp.float32) for b in range(n_batch)]
    base = bidx * (H * W)                                     # per-voxel flat batch offset

    sx = 2.0 / max(W - 1, 1)
    sy = 2.0 / max(H - 1, 1)

    iota_p = lax.broadcasted_iota(jnp.int32, (bhw_pad, T), 0)

    def pm(b, dim, i, j):                                     # scalar read from SMEM
        return pm_ref[((b * 3 + dim) * n_imgs + i) * 4 + j]

    def proj_row(dim, i):                                     # one projected row, (1, T)
        row = jnp.zeros((1, T), jnp.float32)
        for b in range(n_batch):
            pb = (pm(b, dim, i, 0) * cx + pm(b, dim, i, 1) * cy
                  + pm(b, dim, i, 2) * cz + pm(b, dim, i, 3))
            row = row + sel[b] * pb
        return row

    def reflect(t, size):                                     # reflection pad, align_corners=True
        if size <= 1:
            return jnp.zeros_like(t)
        span = 2.0 * (size - 1)
        t = jnp.abs(t)
        t = t - span * jnp.floor(t * (1.0 / span))
        return jnp.where(t > (size - 1), span - t, t)

    acc = jnp.zeros((feats_ref.shape[1], T), jnp.float32)     # (C, T) fused features
    cnt = jnp.zeros((1, T), jnp.float32)

    for i in range(n_imgs):
        im_x = proj_row(0, i)
        im_y = proj_row(1, i)
        im_z = proj_row(2, i)

        zsafe = im_z != 0.0
        px = jnp.where(zsafe, im_x / im_z, 0.0)               # pixel coords (align_corners=True)
        py = jnp.where(zsafe, im_y / im_z, 0.0)
        gx = jnp.where(zsafe, px * sx - 1.0, -2.0)
        gy = jnp.where(zsafe, py * sy - 1.0, -2.0)
        mask_b = (jnp.abs(gx) <= 1.0) & (jnp.abs(gy) <= 1.0) & (im_z > 0.0)
        mask_f = mask_b.astype(jnp.float32)

        # packed projection output: [u | v | depth | mask], voxels on lanes
        bp_ref[i:i + 1, :] = gx
        bp_ref[n_imgs + i:n_imgs + i + 1, :] = gy
        bp_ref[2 * n_imgs + i:2 * n_imgs + i + 1, :] = im_z
        bp_ref[3 * n_imgs + i:3 * n_imgs + i + 1, :] = mask_f

        # bilinear sampling as a one-hot weight matrix (BHW_pad, T) -> MXU matmul
        xs = reflect(jnp.where(mask_b, px, 0.0), W)
        ys = reflect(jnp.where(mask_b, py, 0.0), H)
        x0 = jnp.floor(xs)
        y0 = jnp.floor(ys)
        wx1 = xs - x0
        wy1 = ys - y0
        wx0 = 1.0 - wx1
        wy0 = 1.0 - wy1
        x0i = jnp.clip(x0, 0.0, W - 1).astype(jnp.int32)
        x1i = jnp.clip(x0 + 1.0, 0.0, W - 1).astype(jnp.int32)
        y0i = jnp.clip(y0, 0.0, H - 1).astype(jnp.int32)
        y1i = jnp.clip(y0 + 1.0, 0.0, H - 1).astype(jnp.int32)

        i00 = base + y0i * W + x0i
        i01 = base + y0i * W + x1i
        i10 = base + y1i * W + x0i
        i11 = base + y1i * W + x1i
        w00 = wy0 * wx0 * mask_f
        w01 = wy0 * wx1 * mask_f
        w10 = wy1 * wx0 * mask_f
        w11 = wy1 * wx1 * mask_f

        S = (jnp.where(iota_p == i00, w00, 0.0)
             + jnp.where(iota_p == i01, w01, 0.0)
             + jnp.where(iota_p == i10, w10, 0.0)
             + jnp.where(iota_p == i11, w11, 0.0))            # (BHW_pad, T)

        acc = acc + jnp.dot(feats_ref[i], S, preferred_element_type=jnp.float32)
        cnt = cnt + mask_f

    # MVFusionMean: masked mean over views
    pooled = acc * (1.0 / jnp.maximum(cnt, 1.0))              # (C, T)

    # LayerNorm over channels (two-pass form for numerical parity)
    inv_c = 1.0 / c_real
    mu = jnp.sum(pooled, axis=0, keepdims=True) * inv_c
    xc = pooled - mu
    var = jnp.sum(xc * xc, axis=0, keepdims=True) * inv_c
    y = xc * lax.rsqrt(var + eps)
    y = y * gamma_ref[...] + beta_ref[...]                    # gamma/beta (C, 1)

    # [output_layers | output_layers_occ] 1x1 conv, lane-dense (c_out, T) output
    logits_ref[...] = jnp.dot(w_ref[...], y, preferred_element_type=jnp.float32) + b_ref[...]


def ioar_fused_backproject(voxel_coords, voxel_batch_inds, projmat, feats_2d,
                           ln_gamma, ln_beta, w_out, b_out, w_occ, b_occ, eps=1e-5):
    """voxel_coords (N,3) f32; voxel_batch_inds (N,) int; projmat (n_imgs, B, 4, 4);
       feats_2d (B, n_imgs, C, H, W) f32."""
    n_vox = voxel_coords.shape[0]
    n_imgs, n_batch = projmat.shape[0], projmat.shape[1]
    _, _, C, H, W = feats_2d.shape
    bhw = n_batch * H * W
    bhw_pad = _round_up(bhw, 128)

    tile = _fused_tile(n_vox, bhw_pad, C, n_imgs)
    n_pad = _round_up(n_vox, tile)

    coords_k = jnp.pad(voxel_coords.astype(jnp.float32).T, ((0, 0), (0, n_pad - n_vox)))
    bidx_k = jnp.pad(voxel_batch_inds.astype(jnp.int32).reshape(1, n_vox),
                     ((0, 0), (0, n_pad - n_vox)))
    # pm_flat[((b*3 + dim)*n_imgs + i)*4 + j] = projmat[i, b, dim, j]
    pm_flat = jnp.transpose(projmat[:, :, :3, :], (1, 2, 0, 3)).reshape(-1).astype(jnp.float32)

    # feature maps flattened per image: (n_imgs, C, B*H*W), flat index = b*H*W + y*W + x
    feats_k = jnp.transpose(feats_2d.astype(jnp.float32), (1, 2, 0, 3, 4)).reshape(n_imgs, C, bhw)
    feats_k = jnp.pad(feats_k, ((0, 0), (0, 0), (0, bhw_pad - bhw)))

    gamma_k = ln_gamma.astype(jnp.float32).reshape(C, 1)
    beta_k = ln_beta.astype(jnp.float32).reshape(C, 1)
    w_cat = jnp.concatenate([w_out, w_occ], axis=1).T.astype(jnp.float32)          # (c_out, C)
    b_cat = jnp.concatenate([b_out.reshape(-1), b_occ.reshape(-1)]).reshape(-1, 1).astype(jnp.float32)
    c_out = w_cat.shape[0]

    kernel = functools.partial(_ioar_fused_kernel, n_imgs=n_imgs, n_batch=n_batch,
                               H=H, W=W, c_real=float(C), eps=eps)

    bp_packed, logits = pl.pallas_call(
        kernel,
        grid=(n_pad // tile,),
        in_specs=[
            pl.BlockSpec((3, tile), lambda t: (0, t)),
            pl.BlockSpec((1, tile), lambda t: (0, t)),
            pl.BlockSpec(memory_space=pltpu.MemorySpace.SMEM),
            pl.BlockSpec((n_imgs, C, bhw_pad), lambda t: (0, 0, 0)),
            pl.BlockSpec((C, 1), lambda t: (0, 0)),
            pl.BlockSpec((C, 1), lambda t: (0, 0)),
            pl.BlockSpec((c_out, C), lambda t: (0, 0)),
            pl.BlockSpec((c_out, 1), lambda t: (0, 0)),
        ],
        out_specs=[
            pl.BlockSpec((4 * n_imgs, tile), lambda t: (0, t)),
            pl.BlockSpec((c_out, tile), lambda t: (0, t)),
        ],
        out_shape=[
            jax.ShapeDtypeStruct((4 * n_imgs, n_pad), jnp.float32),
            jax.ShapeDtypeStruct((c_out, n_pad), jnp.float32),
        ],
        compiler_params=pltpu.CompilerParams(
            dimension_semantics=("parallel",),
            vmem_limit_bytes=48 * 1024 * 1024),
    )(coords_k, bidx_k, pm_flat, feats_k, gamma_k, beta_k, w_cat, b_cat)

    bp_packed = bp_packed[:, :n_vox]
    logits = logits[:, :n_vox]
    u = bp_packed[0:n_imgs]
    v = bp_packed[n_imgs:2 * n_imgs]
    bp_depth = bp_packed[2 * n_imgs:3 * n_imgs]
    bp_mask = bp_packed[3 * n_imgs:4 * n_imgs] > 0.5
    bp_uv = jnp.stack([u, v], axis=-1)                                             # (n_imgs, N, 2)
    return bp_uv, bp_depth, bp_mask, logits.T                                      # logits (N, c_out)


# ----------------------------------------------------------------------------
# Upsampler (glue)
# ----------------------------------------------------------------------------
_UPSAMPLE_OFFSETS = jnp.array([[0, 0, 0, 0], [1, 0, 0, 0], [0, 1, 0, 0], [0, 0, 1, 0],
                               [1, 1, 0, 0], [0, 1, 1, 0], [1, 0, 1, 0], [1, 1, 1, 0]], jnp.int32)
_UPSAMPLE_MUL = jnp.array([[2, 2, 2, 1]], jnp.int32)


def upsample_inds(voxel_inds):
    return (voxel_inds[:, None, :] * _UPSAMPLE_MUL[None] + _UPSAMPLE_OFFSETS[None]).reshape(-1, 4)


def upsample_feats(feats):
    return jnp.repeat(feats[:, None, :], 8, axis=1).reshape(-1, feats.shape[-1]).astype(jnp.float32)


# ----------------------------------------------------------------------------
# IOAR forward (coarse resolution level)
# ----------------------------------------------------------------------------
def ioar_coarse_forward(params, batch, voxel_inds_16):
    feats_2d = batch['feats_2d_coarse']                        # (B, n_imgs, C, H, W)
    res = 0.16                                                 # resolutions['coarse']

    voxel_inds = voxel_inds_16
    voxel_batch_inds = voxel_inds[:, 3].astype(jnp.int32)
    voxel_coords = voxel_inds[:, :3].astype(jnp.float32) * res + batch['origin'][voxel_batch_inds]

    _, n_imgs, _, _, _ = feats_2d.shape
    projmat = jnp.transpose(batch['proj_mats_coarse'], (1, 0, 2, 3))   # (n_imgs, B, 4, 4)

    # fully fused Pallas kernel (projection + sampling + fusion + LN + 1x1 convs)
    # TODO(synk): torchsparse SPVCNN 3D sparse conv not translatable; treated as identity here.
    bp_uv, bp_depth, bp_mask, logits_cat = ioar_fused_backproject(
        voxel_coords, voxel_batch_inds, projmat, feats_2d,
        params['ln_gamma'], params['ln_beta'],
        params['w_out'], params['b_out'], params['w_occ'], params['b_occ'])

    n_vox = voxel_inds.shape[0]
    # mean-fusion path (attn_heads == 0) leaves proj_occ_logits at the init value of 100
    proj_occ_logits = jnp.full((n_imgs, n_vox), 100.0, jnp.float32)

    voxel_logits = logits_cat[:, 0:1]                                              # (N, 1)
    voxel_logits_occ = logits_cat[:, 1:4]                                          # (N, 3)

    bp_data = dict(voxel_coords=voxel_coords, voxel_batch_inds=voxel_batch_inds,
                   bp_uv=bp_uv, bp_depth=bp_depth, bp_mask=bp_mask)
    return voxel_logits, voxel_logits_occ, proj_occ_logits, bp_data


# ----------------------------------------------------------------------------
# main
# ----------------------------------------------------------------------------
if __name__ == "__main__":
    key = jax.random.PRNGKey(0)
    B, n_imgs = 2, 3
    C = 80                 # cnn2d_output_depths[0] ('coarse')
    H = W = 16
    grid_side = 4          # 4x4x4 voxels per batch example -> 128 voxels total

    # voxel_inds_16: (N, 4) int coords, last column = batch index
    xs, ys, zs = jnp.meshgrid(jnp.arange(grid_side), jnp.arange(grid_side),
                              jnp.arange(grid_side), indexing='ij')
    base = jnp.stack([xs.ravel(), ys.ravel(), zs.ravel()], -1).astype(jnp.int32)   # (64, 3)
    voxel_inds_16 = jnp.concatenate([
        jnp.concatenate([base, jnp.zeros((base.shape[0], 1), jnp.int32)], -1),
        jnp.concatenate([base, jnp.ones((base.shape[0], 1), jnp.int32)], -1)], 0)  # (128, 4)

    # deterministic projection matrices (pinhole camera looking down +z)
    proj = np.zeros((B, n_imgs, 4, 4), np.float32)
    for b in range(B):
        for i in range(n_imgs):
            K = np.array([[8.0, 0, (W - 1) / 2.0, 0],
                          [0, 8.0, (H - 1) / 2.0, 0],
                          [0, 0, 1, 0],
                          [0, 0, 0, 1]], np.float32)
            E = np.eye(4, dtype=np.float32)
            E[:3, 3] = [-0.3 - 0.1 * i, -0.3, 1.0 + 0.2 * b]
            proj[b, i] = K @ E

    k1, k2, k3 = jax.random.split(key, 3)
    batch = {
        'feats_2d_coarse': jax.random.normal(k1, (B, n_imgs, C, H, W), jnp.float32),
        'proj_mats_coarse': jnp.asarray(proj),
        'origin': jnp.zeros((B, 3), jnp.float32),
    }
    params = {
        'ln_gamma': jnp.ones((1, C), jnp.float32),       # torch.nn.LayerNorm defaults
        'ln_beta': jnp.zeros((1, C), jnp.float32),
        'w_out': 0.05 * jax.random.normal(k2, (C, 1), jnp.float32),
        'b_out': jnp.zeros((1, 1), jnp.float32),
        'w_occ': 0.05 * jax.random.normal(k3, (C, 3), jnp.float32),
        'b_occ': jnp.zeros((1, 3), jnp.float32),
    }

    voxel_logits, voxel_logits_occ, proj_occ_logits, bp_data = ioar_coarse_forward(
        params, batch, voxel_inds_16)
    jax.block_until_ready((voxel_logits, voxel_logits_occ, proj_occ_logits,
                           bp_data['bp_uv'], bp_data['bp_depth'], bp_data['bp_mask']))

    # coarse -> medium upsampling step (Upsampler semantics), done eagerly
    occ = np.asarray(jax.nn.softmax(voxel_logits_occ, -1).argmax(-1) == 1)
    if occ.any():
        feats_np = np.asarray(voxel_logits)          # stand-in for voxel_features.F[occupancy]
        inds_np = np.asarray(voxel_inds_16)
        up_f = upsample_feats(jnp.asarray(feats_np[occ]))
        up_i = upsample_inds(jnp.asarray(inds_np[occ]))
        jax.block_until_ready((up_f, up_i))
    # TODO(synk): medium/fine levels require SPVCNN + per-batch multinomial subsampling (dynamic shapes).

    print("KERNEL_OK")
</pallas_src>

<mosaic_0001>
module attributes {stable_mosaic.version = 11 : i64} {
  func.func @_ioar_fused_kernel(%arg0: i32, %arg1: memref<3x128xf32, #tpu.memory_space<vmem>>, %arg2: memref<1x128xi32, #tpu.memory_space<vmem>>, %arg3: memref<72xf32, #tpu.memory_space<smem>>, %arg4: memref<3x80x512xf32, #tpu.memory_space<vmem>>, %arg5: memref<80x1xf32, #tpu.memory_space<vmem>>, %arg6: memref<80x1xf32, #tpu.memory_space<vmem>>, %arg7: memref<4x80xf32, #tpu.memory_space<vmem>>, %arg8: memref<4x1xf32, #tpu.memory_space<vmem>>, %arg9: memref<12x128xf32, #tpu.memory_space<vmem>>, %arg10: memref<4x128xf32, #tpu.memory_space<vmem>>) attributes {dimension_semantics = [#tpu.dimension_semantics<parallel>], iteration_bounds = array<i64: 1>, scalar_prefetch = 0 : i64, scratch_operands = 0 : i64, tpu.core_type = #tpu.core_type<tc>, window_params = [{transform_indices = @transform_0, window_bounds = array<i64: 3, 128>}, {transform_indices = @transform_1, window_bounds = array<i64: 1, 128>}, {transform_indices = @transform_2, window_bounds = array<i64: 72>}, {pipeline_mode = #tpu.pipeline_mode<synchronous>, transform_indices = @transform_3, window_bounds = array<i64: 3, 80, 512>}, {pipeline_mode = #tpu.pipeline_mode<synchronous>, transform_indices = @transform_4, window_bounds = array<i64: 80, 1>}, {pipeline_mode = #tpu.pipeline_mode<synchronous>, transform_indices = @transform_5, window_bounds = array<i64: 80, 1>}, {pipeline_mode = #tpu.pipeline_mode<synchronous>, transform_indices = @transform_6, window_bounds = array<i64: 4, 80>}, {pipeline_mode = #tpu.pipeline_mode<synchronous>, transform_indices = @transform_7, window_bounds = array<i64: 4, 1>}, {transform_indices = @transform_8, window_bounds = array<i64: 12, 128>}, {transform_indices = @transform_9, window_bounds = array<i64: 4, 128>}]} {
    %c0 = arith.constant 0 : index
    %c0_0 = arith.constant 0 : index
    %0 = vector.load %arg1[%c0, %c0_0] : memref<3x128xf32, #tpu.memory_space<vmem>>, vector<1x128xf32>
    %c1 = arith.constant 1 : index
    %c0_1 = arith.constant 0 : index
    %1 = vector.load %arg1[%c1, %c0_1] : memref<3x128xf32, #tpu.memory_space<vmem>>, vector<1x128xf32>
    %c2 = arith.constant 2 : index
    %c0_2 = arith.constant 0 : index
    %2 = vector.load %arg1[%c2, %c0_2] : memref<3x128xf32, #tpu.memory_space<vmem>>, vector<1x128xf32>
    %c0_3 = arith.constant 0 : index
    %c0_4 = arith.constant 0 : index
    %3 = vector.load %arg2[%c0_3, %c0_4] : memref<1x128xi32, #tpu.memory_space<vmem>>, vector<1x128xi32>
    %c0_i32 = arith.constant 0 : i32
    %4 = vector.broadcast %c0_i32 : i32 to vector<1x128xi32>
    %5 = arith.cmpi eq, %3, %4 : vector<1x128xi32>
    %6 = arith.extui %5 : vector<1x128xi1> to vector<1x128xi32>
    %7 = arith.sitofp %6 : vector<1x128xi32> to vector<1x128xf32>
    %c1_i32 = arith.constant 1 : i32
    %8 = vector.broadcast %c1_i32 : i32 to vector<1x128xi32>
    %9 = arith.cmpi eq, %3, %8 : vector<1x128xi32>
    %10 = arith.extui %9 : vector<1x128xi1> to vector<1x128xi32>
    %11 = arith.sitofp %10 : vector<1x128xi32> to vector<1x128xf32>
    %c256_i32 = arith.constant 256 : i32
    %12 = vector.broadcast %c256_i32 : i32 to vector<1x128xi32>
    %13 = arith.muli %3, %12 : vector<1x128xi32>
    %14 = tpu.iota {dimensions = array<i32: 0>} : vector<512x128xi32>
    %cst = arith.constant 0.000000e+00 : f32
    %15 = vector.broadcast %cst : f32 to vector<80x128xf32>
    %cst_5 = arith.constant 0.000000e+00 : f32
    %16 = vector.broadcast %cst_5 : f32 to vector<1x128xf32>
    %cst_6 = arith.constant 0.000000e+00 : f32
    %17 = vector.broadcast %cst_6 : f32 to vector<1x128xf32>
    %c0_7 = arith.constant 0 : index
    %18 = memref.load %arg3[%c0_7] : memref<72xf32, #tpu.memory_space<smem>>
    %19 = vector.broadcast %18 : f32 to vector<1x128xf32>
    %20 = arith.mulf %19, %0 : vector<1x128xf32>
    %c1_8 = arith.constant 1 : index
    %21 = memref.load %arg3[%c1_8] : memref<72xf32, #tpu.memory_space<smem>>
    %22 = vector.broadcast %21 : f32 to vector<1x128xf32>
    %23 = arith.mulf %22, %1 : vector<1x128xf32>
    %24 = arith.addf %20, %23 : vector<1x128xf32>
    %c2_9 = arith.constant 2 : index
    %25 = memref.load %arg3[%c2_9] : memref<72xf32, #tpu.memory_space<smem>>
    %26 = vector.broadcast %25 : f32 to vector<1x128xf32>
    %27 = arith.mulf %26, %2 : vector<1x128xf32>
    %28 = arith.addf %24, %27 : vector<1x128xf32>
    %c3 = arith.constant 3 : index
    %29 = memref.load %arg3[%c3] : memref<72xf32, #tpu.memory_space<smem>>
    %30 = vector.broadcast %29 : f32 to vector<1x128xf32>
    %31 = arith.addf %28, %30 : vector<1x128xf32>
    %32 = arith.mulf %7, %31 : vector<1x128xf32>
    %33 = arith.addf %17, %32 : vector<1x128xf32>
    %c36 = arith.constant 36 : index
    %34 = memref.load %arg3[%c36] : memref<72xf32, #tpu.memory_space<smem>>
    %35 = vector.broadcast %34 : f32 to vector<1x128xf32>
    %36 = arith.mulf %35, %0 : vector<1x128xf32>
    %c37 = arith.constant 37 : index
    %37 = memref.load %arg3[%c37] : memref<72xf32, #tpu.memory_space<smem>>
    %38 = vector.broadcast %37 : f32 to vector<1x128xf32>
    %39 = arith.mulf %38, %1 : vector<1x128xf32>
    %40 = arith.addf %36, %39 : vector<1x128xf32>
    %c38 = arith.constant 38 : index
    %41 = memref.load %arg3[%c38] : memref<72xf32, #tpu.memory_space<smem>>
    %42 = vector.broadcast %41 : f32 to vector<1x128xf32>
    %43 = arith.mulf %42, %2 : vector<1x128xf32>
    %44 = arith.addf %40, %43 : vector<1x128xf32>
    %c39 = arith.constant 39 : index
    %45 = memref.load %arg3[%c39] : memref<72xf32, #tpu.memory_space<smem>>
    %46 = vector.broadcast %45 : f32 to vector<1x128xf32>
    %47 = arith.addf %44, %46 : vector<1x128xf32>
    %48 = arith.mulf %11, %47 : vector<1x128xf32>
    %49 = arith.addf %33, %48 : vector<1x128xf32>
    %cst_10 = arith.constant 0.000000e+00 : f32
    %50 = vector.broadcast %cst_10 : f32 to vector<1x128xf32>
    %c12 = arith.constant 12 : index
    %51 = memref.load %arg3[%c12] : memref<72xf32, #tpu.memory_space<smem>>
    %52 = vector.broadcast %51 : f32 to vector<1x128xf32>
    %53 = arith.mulf %52, %0 : vector<1x128xf32>
    %c13 = arith.constant 13 : index
    %54 = memref.load %arg3[%c13] : memref<72xf32, #tpu.memory_space<smem>>
    %55 = vector.broadcast %54 : f32 to vector<1x128xf32>
    %56 = arith.mulf %55, %1 : vector<1x128xf32>
    %57 = arith.addf %53, %56 : vector<1x128xf32>
    %c14 = arith.constant 14 : index
    %58 = memref.load %arg3[%c14] : memref<72xf32, #tpu.memory_space<smem>>
    %59 = vector.broadcast %58 : f32 to vector<1x128xf32>
    %60 = arith.mulf %59, %2 : vector<1x128xf32>
    %61 = arith.addf %57, %60 : vector<1x128xf32>
    %c15 = arith.constant 15 : index
    %62 = memref.load %arg3[%c15] : memref<72xf32, #tpu.memory_space<smem>>
    %63 = vector.broadcast %62 : f32 to vector<1x128xf32>
    %64 = arith.addf %61, %63 : vector<1x128xf32>
    %65 = arith.mulf %7, %64 : vector<1x128xf32>
    %66 = arith.addf %50, %65 : vector<1x128xf32>
    %c48 = arith.constant 48 : index
    %67 = memref.load %arg3[%c48] : memref<72xf32, #tpu.memory_space<smem>>
    %68 = vector.broadcast %67 : f32 to vector<1x128xf32>
    %69 = arith.mulf %68, %0 : vector<1x128xf32>
    %c49 = arith.constant 49 : index
    %70 = memref.load %arg3[%c49] : memref<72xf32, #tpu.memory_space<smem>>
    %71 = vector.broadcast %70 : f32 to vector<1x128xf32>
    %72 = arith.mulf %71, %1 : vector<1x128xf32>
    %73 = arith.addf %69, %72 : vector<1x128xf32>
    %c50 = arith.constant 50 : index
    %74 = memref.load %arg3[%c50] : memref<72xf32, #tpu.memory_space<smem>>
    %75 = vector.broadcast %74 : f32 to vector<1x128xf32>
    %76 = arith.mulf %75, %2 : vector<1x128xf32>
    %77 = arith.addf %73, %76 : vector<1x128xf32>
    %c51 = arith.constant 51 : index
    %78 = memref.load %arg3[%c51] : memref<72xf32, #tpu.memory_space<smem>>
    %79 = vector.broadcast %78 : f32 to vector<1x128xf32>
    %80 = arith.addf %77, %79 : vector<1x128xf32>
    %81 = arith.mulf %11, %80 : vector<1x128xf32>
    %82 = arith.addf %66, %81 : vector<1x128xf32>
    %cst_11 = arith.constant 0.000000e+00 : f32
    %83 = vector.broadcast %cst_11 : f32 to vector<1x128xf32>
    %c24 = arith.constant 24 : index
    %84 = memref.load %arg3[%c24] : memref<72xf32, #tpu.memory_space<smem>>
    %85 = vector.broadcast %84 : f32 to vector<1x128xf32>
    %86 = arith.mulf %85, %0 : vector<1x128xf32>
    %c25 = arith.constant 25 : index
    %87 = memref.load %arg3[%c25] : memref<72xf32, #tpu.memory_space<smem>>
    %88 = vector.broadcast %87 : f32 to vector<1x128xf32>
    %89 = arith.mulf %88, %1 : vector<1x128xf32>
    %90 = arith.addf %86, %89 : vector<1x128xf32>
    %c26 = arith.constant 26 : index
    %91 = memref.load %arg3[%c26] : memref<72xf32, #tpu.memory_space<smem>>
    %92 = vector.broadcast %91 : f32 to vector<1x128xf32>
    %93 = arith.mulf %92, %2 : vector<1x128xf32>
    %94 = arith.addf %90, %93 : vector<1x128xf32>
    %c27 = arith.constant 27 : index
    %95 = memref.load %arg3[%c27] : memref<72xf32, #tpu.memory_space<smem>>
    %96 = vector.broadcast %95 : f32 to vector<1x128xf32>
    %97 = arith.addf %94, %96 : vector<1x128xf32>
    %98 = arith.mulf %7, %97 : vector<1x128xf32>
    %99 = arith.addf %83, %98 : vector<1x128xf32>
    %c60 = arith.constant 60 : index
    %100 = memref.load %arg3[%c60] : memref<72xf32, #tpu.memory_space<smem>>
    %101 = vector.broadcast %100 : f32 to vector<1x128xf32>
    %102 = arith.mulf %101, %0 : vector<1x128xf32>
    %c61 = arith.constant 61 : index
    %103 = memref.load %arg3[%c61] : memref<72xf32, #tpu.memory_space<smem>>
    %104 = vector.broadcast %103 : f32 to vector<1x128xf32>
    %105 = arith.mulf %104, %1 : vector<1x128xf32>
    %106 = arith.addf %102, %105 : vector<1x128xf32>
    %c62 = arith.constant 62 : index
    %107 = memref.load %arg3[%c62] : memref<72xf32, #tpu.memory_space<smem>>
    %108 = vector.broadcast %107 : f32 to vector<1x128xf32>
    %109 = arith.mulf %108, %2 : vector<1x128xf32>
    %110 = arith.addf %106, %109 : vector<1x128xf32>
    %c63 = arith.constant 63 : index
    %111 = memref.load %arg3[%c63] : memref<72xf32, #tpu.memory_space<smem>>
    %112 = vector.broadcast %111 : f32 to vector<1x128xf32>
    %113 = arith.addf %110, %112 : vector<1x128xf32>
    %114 = arith.mulf %11, %113 : vector<1x128xf32>
    %115 = arith.addf %99, %114 : vector<1x128xf32>
    %cst_12 = arith.constant 0.000000e+00 : f32
    %116 = vector.broadcast %cst_12 : f32 to vector<1x128xf32>
    %117 = arith.cmpf one, %115, %116 : vector<1x128xf32>
    %118 = arith.divf %49, %115 : vector<1x128xf32>
    %cst_13 = arith.constant 0.000000e+00 : f32
    %119 = vector.broadcast %cst_13 : f32 to vector<1x128xf32>
    %120 = arith.select %117, %118, %119 : vector<1x128xi1>, vector<1x128xf32>
    %121 = arith.divf %82, %115 : vector<1x128xf32>
    %cst_14 = arith.constant 0.000000e+00 : f32
    %122 = vector.broadcast %cst_14 : f32 to vector<1x128xf32>
    %123 = arith.select %117, %121, %122 : vector<1x128xi1>, vector<1x128xf32>
    %cst_15 = arith.constant 0.13333334 : f32
    %124 = vector.broadcast %cst_15 : f32 to vector<1x128xf32>
    %125 = arith.mulf %120, %124 : vector<1x128xf32>
    %cst_16 = arith.constant 1.000000e+00 : f32
    %126 = vector.broadcast %cst_16 : f32 to vector<1x128xf32>
    %127 = arith.subf %125, %126 : vector<1x128xf32>
    %cst_17 = arith.constant -2.000000e+00 : f32
    %128 = vector.broadcast %cst_17 : f32 to vector<1x128xf32>
    %129 = arith.select %117, %127, %128 : vector<1x128xi1>, vector<1x128xf32>
    %cst_18 = arith.constant 0.13333334 : f32
    %130 = vector.broadcast %cst_18 : f32 to vector<1x128xf32>
    %131 = arith.mulf %123, %130 : vector<1x128xf32>
    %cst_19 = arith.constant 1.000000e+00 : f32
    %132 = vector.broadcast %cst_19 : f32 to vector<1x128xf32>
    %133 = arith.subf %131, %132 : vector<1x128xf32>
    %cst_20 = arith.constant -2.000000e+00 : f32
    %134 = vector.broadcast %cst_20 : f32 to vector<1x128xf32>
    %135 = arith.select %117, %133, %134 : vector<1x128xi1>, vector<1x128xf32>
    %136 = math.absf %129 : vector<1x128xf32>
    %cst_21 = arith.constant 1.000000e+00 : f32
    %137 = vector.broadcast %cst_21 : f32 to vector<1x128xf32>
    %138 = arith.cmpf ole, %136, %137 : vector<1x128xf32>
    %139 = math.absf %135 : vector<1x128xf32>
    %cst_22 = arith.constant 1.000000e+00 : f32
    %140 = vector.broadcast %cst_22 : f32 to vector<1x128xf32>
    %141 = arith.cmpf ole, %139, %140 : vector<1x128xf32>
    %142 = arith.andi %138, %141 : vector<1x128xi1>
    %cst_23 = arith.constant 0.000000e+00 : f32
    %143 = vector.broadcast %cst_23 : f32 to vector<1x128xf32>
    %144 = arith.cmpf ogt, %115, %143 : vector<1x128xf32>
    %145 = arith.andi %142, %144 : vector<1x128xi1>
    %146 = arith.extui %145 : vector<1x128xi1> to vector<1x128xi32>
    %147 = arith.sitofp %146 : vector<1x128xi32> to vector<1x128xf32>
    %c0_24 = arith.constant 0 : index
    %c0_25 = arith.constant 0 : index
    %148 = vector.load %arg9[%c0_24, %c0_25] : memref<12x128xf32, #tpu.memory_space<vmem>>, vector<1x128xf32>
    tpu.vector_store %arg9[%c0_24, %c0_25], %129 {strides = array<i32>} : memref<12x128xf32, #tpu.memory_space<vmem>>, vector<1x128xf32>,
    %c3_26 = arith.constant 3 : index
    %c0_27 = arith.constant 0 : index
    %149 = vector.load %arg9[%c3_26, %c0_27] : memref<12x128xf32, #tpu.memory_space<vmem>>, vector<1x128xf32>
    tpu.vector_store %arg9[%c3_26, %c0_27], %135 {strides = array<i32>} : memref<12x128xf32, #tpu.memory_space<vmem>>, vector<1x128xf32>,
    %c6 = arith.constant 6 : index
    %c0_28 = arith.constant 0 : index
    %150 = vector.load %arg9[%c6, %c0_28] : memref<12x128xf32, #tpu.memory_space<vmem>>, vector<1x128xf32>
    tpu.vector_store %arg9[%c6, %c0_28], %115 {strides = array<i32>} : memref<12x128xf32, #tpu.memory_space<vmem>>, vector<1x128xf32>,
    %c9 = arith.constant 9 : index
    %c0_29 = arith.constant 0 : index
    %151 = vector.load %arg9[%c9, %c0_29] : memref<12x128xf32, #tpu.memory_space<vmem>>, vector<1x128xf32>
    tpu.vector_store %arg9[%c9, %c0_29], %147 {strides = array<i32>} : memref<12x128xf32, #tpu.memory_space<vmem>>, vector<1x128xf32>,
    %cst_30 = arith.constant 0.000000e+00 : f32
    %152 = vector.broadcast %cst_30 : f32 to vector<1x128xf32>
    %153 = arith.select %145, %120, %152 : vector<1x128xi1>, vector<1x128xf32>
    %154 = math.absf %153 : vector<1x128xf32>
    %cst_31 = arith.constant 0.0333333351 : f32
    %155 = vector.broadcast %cst_31 : f32 to vector<1x128xf32>
    %156 = arith.mulf %154, %155 : vector<1x128xf32>
    %157 = math.floor %156 : vector<1x128xf32>
    %cst_32 = arith.constant 3.000000e+01 : f32
    %158 = vector.broadcast %cst_32 : f32 to vector<1x128xf32>
    %159 = arith.mulf %158, %157 : vector<1x128xf32>
    %160 = arith.subf %154, %159 : vector<1x128xf32>
    %cst_33 = arith.constant 1.500000e+01 : f32
    %161 = vector.broadcast %cst_33 : f32 to vector<1x128xf32>
    %162 = arith.cmpf ogt, %160, %161 : vector<1x128xf32>
    %cst_34 = arith.constant 3.000000e+01 : f32
    %163 = vector.broadcast %cst_34 : f32 to vector<1x128xf32>
    %164 = arith.subf %163, %160 : vector<1x128xf32>
    %165 = arith.select %162, %164, %160 : vector<1x128xi1>, vector<1x128xf32>
    %cst_35 = arith.constant 0.000000e+00 : f32
    %166 = vector.broadcast %cst_35 : f32 to vector<1x128xf32>
    %167 = arith.select %145, %123, %166 : vector<1x128xi1>, vector<1x128xf32>
    %168 = math.absf %167 : vector<1x128xf32>
    %cst_36 = arith.constant 0.0333333351 : f32
    %169 = vector.broadcast %cst_36 : f32 to vector<1x128xf32>
    %170 = arith.mulf %168, %169 : vector<1x128xf32>
    %171 = math.floor %170 : vector<1x128xf32>
    %cst_37 = arith.constant 3.000000e+01 : f32
    %172 = vector.broadcast %cst_37 : f32 to vector<1x128xf32>
    %173 = arith.mulf %172, %171 : vector<1x128xf32>
    %174 = arith.subf %168, %173 : vector<1x128xf32>
    %cst_38 = arith.constant 1.500000e+01 : f32
    %175 = vector.broadcast %cst_38 : f32 to vector<1x128xf32>
    %176 = arith.cmpf ogt, %174, %175 : vector<1x128xf32>
    %cst_39 = arith.constant 3.000000e+01 : f32
    %177 = vector.broadcast %cst_39 : f32 to vector<1x128xf32>
    %178 = arith.subf %177, %174 : vector<1x128xf32>
    %179 = arith.select %176, %178, %174 : vector<1x128xi1>, vector<1x128xf32>
    %180 = math.floor %165 : vector<1x128xf32>
    %181 = math.floor %179 : vector<1x128xf32>
    %182 = arith.subf %165, %180 : vector<1x128xf32>
    %183 = arith.subf %179, %181 : vector<1x128xf32>
    %cst_40 = arith.constant 1.000000e+00 : f32
    %184 = vector.broadcast %cst_40 : f32 to vector<1x128xf32>
    %185 = arith.subf %184, %182 : vector<1x128xf32>
    %cst_41 = arith.constant 1.000000e+00 : f32
    %186 = vector.broadcast %cst_41 : f32 to vector<1x128xf32>
    %187 = arith.subf %186, %183 : vector<1x128xf32>
    %cst_42 = arith.constant 0.000000e+00 : f32
    %c15_i32 = arith.constant 15 : i32
    %188 = vector.broadcast %cst_42 : f32 to vector<1x128xf32>
    %189 = arith.maximumf %188, %180 : vector<1x128xf32>
    %190 = arith.sitofp %c15_i32 : i32 to f32
    %191 = vector.broadcast %190 : f32 to vector<1x128xf32>
    %192 = arith.minimumf %191, %189 : vector<1x128xf32>
    %193 = arith.fptosi %192 : vector<1x128xf32> to vector<1x128xi32>
    %cst_43 = arith.constant 1.000000e+00 : f32
    %194 = vector.broadcast %cst_43 : f32 to vector<1x128xf32>
    %195 = arith.addf %180, %194 : vector<1x128xf32>
    %cst_44 = arith.constant 0.000000e+00 : f32
    %c15_i32_45 = arith.constant 15 : i32
    %196 = vector.broadcast %cst_44 : f32 to vector<1x128xf32>
    %197 = arith.maximumf %196, %195 : vector<1x128xf32>
    %198 = arith.sitofp %c15_i32_45 : i32 to f32
    %199 = vector.broadcast %198 : f32 to vector<1x128xf32>
    %200 = arith.minimumf %199, %197 : vector<1x128xf32>
    %201 = arith.fptosi %200 : vector<1x128xf32> to vector<1x128xi32>
    %cst_46 = arith.constant 0.000000e+00 : f32
    %c15_i32_47 = arith.constant 15 : i32
    %202 = vector.broadcast %cst_46 : f32 to vector<1x128xf32>
    %203 = arith.maximumf %202, %181 : vector<1x128xf32>
    %204 = arith.sitofp %c15_i32_47 : i32 to f32
    %205 = vector.broadcast %204 : f32 to vector<1x128xf32>
    %206 = arith.minimumf %205, %203 : vector<1x128xf32>
    %207 = arith.fptosi %206 : vector<1x128xf32> to vector<1x128xi32>
    %cst_48 = arith.constant 1.000000e+00 : f32
    %208 = vector.broadcast %cst_48 : f32 to vector<1x128xf32>
    %209 = arith.addf %181, %208 : vector<1x128xf32>
    %cst_49 = arith.constant 0.000000e+00 : f32
    %c15_i32_50 = arith.constant 15 : i32
    %210 = vector.broadcast %cst_49 : f32 to vector<1x128xf32>
    %211 = arith.maximumf %210, %209 : vector<1x128xf32>
    %212 = arith.sitofp %c15_i32_50 : i32 to f32
    %213 = vector.broadcast %212 : f32 to vector<1x128xf32>
    %214 = arith.minimumf %213, %211 : vector<1x128xf32>
    %215 = arith.fptosi %214 : vector<1x128xf32> to vector<1x128xi32>
    %c16_i32 = arith.constant 16 : i32
    %216 = vector.broadcast %c16_i32 : i32 to vector<1x128xi32>
    %217 = arith.muli %207, %216 : vector<1x128xi32>
    %218 = arith.addi %13, %217 : vector<1x128xi32>
    %219 = arith.addi %218, %193 : vector<1x128xi32>
    %c16_i32_51 = arith.constant 16 : i32
    %220 = vector.broadcast %c16_i32_51 : i32 to vector<1x128xi32>
    %221 = arith.muli %207, %220 : vector<1x128xi32>
    %222 = arith.addi %13, %221 : vector<1x128xi32>
    %223 = arith.addi %222, %201 : vector<1x128xi32>
    %c16_i32_52 = arith.constant 16 : i32
    %224 = vector.broadcast %c16_i32_52 : i32 to vector<1x128xi32>
    %225 = arith.muli %215, %224 : vector<1x128xi32>
    %226 = arith.addi %13, %225 : vector<1x128xi32>
    %227 = arith.addi %226, %193 : vector<1x128xi32>
    %c16_i32_53 = arith.constant 16 : i32
    %228 = vector.broadcast %c16_i32_53 : i32 to vector<1x128xi32>
    %229 = arith.muli %215, %228 : vector<1x128xi32>
    %230 = arith.addi %13, %229 : vector<1x128xi32>
    %231 = arith.addi %230, %201 : vector<1x128xi32>
    %232 = arith.mulf %187, %185 : vector<1x128xf32>
    %233 = arith.mulf %232, %147 : vector<1x128xf32>
    %234 = arith.mulf %187, %182 : vector<1x128xf32>
    %235 = arith.mulf %234, %147 : vector<1x128xf32>
    %236 = arith.mulf %183, %185 : vector<1x128xf32>
    %237 = arith.mulf %236, %147 : vector<1x128xf32>
    %238 = arith.mulf %183, %182 : vector<1x128xf32>
    %239 = arith.mulf %238, %147 : vector<1x128xf32>
    %240 = vector.broadcast %219 : vector<1x128xi32> to vector<512x128xi32>
    %241 = arith.cmpi eq, %14, %240 : vector<512x128xi32>
    %cst_54 = arith.constant 0.000000e+00 : f32
    %242 = vector.shape_cast %233 : vector<1x128xf32> to vector<1x128xf32>
    %243 = vector.broadcast %242 : vector<1x128xf32> to vector<512x128xf32>
    %244 = vector.broadcast %cst_54 : f32 to vector<512x128xf32>
    %245 = arith.select %241, %243, %244 : vector<512x128xi1>, vector<512x128xf32>
    %246 = vector.broadcast %223 : vector<1x128xi32> to vector<512x128xi32>
    %247 = arith.cmpi eq, %14, %246 : vector<512x128xi32>
    %cst_55 = arith.constant 0.000000e+00 : f32
    %248 = vector.shape_cast %235 : vector<1x128xf32> to vector<1x128xf32>
    %249 = vector.broadcast %248 : vector<1x128xf32> to vector<512x128xf32>
    %250 = vector.broadcast %cst_55 : f32 to vector<512x128xf32>
    %251 = arith.select %247, %249, %250 : vector<512x128xi1>, vector<512x128xf32>
    %252 = arith.addf %245, %251 : vector<512x128xf32>
    %253 = vector.broadcast %227 : vector<1x128xi32> to vector<512x128xi32>
    %254 = arith.cmpi eq, %14, %253 : vector<512x128xi32>
    %cst_56 = arith.constant 0.000000e+00 : f32
    %255 = vector.shape_cast %237 : vector<1x128xf32> to vector<1x128xf32>
    %256 = vector.broadcast %255 : vector<1x128xf32> to vector<512x128xf32>
    %257 = vector.broadcast %cst_56 : f32 to vector<512x128xf32>
    %258 = arith.select %254, %256, %257 : vector<512x128xi1>, vector<512x128xf32>
    %259 = arith.addf %252, %258 : vector<512x128xf32>
    %260 = vector.broadcast %231 : vector<1x128xi32> to vector<512x128xi32>
    %261 = arith.cmpi eq, %14, %260 : vector<512x128xi32>
    %cst_57 = arith.constant 0.000000e+00 : f32
    %262 = vector.shape_cast %239 : vector<1x128xf32> to vector<1x128xf32>
    %263 = vector.broadcast %262 : vector<1x128xf32> to vector<512x128xf32>
    %264 = vector.broadcast %cst_57 : f32 to vector<512x128xf32>
    %265 = arith.select %261, %263, %264 : vector<512x128xi1>, vector<512x128xf32>
    %266 = arith.addf %259, %265 : vector<512x128xf32>
    %c0_58 = arith.constant 0 : index
    %c0_59 = arith.constant 0 : index
    %c0_60 = arith.constant 0 : index
    %267 = vector.load %arg4[%c0_58, %c0_59, %c0_60] : memref<3x80x512xf32, #tpu.memory_space<vmem>>, vector<1x80x512xf32>
    %268 = vector.shape_cast %267 : vector<1x80x512xf32> to vector<80x512xf32>
    %cst_61 = arith.constant dense<0.000000e+00> : vector<80x128xf32>
    %269 = tpu.matmul %268, %266, %cst_61 {dimension_numbers = #tpu.dot_dimension_numbers<[1], [0], [0], [1], [0, 0, 1, 1], [], []>} : vector<80x512xf32>, vector<512x128xf32>, vector<80x128xf32> -> vector<80x128xf32>
    %270 = arith.addf %15, %269 : vector<80x128xf32>
    %271 = arith.addf %16, %147 : vector<1x128xf32>
    %cst_62 = arith.constant 0.000000e+00 : f32
    %272 = vector.broadcast %cst_62 : f32 to vector<1x128xf32>
    %c4 = arith.constant 4 : index
    %273 = memref.load %arg3[%c4] : memref<72xf32, #tpu.memory_space<smem>>
    %274 = vector.broadcast %273 : f32 to vector<1x128xf32>
    %275 = arith.mulf %274, %0 : vector<1x128xf32>
    %c5 = arith.constant 5 : index
    %276 = memref.load %arg3[%c5] : memref<72xf32, #tpu.memory_space<smem>>
    %277 = vector.broadcast %276 : f32 to vector<1x128xf32>
    %278 = arith.mulf %277, %1 : vector<1x128xf32>
    %279 = arith.addf %275, %278 : vector<1x128xf32>
    %c6_63 = arith.constant 6 : index
    %280 = memref.load %arg3[%c6_63] : memref<72xf32, #tpu.memory_space<smem>>
    %281 = vector.broadcast %280 : f32 to vector<1x128xf32>
    %282 = arith.mulf %281, %2 : vector<1x128xf32>
    %283 = arith.addf %279, %282 : vector<1x128xf32>
    %c7 = arith.constant 7 : index
    %284 = memref.load %arg3[%c7] : memref<72xf32, #tpu.memory_space<smem>>
    %285 = vector.broadcast %284 : f32 to vector<1x128xf32>
    %286 = arith.addf %283, %285 : vector<1x128xf32>
    %287 = arith.mulf %7, %286 : vector<1x128xf32>
    %288 = arith.addf %272, %287 : vector<1x128xf32>
    %c40 = arith.constant 40 : index
    %289 = memref.load %arg3[%c40] : memref<72xf32, #tpu.memory_space<smem>>
    %290 = vector.broadcast %289 : f32 to vector<1x128xf32>
    %291 = arith.mulf %290, %0 : vector<1x128xf32>
    %c41 = arith.constant 41 : index
    %292 = memref.load %arg3[%c41] : memref<72xf32, #tpu.memory_space<smem>>
    %293 = vector.broadcast %292 : f32 to vector<1x128xf32>
    %294 = arith.mulf %293, %1 : vector<1x128xf32>
    %295 = arith.addf %291, %294 : vector<1x128xf32>
    %c42 = arith.constant 42 : index
    %296 = memref.load %arg3[%c42] : memref<72xf32, #tpu.memory_space<smem>>
    %297 = vector.broadcast %296 : f32 to vector<1x128xf32>
    %298 = arith.mulf %297, %2 : vector<1x128xf32>
    %299 = arith.addf %295, %298 : vector<1x128xf32>
    %c43 = arith.constant 43 : index
    %300 = memref.load %arg3[%c43] : memref<72xf32, #tpu.memory_space<smem>>
    %301 = vector.broadcast %300 : f32 to vector<1x128xf32>
    %302 = arith.addf %299, %301 : vector<1x128xf32>
    %303 = arith.mulf %11, %302 : vector<1x128xf32>
    %304 = arith.addf %288, %303 : vector<1x128xf32>
    %cst_64 = arith.constant 0.000000e+00 : f32
    %305 = vector.broadcast %cst_64 : f32 to vector<1x128xf32>
    %c16 = arith.constant 16 : index
    %306 = memref.load %arg3[%c16] : memref<72xf32, #tpu.memory_space<smem>>
    %307 = vector.broadcast %306 : f32 to vector<1x128xf32>
    %308 = arith.mulf %307, %0 : vector<1x128xf32>
    %c17 = arith.constant 17 : index
    %309 = memref.load %arg3[%c17] : memref<72xf32, #tpu.memory_space<smem>>
    %310 = vector.broadcast %309 : f32 to vector<1x128xf32>
    %311 = arith.mulf %310, %1 : vector<1x128xf32>
    %312 = arith.addf %308, %311 : vector<1x128xf32>
    %c18 = arith.constant 18 : index
    %313 = memref.load %arg3[%c18] : memref<72xf32, #tpu.memory_space<smem>>
    %314 = vector.broadcast %313 : f32 to vector<1x128xf32>
    %315 = arith.mulf %314, %2 : vector<1x128xf32>
    %316 = arith.addf %312, %315 : vector<1x128xf32>
    %c19 = arith.constant 19 : index
    %317 = memref.load %arg3[%c19] : memref<72xf32, #tpu.memory_space<smem>>
    %318 = vector.broadcast %317 : f32 to vector<1x128xf32>
    %319 = arith.addf %316, %318 : vector<1x128xf32>
    %320 = arith.mulf %7, %319 : vector<1x128xf32>
    %321 = arith.addf %305, %320 : vector<1x128xf32>
    %c52 = arith.constant 52 : index
    %322 = memref.load %arg3[%c52] : memref<72xf32, #tpu.memory_space<smem>>
    %323 = vector.broadcast %322 : f32 to vector<1x128xf32>
    %324 = arith.mulf %323, %0 : vector<1x128xf32>
    %c53 = arith.constant 53 : index
    %325 = memref.load %arg3[%c53] : memref<72xf32, #tpu.memory_space<smem>>
    %326 = vector.broadcast %325 : f32 to vector<1x128xf32>
    %327 = arith.mulf %326, %1 : vector<1x128xf32>
    %328 = arith.addf %324, %327 : vector<1x128xf32>
    %c54 = arith.constant 54 : index
    %329 = memref.load %arg3[%c54] : memref<72xf32, #tpu.memory_space<smem>>
    %330 = vector.broadcast %329 : f32 to vector<1x128xf32>
    %331 = arith.mulf %330, %2 : vector<1x128xf32>
    %332 = arith.addf %328, %331 : vector<1x128xf32>
    %c55 = arith.constant 55 : index
    %333 = memref.load %arg3[%c55] : memref<72xf32, #tpu.memory_space<smem>>
    %334 = vector.broadcast %333 : f32 to vector<1x128xf32>
    %335 = arith.addf %332, %334 : vector<1x128xf32>
    %336 = arith.mulf %11, %335 : vector<1x128xf32>
    %337 = arith.addf %321, %336 : vector<1x128xf32>
    %cst_65 = arith.constant 0.000000e+00 : f32
    %338 = vector.broadcast %cst_65 : f32 to vector<1x128xf32>
    %c28 = arith.constant 28 : index
    %339 = memref.load %arg3[%c28] : memref<72xf32, #tpu.memory_space<smem>>
    %340 = vector.broadcast %339 : f32 to vector<1x128xf32>
    %341 = arith.mulf %340, %0 : vector<1x128xf32>
    %c29 = arith.constant 29 : index
    %342 = memref.load %arg3[%c29] : memref<72xf32, #tpu.memory_space<smem>>
    %343 = vector.broadcast %342 : f32 to vector<1x128xf32>
    %344 = arith.mulf %343, %1 : vector<1x128xf32>
    %345 = arith.addf %341, %344 : vector<1x128xf32>
    %c30 = arith.constant 30 : index
    %346 = memref.load %arg3[%c30] : memref<72xf32, #tpu.memory_space<smem>>
    %347 = vector.broadcast %346 : f32 to vector<1x128xf32>
    %348 = arith.mulf %347, %2 : vector<1x128xf32>
    %349 = arith.addf %345, %348 : vector<1x128xf32>
    %c31 = arith.constant 31 : index
    %350 = memref.load %arg3[%c31] : memref<72xf32, #tpu.memory_space<smem>>
    %351 = vector.broadcast %350 : f32 to vector<1x128xf32>
    %352 = arith.addf %349, %351 : vector<1x128xf32>
    %353 = arith.mulf %7, %352 : vector<1x128xf32>
    %354 = arith.addf %338, %353 : vector<1x128xf32>
    %c64 = arith.constant 64 : index
    %355 = memref.load %arg3[%c64] : memref<72xf32, #tpu.memory_space<smem>>
    %356 = vector.broadcast %355 : f32 to vector<1x128xf32>
    %357 = arith.mulf %356, %0 : vector<1x128xf32>
    %c65 = arith.constant 65 : index
    %358 = memref.load %arg3[%c65] : memref<72xf32, #tpu.memory_space<smem>>
    %359 = vector.broadcast %358 : f32 to vector<1x128xf32>
    %360 = arith.mulf %359, %1 : vector<1x128xf32>
    %361 = arith.addf %357, %360 : vector<1x128xf32>
    %c66 = arith.constant 66 : index
    %362 = memref.load %arg3[%c66] : memref<72xf32, #tpu.memory_space<smem>>
    %363 = vector.broadcast %362 : f32 to vector<1x128xf32>
    %364 = arith.mulf %363, %2 : vector<1x128xf32>
    %365 = arith.addf %361, %364 : vector<1x128xf32>
    %c67 = arith.constant 67 : index
    %366 = memref.load %arg3[%c67] : memref<72xf32, #tpu.memory_space<smem>>
    %367 = vector.broadcast %366 : f32 to vector<1x128xf32>
    %368 = arith.addf %365, %367 : vector<1x128xf32>
    %369 = arith.mulf %11, %368 : vector<1x128xf32>
    %370 = arith.addf %354, %369 : vector<1x128xf32>
    %cst_66 = arith.constant 0.000000e+00 : f32
    %371 = vector.broadcast %cst_66 : f32 to vector<1x128xf32>
    %372 = arith.cmpf one, %370, %371 : vector<1x128xf32>
    %373 = arith.divf %304, %370 : vector<1x128xf32>
    %cst_67 = arith.constant 0.000000e+00 : f32
    %374 = vector.broadcast %cst_67 : f32 to vector<1x128xf32>
    %375 = arith.select %372, %373, %374 : vector<1x128xi1>, vector<1x128xf32>
    %376 = arith.divf %337, %370 : vector<1x128xf32>
    %cst_68 = arith.constant 0.000000e+00 : f32
    %377 = vector.broadcast %cst_68 : f32 to vector<1x128xf32>
    %378 = arith.select %372, %376, %377 : vector<1x128xi1>, vector<1x128xf32>
    %cst_69 = arith.constant 0.13333334 : f32
    %379 = vector.broadcast %cst_69 : f32 to vector<1x128xf32>
    %380 = arith.mulf %375, %379 : vector<1x128xf32>
    %cst_70 = arith.constant 1.000000e+00 : f32
    %381 = vector.broadcast %cst_70 : f32 to vector<1x128xf32>
    %382 = arith.subf %380, %381 : vector<1x128xf32>
    %cst_71 = arith.constant -2.000000e+00 : f32
    %383 = vector.broadcast %cst_71 : f32 to vector<1x128xf32>
    %384 = arith.select %372, %382, %383 : vector<1x128xi1>, vector<1x128xf32>
    %cst_72 = arith.constant 0.13333334 : f32
    %385 = vector.broadcast %cst_72 : f32 to vector<1x128xf32>
    %386 = arith.mulf %378, %385 : vector<1x128xf32>
    %cst_73 = arith.constant 1.000000e+00 : f32
    %387 = vector.broadcast %cst_73 : f32 to vector<1x128xf32>
    %388 = arith.subf %386, %387 : vector<1x128xf32>
    %cst_74 = arith.constant -2.000000e+00 : f32
    %389 = vector.broadcast %cst_74 : f32 to vector<1x128xf32>
    %390 = arith.select %372, %388, %389 : vector<1x128xi1>, vector<1x128xf32>
    %391 = math.absf %384 : vector<1x128xf32>
    %cst_75 = arith.constant 1.000000e+00 : f32
    %392 = vector.broadcast %cst_75 : f32 to vector<1x128xf32>
    %393 = arith.cmpf ole, %391, %392 : vector<1x128xf32>
    %394 = math.absf %390 : vector<1x128xf32>
    %cst_76 = arith.constant 1.000000e+00 : f32
    %395 = vector.broadcast %cst_76 : f32 to vector<1x128xf32>
    %396 = arith.cmpf ole, %394, %395 : vector<1x128xf32>
    %397 = arith.andi %393, %396 : vector<1x128xi1>
    %cst_77 = arith.constant 0.000000e+00 : f32
    %398 = vector.broadcast %cst_77 : f32 to vector<1x128xf32>
    %399 = arith.cmpf ogt, %370, %398 : vector<1x128xf32>
    %400 = arith.andi %397, %399 : vector<1x128xi1>
    %401 = arith.extui %400 : vector<1x128xi1> to vector<1x128xi32>
    %402 = arith.sitofp %401 : vector<1x128xi32> to vector<1x128xf32>
    %c1_78 = arith.constant 1 : index
    %c0_79 = arith.constant 0 : index
    %403 = vector.load %arg9[%c1_78, %c0_79] : memref<12x128xf32, #tpu.memory_space<vmem>>, vector<1x128xf32>
    tpu.vector_store %arg9[%c1_78, %c0_79], %384 {strides = array<i32>} : memref<12x128xf32, #tpu.memory_space<vmem>>, vector<1x128xf32>,
    %c4_80 = arith.constant 4 : index
    %c0_81 = arith.constant 0 : index
    %404 = vector.load %arg9[%c4_80, %c0_81] : memref<12x128xf32, #tpu.memory_space<vmem>>, vector<1x128xf32>
    tpu.vector_store %arg9[%c4_80, %c0_81], %390 {strides = array<i32>} : memref<12x128xf32, #tpu.memory_space<vmem>>, vector<1x128xf32>,
    %c7_82 = arith.constant 7 : index
    %c0_83 = arith.constant 0 : index
    %405 = vector.load %arg9[%c7_82, %c0_83] : memref<12x128xf32, #tpu.memory_space<vmem>>, vector<1x128xf32>
    tpu.vector_store %arg9[%c7_82, %c0_83], %370 {strides = array<i32>} : memref<12x128xf32, #tpu.memory_space<vmem>>, vector<1x128xf32>,
    %c10 = arith.constant 10 : index
    %c0_84 = arith.constant 0 : index
    %406 = vector.load %arg9[%c10, %c0_84] : memref<12x128xf32, #tpu.memory_space<vmem>>, vector<1x128xf32>
    tpu.vector_store %arg9[%c10, %c0_84], %402 {strides = array<i32>} : memref<12x128xf32, #tpu.memory_space<vmem>>, vector<1x128xf32>,
    %cst_85 = arith.constant 0.000000e+00 : f32
    %407 = vector.broadcast %cst_85 : f32 to vector<1x128xf32>
    %408 = arith.select %400, %375, %407 : vector<1x128xi1>, vector<1x128xf32>
    %409 = math.absf %408 : vector<1x128xf32>
    %cst_86 = arith.constant 0.0333333351 : f32
    %410 = vector.broadcast %cst_86 : f32 to vector<1x128xf32>
    %411 = arith.mulf %409, %410 : vector<1x128xf32>
    %412 = math.floor %411 : vector<1x128xf32>
    %cst_87 = arith.constant 3.000000e+01 : f32
    %413 = vector.broadcast %cst_87 : f32 to vector<1x128xf32>
    %414 = arith.mulf %413, %412 : vector<1x128xf32>
    %415 = arith.subf %409, %414 : vector<1x128xf32>
    %cst_88 = arith.constant 1.500000e+01 : f32
    %416 = vector.broadcast %cst_88 : f32 to vector<1x128xf32>
    %417 = arith.cmpf ogt, %415, %416 : vector<1x128xf32>
    %cst_89 = arith.constant 3.000000e+01 : f32
    %418 = vector.broadcast %cst_89 : f32 to vector<1x128xf32>
    %419 = arith.subf %418, %415 : vector<1x128xf32>
    %420 = arith.select %417, %419, %415 : vector<1x128xi1>, vector<1x128xf32>
    %cst_90 = arith.constant 0.000000e+00 : f32
    %421 = vector.broadcast %cst_90 : f32 to vector<1x128xf32>
    %422 = arith.select %400, %378, %421 : vector<1x128xi1>, vector<1x128xf32>
    %423 = math.absf %422 : vector<1x128xf32>
    %cst_91 = arith.constant 0.0333333351 : f32
    %424 = vector.broadcast %cst_91 : f32 to vector<1x128xf32>
    %425 = arith.mulf %423, %424 : vector<1x128xf32>
    %426 = math.floor %425 : vector<1x128xf32>
    %cst_92 = arith.constant 3.000000e+01 : f32
    %427 = vector.broadcast %cst_92 : f32 to vector<1x128xf32>
    %428 = arith.mulf %427, %426 : vector<1x128xf32>
    %429 = arith.subf %423, %428 : vector<1x128xf32>
    %cst_93 = arith.constant 1.500000e+01 : f32
    %430 = vector.broadcast %cst_93 : f32 to vector<1x128xf32>
    %431 = arith.cmpf ogt, %429, %430 : vector<1x128xf32>
    %cst_94 = arith.constant 3.000000e+01 : f32
    %432 = vector.broadcast %cst_94 : f32 to vector<1x128xf32>
    %433 = arith.subf %432, %429 : vector<1x128xf32>
    %434 = arith.select %431, %433, %429 : vector<1x128xi1>, vector<1x128xf32>
    %435 = math.floor %420 : vector<1x128xf32>
    %436 = math.floor %434 : vector<1x128xf32>
    %437 = arith.subf %420, %435 : vector<1x128xf32>
    %438 = arith.subf %434, %436 : vector<1x128xf32>
    %cst_95 = arith.constant 1.000000e+00 : f32
    %439 = vector.broadcast %cst_95 : f32 to vector<1x128xf32>
    %440 = arith.subf %439, %437 : vector<1x128xf32>
    %cst_96 = arith.constant 1.000000e+00 : f32
    %441 = vector.broadcast %cst_96 : f32 to vector<1x128xf32>
    %442 = arith.subf %441, %438 : vector<1x128xf32>
    %cst_97 = arith.constant 0.000000e+00 : f32
    %c15_i32_98 = arith.constant 15 : i32
    %443 = vector.broadcast %cst_97 : f32 to vector<1x128xf32>
    %444 = arith.maximumf %443, %435 : vector<1x128xf32>
    %445 = arith.sitofp %c15_i32_98 : i32 to f32
    %446 = vector.broadcast %445 : f32 to vector<1x128xf32>
    %447 = arith.minimumf %446, %444 : vector<1x128xf32>
    %448 = arith.fptosi %447 : vector<1x128xf32> to vector<1x128xi32>
    %cst_99 = arith.constant 1.000000e+00 : f32
    %449 = vector.broadcast %cst_99 : f32 to vector<1x128xf32>
    %450 = arith.addf %435, %449 : vector<1x128xf32>
    %cst_100 = arith.constant 0.000000e+00 : f32
    %c15_i32_101 = arith.constant 15 : i32
    %451 = vector.broadcast %cst_100 : f32 to vector<1x128xf32>
    %452 = arith.maximumf %451, %450 : vector<1x128xf32>
    %453 = arith.sitofp %c15_i32_101 : i32 to f32
    %454 = vector.broadcast %453 : f32 to vector<1x128xf32>
    %455 = arith.minimumf %454, %452 : vector<1x128xf32>
    %456 = arith.fptosi %455 : vector<1x128xf32> to vector<1x128xi32>
    %cst_102 = arith.constant 0.000000e+00 : f32
    %c15_i32_103 = arith.constant 15 : i32
    %457 = vector.broadcast %cst_102 : f32 to vector<1x128xf32>
    %458 = arith.maximumf %457, %436 : vector<1x128xf32>
    %459 = arith.sitofp %c15_i32_103 : i32 to f32
    %460 = vector.broadcast %459 : f32 to vector<1x128xf32>
    %461 = arith.minimumf %460, %458 : vector<1x128xf32>
    %462 = arith.fptosi %461 : vector<1x128xf32> to vector<1x128xi32>
    %cst_104 = arith.constant 1.000000e+00 : f32
    %463 = vector.broadcast %cst_104 : f32 to vector<1x128xf32>
    %464 = arith.addf %436, %463 : vector<1x128xf32>
    %cst_105 = arith.constant 0.000000e+00 : f32
    %c15_i32_106 = arith.constant 15 : i32
    %465 = vector.broadcast %cst_105 : f32 to vector<1x128xf32>
    %466 = arith.maximumf %465, %464 : vector<1x128xf32>
    %467 = arith.sitofp %c15_i32_106 : i32 to f32
    %468 = vector.broadcast %467 : f32 to vector<1x128xf32>
    %469 = arith.minimumf %468, %466 : vector<1x128xf32>
    %470 = arith.fptosi %469 : vector<1x128xf32> to vector<1x128xi32>
    %c16_i32_107 = arith.constant 16 : i32
    %471 = vector.broadcast %c16_i32_107 : i32 to vector<1x128xi32>
    %472 = arith.muli %462, %471 : vector<1x128xi32>
    %473 = arith.addi %13, %472 : vector<1x128xi32>
    %474 = arith.addi %473, %448 : vector<1x128xi32>
    %c16_i32_108 = arith.constant 16 : i32
    %475 = vector.broadcast %c16_i32_108 : i32 to vector<1x128xi32>
    %476 = arith.muli %462, %475 : vector<1x128xi32>
    %477 = arith.addi %13, %476 : vector<1x128xi32>
    %478 = arith.addi %477, %456 : vector<1x128xi32>
    %c16_i32_109 = arith.constant 16 : i32
    %479 = vector.broadcast %c16_i32_109 : i32 to vector<1x128xi32>
    %480 = arith.muli %470, %479 : vector<1x128xi32>
    %481 = arith.addi %13, %480 : vector<1x128xi32>
    %482 = arith.addi %481, %448 : vector<1x128xi32>
    %c16_i32_110 = arith.constant 16 : i32
    %483 = vector.broadcast %c16_i32_110 : i32 to vector<1x128xi32>
    %484 = arith.muli %470, %483 : vector<1x128xi32>
    %485 = arith.addi %13, %484 : vector<1x128xi32>
    %486 = arith.addi %485, %456 : vector<1x128xi32>
    %487 = arith.mulf %442, %440 : vector<1x128xf32>
    %488 = arith.mulf %487, %402 : vector<1x128xf32>
    %489 = arith.mulf %442, %437 : vector<1x128xf32>
    %490 = arith.mulf %489, %402 : vector<1x128xf32>
    %491 = arith.mulf %438, %440 : vector<1x128xf32>
    %492 = arith.mulf %491, %402 : vector<1x128xf32>
    %493 = arith.mulf %438, %437 : vector<1x128xf32>
    %494 = arith.mulf %493, %402 : vector<1x128xf32>
    %495 = vector.broadcast %474 : vector<1x128xi32> to vector<512x128xi32>
    %496 = arith.cmpi eq, %14, %495 : vector<512x128xi32>
    %cst_111 = arith.constant 0.000000e+00 : f32
    %497 = vector.shape_cast %488 : vector<1x128xf32> to vector<1x128xf32>
    %498 = vector.broadcast %497 : vector<1x128xf32> to vector<512x128xf32>
    %499 = vector.broadcast %cst_111 : f32 to vector<512x128xf32>
    %500 = arith.select %496, %498, %499 : vector<512x128xi1>, vector<512x128xf32>
    %501 = vector.broadcast %478 : vector<1x128xi32> to vector<512x128xi32>
    %502 = arith.cmpi eq, %14, %501 : vector<512x128xi32>
    %cst_112 = arith.constant 0.000000e+00 : f32
    %503 = vector.shape_cast %490 : vector<1x128xf32> to vector<1x128xf32>
    %504 = vector.broadcast %503 : vector<1x128xf32> to vector<512x128xf32>
    %505 = vector.broadcast %cst_112 : f32 to vector<512x128xf32>
    %506 = arith.select %502, %504, %505 : vector<512x128xi1>, vector<512x128xf32>
    %507 = arith.addf %500, %506 : vector<512x128xf32>
    %508 = vector.broadcast %482 : vector<1x128xi32> to vector<512x128xi32>
    %509 = arith.cmpi eq, %14, %508 : vector<512x128xi32>
    %cst_113 = arith.constant 0.000000e+00 : f32
    %510 = vector.shape_cast %492 : vector<1x128xf32> to vector<1x128xf32>
    %511 = vector.broadcast %510 : vector<1x128xf32> to vector<512x128xf32>
    %512 = vector.broadcast %cst_113 : f32 to vector<512x128xf32>
    %513 = arith.select %509, %511, %512 : vector<512x128xi1>, vector<512x128xf32>
    %514 = arith.addf %507, %513 : vector<512x128xf32>
    %515 = vector.broadcast %486 : vector<1x128xi32> to vector<512x128xi32>
    %516 = arith.cmpi eq, %14, %515 : vector<512x128xi32>
    %cst_114 = arith.constant 0.000000e+00 : f32
    %517 = vector.shape_cast %494 : vector<1x128xf32> to vector<1x128xf32>
    %518 = vector.broadcast %517 : vector<1x128xf32> to vector<512x128xf32>
    %519 = vector.broadcast %cst_114 : f32 to vector<512x128xf32>
    %520 = arith.select %516, %518, %519 : vector<512x128xi1>, vector<512x128xf32>
    %521 = arith.addf %514, %520 : vector<512x128xf32>
    %c1_115 = arith.constant 1 : index
    %c0_116 = arith.constant 0 : index
    %c0_117 = arith.constant 0 : index
    %522 = vector.load %arg4[%c1_115, %c0_116, %c0_117] : memref<3x80x512xf32, #tpu.memory_space<vmem>>, vector<1x80x512xf32>
    %523 = vector.shape_cast %522 : vector<1x80x512xf32> to vector<80x512xf32>
    %cst_118 = arith.constant dense<0.000000e+00> : vector<80x128xf32>
    %524 = tpu.matmul %523, %521, %cst_118 {dimension_numbers = #tpu.dot_dimension_numbers<[1], [0], [0], [1], [0, 0, 1, 1], [], []>} : vector<80x512xf32>, vector<512x128xf32>, vector<80x128xf32> -> vector<80x128xf32>
    %525 = arith.addf %270, %524 : vector<80x128xf32>
    %526 = arith.addf %271, %402 : vector<1x128xf32>
    %cst_119 = arith.constant 0.000000e+00 : f32
    %527 = vector.broadcast %cst_119 : f32 to vector<1x128xf32>
    %c8 = arith.constant 8 : index
    %528 = memref.load %arg3[%c8] : memref<72xf32, #tpu.memory_space<smem>>
    %529 = vector.broadcast %528 : f32 to vector<1x128xf32>
    %530 = arith.mulf %529, %0 : vector<1x128xf32>
    %c9_120 = arith.constant 9 : index
    %531 = memref.load %arg3[%c9_120] : memref<72xf32, #tpu.memory_space<smem>>
    %532 = vector.broadcast %531 : f32 to vector<1x128xf32>
    %533 = arith.mulf %532, %1 : vector<1x128xf32>
    %534 = arith.addf %530, %533 : vector<1x128xf32>
    %c10_121 = arith.constant 10 : index
    %535 = memref.load %arg3[%c10_121] : memref<72xf32, #tpu.memory_space<smem>>
    %536 = vector.broadcast %535 : f32 to vector<1x128xf32>
    %537 = arith.mulf %536, %2 : vector<1x128xf32>
    %538 = arith.addf %534, %537 : vector<1x128xf32>
    %c11 = arith.constant 11 : index
    %539 = memref.load %arg3[%c11] : memref<72xf32, #tpu.memory_space<smem>>
    %540 = vector.broadcast %539 : f32 to vector<1x128xf32>
    %541 = arith.addf %538, %540 : vector<1x128xf32>
    %542 = arith.mulf %7, %541 : vector<1x128xf32>
    %543 = arith.addf %527, %542 : vector<1x128xf32>
    %c44 = arith.constant 44 : index
    %544 = memref.load %arg3[%c44] : memref<72xf32, #tpu.memory_space<smem>>
    %545 = vector.broadcast %544 : f32 to vector<1x128xf32>
    %546 = arith.mulf %545, %0 : vector<1x128xf32>
    %c45 = arith.constant 45 : index
    %547 = memref.load %arg3[%c45] : memref<72xf32, #tpu.memory_space<smem>>
    %548 = vector.broadcast %547 : f32 to vector<1x128xf32>
    %549 = arith.mulf %548, %1 : vector<1x128xf32>
    %550 = arith.addf %546, %549 : vector<1x128xf32>
    %c46 = arith.constant 46 : index
    %551 = memref.load %arg3[%c46] : memref<72xf32, #tpu.memory_space<smem>>
    %552 = vector.broadcast %551 : f32 to vector<1x128xf32>
    %553 = arith.mulf %552, %2 : vector<1x128xf32>
    %554 = arith.addf %550, %553 : vector<1x128xf32>
    %c47 = arith.constant 47 : index
    %555 = memref.load %arg3[%c47] : memref<72xf32, #tpu.memory_space<smem>>
    %556 = vector.broadcast %555 : f32 to vector<1x128xf32>
    %557 = arith.addf %554, %556 : vector<1x128xf32>
    %558 = arith.mulf %11, %557 : vector<1x128xf32>
    %559 = arith.addf %543, %558 : vector<1x128xf32>
    %cst_122 = arith.constant 0.000000e+00 : f32
    %560 = vector.broadcast %cst_122 : f32 to vector<1x128xf32>
    %c20 = arith.constant 20 : index
    %561 = memref.load %arg3[%c20] : memref<72xf32, #tpu.memory_space<smem>>
    %562 = vector.broadcast %561 : f32 to vector<1x128xf32>
    %563 = arith.mulf %562, %0 : vector<1x128xf32>
    %c21 = arith.constant 21 : index
    %564 = memref.load %arg3[%c21] : memref<72xf32, #tpu.memory_space<smem>>
    %565 = vector.broadcast %564 : f32 to vector<1x128xf32>
    %566 = arith.mulf %565, %1 : vector<1x128xf32>
    %567 = arith.addf %563, %566 : vector<1x128xf32>
    %c22 = arith.constant 22 : index
    %568 = memref.load %arg3[%c22] : memref<72xf32, #tpu.memory_space<smem>>
    %569 = vector.broadcast %568 : f32 to vector<1x128xf32>
    %570 = arith.mulf %569, %2 : vector<1x128xf32>
    %571 = arith.addf %567, %570 : vector<1x128xf32>
    %c23 = arith.constant 23 : index
    %572 = memref.load %arg3[%c23] : memref<72xf32, #tpu.memory_space<smem>>
    %573 = vector.broadcast %572 : f32 to vector<1x128xf32>
    %574 = arith.addf %571, %573 : vector<1x128xf32>
    %575 = arith.mulf %7, %574 : vector<1x128xf32>
    %576 = arith.addf %560, %575 : vector<1x128xf32>
    %c56 = arith.constant 56 : index
    %577 = memref.load %arg3[%c56] : memref<72xf32, #tpu.memory_space<smem>>
    %578 = vector.broadcast %577 : f32 to vector<1x128xf32>
    %579 = arith.mulf %578, %0 : vector<1x128xf32>
    %c57 = arith.constant 57 : index
    %580 = memref.load %arg3[%c57] : memref<72xf32, #tpu.memory_space<smem>>
    %581 = vector.broadcast %580 : f32 to vector<1x128xf32>
    %582 = arith.mulf %581, %1 : vector<1x128xf32>
    %583 = arith.addf %579, %582 : vector<1x128xf32>
    %c58 = arith.constant 58 : index
    %584 = memref.load %arg3[%c58] : memref<72xf32, #tpu.memory_space<smem>>
    %585 = vector.broadcast %584 : f32 to vector<1x128xf32>
    %586 = arith.mulf %585, %2 : vector<1x128xf32>
    %587 = arith.addf %583, %586 : vector<1x128xf32>
    %c59 = arith.constant 59 : index
    %588 = memref.load %arg3[%c59] : memref<72xf32, #tpu.memory_space<smem>>
    %589 = vector.broadcast %588 : f32 to vector<1x128xf32>
    %590 = arith.addf %587, %589 : vector<1x128xf32>
    %591 = arith.mulf %11, %590 : vector<1x128xf32>
    %592 = arith.addf %576, %591 : vector<1x128xf32>
    %cst_123 = arith.constant 0.000000e+00 : f32
    %593 = vector.broadcast %cst_123 : f32 to vector<1x128xf32>
    %c32 = arith.constant 32 : index
    %594 = memref.load %arg3[%c32] : memref<72xf32, #tpu.memory_space<smem>>
    %595 = vector.broadcast %594 : f32 to vector<1x128xf32>
    %596 = arith.mulf %595, %0 : vector<1x128xf32>
    %c33 = arith.constant 33 : index
    %597 = memref.load %arg3[%c33] : memref<72xf32, #tpu.memory_space<smem>>
    %598 = vector.broadcast %597 : f32 to vector<1x128xf32>
    %599 = arith.mulf %598, %1 : vector<1x128xf32>
    %600 = arith.addf %596, %599 : vector<1x128xf32>
    %c34 = arith.constant 34 : index
    %601 = memref.load %arg3[%c34] : memref<72xf32, #tpu.memory_space<smem>>
    %602 = vector.broadcast %601 : f32 to vector<1x128xf32>
    %603 = arith.mulf %602, %2 : vector<1x128xf32>
    %604 = arith.addf %600, %603 : vector<1x128xf32>
    %c35 = arith.constant 35 : index
    %605 = memref.load %arg3[%c35] : memref<72xf32, #tpu.memory_space<smem>>
    %606 = vector.broadcast %605 : f32 to vector<1x128xf32>
    %607 = arith.addf %604, %606 : vector<1x128xf32>
    %608 = arith.mulf %7, %607 : vector<1x128xf32>
    %609 = arith.addf %593, %608 : vector<1x128xf32>
    %c68 = arith.constant 68 : index
    %610 = memref.load %arg3[%c68] : memref<72xf32, #tpu.memory_space<smem>>
    %611 = vector.broadcast %610 : f32 to vector<1x128xf32>
    %612 = arith.mulf %611, %0 : vector<1x128xf32>
    %c69 = arith.constant 69 : index
    %613 = memref.load %arg3[%c69] : memref<72xf32, #tpu.memory_space<smem>>
    %614 = vector.broadcast %613 : f32 to vector<1x128xf32>
    %615 = arith.mulf %614, %1 : vector<1x128xf32>
    %616 = arith.addf %612, %615 : vector<1x128xf32>
    %c70 = arith.constant 70 : index
    %617 = memref.load %arg3[%c70] : memref<72xf32, #tpu.memory_space<smem>>
    %618 = vector.broadcast %617 : f32 to vector<1x128xf32>
    %619 = arith.mulf %618, %2 : vector<1x128xf32>
    %620 = arith.addf %616, %619 : vector<1x128xf32>
    %c71 = arith.constant 71 : index
    %621 = memref.load %arg3[%c71] : memref<72xf32, #tpu.memory_space<smem>>
    %622 = vector.broadcast %621 : f32 to vector<1x128xf32>
    %623 = arith.addf %620, %622 : vector<1x128xf32>
    %624 = arith.mulf %11, %623 : vector<1x128xf32>
    %625 = arith.addf %609, %624 : vector<1x128xf32>
    %cst_124 = arith.constant 0.000000e+00 : f32
    %626 = vector.broadcast %cst_124 : f32 to vector<1x128xf32>
    %627 = arith.cmpf one, %625, %626 : vector<1x128xf32>
    %628 = arith.divf %559, %625 : vector<1x128xf32>
    %cst_125 = arith.constant 0.000000e+00 : f32
    %629 = vector.broadcast %cst_125 : f32 to vector<1x128xf32>
    %630 = arith.select %627, %628, %629 : vector<1x128xi1>, vector<1x128xf32>
    %631 = arith.divf %592, %625 : vector<1x128xf32>
    %cst_126 = arith.constant 0.000000e+00 : f32
    %632 = vector.broadcast %cst_126 : f32 to vector<1x128xf32>
    %633 = arith.select %627, %631, %632 : vector<1x128xi1>, vector<1x128xf32>
    %cst_127 = arith.constant 0.13333334 : f32
    %634 = vector.broadcast %cst_127 : f32 to vector<1x128xf32>
    %635 = arith.mulf %630, %634 : vector<1x128xf32>
    %cst_128 = arith.constant 1.000000e+00 : f32
    %636 = vector.broadcast %cst_128 : f32 to vector<1x128xf32>
    %637 = arith.subf %635, %636 : vector<1x128xf32>
    %cst_129 = arith.constant -2.000000e+00 : f32
    %638 = vector.broadcast %cst_129 : f32 to vector<1x128xf32>
    %639 = arith.select %627, %637, %638 : vector<1x128xi1>, vector<1x128xf32>
    %cst_130 = arith.constant 0.13333334 : f32
    %640 = vector.broadcast %cst_130 : f32 to vector<1x128xf32>
    %641 = arith.mulf %633, %640 : vector<1x128xf32>
    %cst_131 = arith.constant 1.000000e+00 : f32
    %642 = vector.broadcast %cst_131 : f32 to vector<1x128xf32>
    %643 = arith.subf %641, %642 : vector<1x128xf32>
    %cst_132 = arith.constant -2.000000e+00 : f32
    %644 = vector.broadcast %cst_132 : f32 to vector<1x128xf32>
    %645 = arith.select %627, %643, %644 : vector<1x128xi1>, vector<1x128xf32>
    %646 = math.absf %639 : vector<1x128xf32>
    %cst_133 = arith.constant 1.000000e+00 : f32
    %647 = vector.broadcast %cst_133 : f32 to vector<1x128xf32>
    %648 = arith.cmpf ole, %646, %647 : vector<1x128xf32>
    %649 = math.absf %645 : vector<1x128xf32>
    %cst_134 = arith.constant 1.000000e+00 : f32
    %650 = vector.broadcast %cst_134 : f32 to vector<1x128xf32>
    %651 = arith.cmpf ole, %649, %650 : vector<1x128xf32>
    %652 = arith.andi %648, %651 : vector<1x128xi1>
    %cst_135 = arith.constant 0.000000e+00 : f32
    %653 = vector.broadcast %cst_135 : f32 to vector<1x128xf32>
    %654 = arith.cmpf ogt, %625, %653 : vector<1x128xf32>
    %655 = arith.andi %652, %654 : vector<1x128xi1>
    %656 = arith.extui %655 : vector<1x128xi1> to vector<1x128xi32>
    %657 = arith.sitofp %656 : vector<1x128xi32> to vector<1x128xf32>
    %c2_136 = arith.constant 2 : index
    %c0_137 = arith.constant 0 : index
    %658 = vector.load %arg9[%c2_136, %c0_137] : memref<12x128xf32, #tpu.memory_space<vmem>>, vector<1x128xf32>
    tpu.vector_store %arg9[%c2_136, %c0_137], %639 {strides = array<i32>} : memref<12x128xf32, #tpu.memory_space<vmem>>, vector<1x128xf32>,
    %c5_138 = arith.constant 5 : index
    %c0_139 = arith.constant 0 : index
    %659 = vector.load %arg9[%c5_138, %c0_139] : memref<12x128xf32, #tpu.memory_space<vmem>>, vector<1x128xf32>
    tpu.vector_store %arg9[%c5_138, %c0_139], %645 {strides = array<i32>} : memref<12x128xf32, #tpu.memory_space<vmem>>, vector<1x128xf32>,
    %c8_140 = arith.constant 8 : index
    %c0_141 = arith.constant 0 : index
    %660 = vector.load %arg9[%c8_140, %c0_141] : memref<12x128xf32, #tpu.memory_space<vmem>>, vector<1x128xf32>
    tpu.vector_store %arg9[%c8_140, %c0_141], %625 {strides = array<i32>} : memref<12x128xf32, #tpu.memory_space<vmem>>, vector<1x128xf32>,
    %c11_142 = arith.constant 11 : index
    %c0_143 = arith.constant 0 : index
    %661 = vector.load %arg9[%c11_142, %c0_143] : memref<12x128xf32, #tpu.memory_space<vmem>>, vector<1x128xf32>
    tpu.vector_store %arg9[%c11_142, %c0_143], %657 {strides = array<i32>} : memref<12x128xf32, #tpu.memory_space<vmem>>, vector<1x128xf32>,
    %cst_144 = arith.constant 0.000000e+00 : f32
    %662 = vector.broadcast %cst_144 : f32 to vector<1x128xf32>
    %663 = arith.select %655, %630, %662 : vector<1x128xi1>, vector<1x128xf32>
    %664 = math.absf %663 : vector<1x128xf32>
    %cst_145 = arith.constant 0.0333333351 : f32
    %665 = vector.broadcast %cst_145 : f32 to vector<1x128xf32>
    %666 = arith.mulf %664, %665 : vector<1x128xf32>
    %667 = math.floor %666 : vector<1x128xf32>
    %cst_146 = arith.constant 3.000000e+01 : f32
    %668 = vector.broadcast %cst_146 : f32 to vector<1x128xf32>
    %669 = arith.mulf %668, %667 : vector<1x128xf32>
    %670 = arith.subf %664, %669 : vector<1x128xf32>
    %cst_147 = arith.constant 1.500000e+01 : f32
    %671 = vector.broadcast %cst_147 : f32 to vector<1x128xf32>
    %672 = arith.cmpf ogt, %670, %671 : vector<1x128xf32>
    %cst_148 = arith.constant 3.000000e+01 : f32
    %673 = vector.broadcast %cst_148 : f32 to vector<1x128xf32>
    %674 = arith.subf %673, %670 : vector<1x128xf32>
    %675 = arith.select %672, %674, %670 : vector<1x128xi1>, vector<1x128xf32>
    %cst_149 = arith.constant 0.000000e+00 : f32
    %676 = vector.broadcast %cst_149 : f32 to vector<1x128xf32>
    %677 = arith.select %655, %633, %676 : vector<1x128xi1>, vector<1x128xf32>
    %678 = math.absf %677 : vector<1x128xf32>
    %cst_150 = arith.constant 0.0333333351 : f32
    %679 = vector.broadcast %cst_150 : f32 to vector<1x128xf32>
    %680 = arith.mulf %678, %679 : vector<1x128xf32>
    %681 = math.floor %680 : vector<1x128xf32>
    %cst_151 = arith.constant 3.000000e+01 : f32
    %682 = vector.broadcast %cst_151 : f32 to vector<1x128xf32>
    %683 = arith.mulf %682, %681 : vector<1x128xf32>
    %684 = arith.subf %678, %683 : vector<1x128xf32>
    %cst_152 = arith.constant 1.500000e+01 : f32
    %685 = vector.broadcast %cst_152 : f32 to vector<1x128xf32>
    %686 = arith.cmpf ogt, %684, %685 : vector<1x128xf32>
    %cst_153 = arith.constant 3.000000e+01 : f32
    %687 = vector.broadcast %cst_153 : f32 to vector<1x128xf32>
    %688 = arith.subf %687, %684 : vector<1x128xf32>
    %689 = arith.select %686, %688, %684 : vector<1x128xi1>, vector<1x128xf32>
    %690 = math.floor %675 : vector<1x128xf32>
    %691 = math.floor %689 : vector<1x128xf32>
    %692 = arith.subf %675, %690 : vector<1x128xf32>
    %693 = arith.subf %689, %691 : vector<1x128xf32>
    %cst_154 = arith.constant 1.000000e+00 : f32
    %694 = vector.broadcast %cst_154 : f32 to vector<1x128xf32>
    %695 = arith.subf %694, %692 : vector<1x128xf32>
    %cst_155 = arith.constant 1.000000e+00 : f32
    %696 = vector.broadcast %cst_155 : f32 to vector<1x128xf32>
    %697 = arith.subf %696, %693 : vector<1x128xf32>
    %cst_156 = arith.constant 0.000000e+00 : f32
    %c15_i32_157 = arith.constant 15 : i32
    %698 = vector.broadcast %cst_156 : f32 to vector<1x128xf32>
    %699 = arith.maximumf %698, %690 : vector<1x128xf32>
    %700 = arith.sitofp %c15_i32_157 : i32 to f32
    %701 = vector.broadcast %700 : f32 to vector<1x128xf32>
    %702 = arith.minimumf %701, %699 : vector<1x128xf32>
    %703 = arith.fptosi %702 : vector<1x128xf32> to vector<1x128xi32>
    %cst_158 = arith.constant 1.000000e+00 : f32
    %704 = vector.broadcast %cst_158 : f32 to vector<1x128xf32>
    %705 = arith.addf %690, %704 : vector<1x128xf32>
    %cst_159 = arith.constant 0.000000e+00 : f32
    %c15_i32_160 = arith.constant 15 : i32
    %706 = vector.broadcast %cst_159 : f32 to vector<1x128xf32>
    %707 = arith.maximumf %706, %705 : vector<1x128xf32>
    %708 = arith.sitofp %c15_i32_160 : i32 to f32
    %709 = vector.broadcast %708 : f32 to vector<1x128xf32>
    %710 = arith.minimumf %709, %707 : vector<1x128xf32>
    %711 = arith.fptosi %710 : vector<1x128xf32> to vector<1x128xi32>
    %cst_161 = arith.constant 0.000000e+00 : f32
    %c15_i32_162 = arith.constant 15 : i32
    %712 = vector.broadcast %cst_161 : f32 to vector<1x128xf32>
    %713 = arith.maximumf %712, %691 : vector<1x128xf32>
    %714 = arith.sitofp %c15_i32_162 : i32 to f32
    %715 = vector.broadcast %714 : f32 to vector<1x128xf32>
    %716 = arith.minimumf %715, %713 : vector<1x128xf32>
    %717 = arith.fptosi %716 : vector<1x128xf32> to vector<1x128xi32>
    %cst_163 = arith.constant 1.000000e+00 : f32
    %718 = vector.broadcast %cst_163 : f32 to vector<1x128xf32>
    %719 = arith.addf %691, %718 : vector<1x128xf32>
    %cst_164 = arith.constant 0.000000e+00 : f32
    %c15_i32_165 = arith.constant 15 : i32
    %720 = vector.broadcast %cst_164 : f32 to vector<1x128xf32>
    %721 = arith.maximumf %720, %719 : vector<1x128xf32>
    %722 = arith.sitofp %c15_i32_165 : i32 to f32
    %723 = vector.broadcast %722 : f32 to vector<1x128xf32>
    %724 = arith.minimumf %723, %721 : vector<1x128xf32>
    %725 = arith.fptosi %724 : vector<1x128xf32> to vector<1x128xi32>
    %c16_i32_166 = arith.constant 16 : i32
    %726 = vector.broadcast %c16_i32_166 : i32 to vector<1x128xi32>
    %727 = arith.muli %717, %726 : vector<1x128xi32>
    %728 = arith.addi %13, %727 : vector<1x128xi32>
    %729 = arith.addi %728, %703 : vector<1x128xi32>
    %c16_i32_167 = arith.constant 16 : i32
    %730 = vector.broadcast %c16_i32_167 : i32 to vector<1x128xi32>
    %731 = arith.muli %717, %730 : vector<1x128xi32>
    %732 = arith.addi %13, %731 : vector<1x128xi32>
    %733 = arith.addi %732, %711 : vector<1x128xi32>
    %c16_i32_168 = arith.constant 16 : i32
    %734 = vector.broadcast %c16_i32_168 : i32 to vector<1x128xi32>
    %735 = arith.muli %725, %734 : vector<1x128xi32>
    %736 = arith.addi %13, %735 : vector<1x128xi32>
    %737 = arith.addi %736, %703 : vector<1x128xi32>
    %c16_i32_169 = arith.constant 16 : i32
    %738 = vector.broadcast %c16_i32_169 : i32 to vector<1x128xi32>
    %739 = arith.muli %725, %738 : vector<1x128xi32>
    %740 = arith.addi %13, %739 : vector<1x128xi32>
    %741 = arith.addi %740, %711 : vector<1x128xi32>
    %742 = arith.mulf %697, %695 : vector<1x128xf32>
    %743 = arith.mulf %742, %657 : vector<1x128xf32>
    %744 = arith.mulf %697, %692 : vector<1x128xf32>
    %745 = arith.mulf %744, %657 : vector<1x128xf32>
    %746 = arith.mulf %693, %695 : vector<1x128xf32>
    %747 = arith.mulf %746, %657 : vector<1x128xf32>
    %748 = arith.mulf %693, %692 : vector<1x128xf32>
    %749 = arith.mulf %748, %657 : vector<1x128xf32>
    %750 = vector.broadcast %729 : vector<1x128xi32> to vector<512x128xi32>
    %751 = arith.cmpi eq, %14, %750 : vector<512x128xi32>
    %cst_170 = arith.constant 0.000000e+00 : f32
    %752 = vector.shape_cast %743 : vector<1x128xf32> to vector<1x128xf32>
    %753 = vector.broadcast %752 : vector<1x128xf32> to vector<512x128xf32>
    %754 = vector.broadcast %cst_170 : f32 to vector<512x128xf32>
    %755 = arith.select %751, %753, %754 : vector<512x128xi1>, vector<512x128xf32>
    %756 = vector.broadcast %733 : vector<1x128xi32> to vector<512x128xi32>
    %757 = arith.cmpi eq, %14, %756 : vector<512x128xi32>
    %cst_171 = arith.constant 0.000000e+00 : f32
    %758 = vector.shape_cast %745 : vector<1x128xf32> to vector<1x128xf32>
    %759 = vector.broadcast %758 : vector<1x128xf32> to vector<512x128xf32>
    %760 = vector.broadcast %cst_171 : f32 to vector<512x128xf32>
    %761 = arith.select %757, %759, %760 : vector<512x128xi1>, vector<512x128xf32>
    %762 = arith.addf %755, %761 : vector<512x128xf32>
    %763 = vector.broadcast %737 : vector<1x128xi32> to vector<512x128xi32>
    %764 = arith.cmpi eq, %14, %763 : vector<512x128xi32>
    %cst_172 = arith.constant 0.000000e+00 : f32
    %765 = vector.shape_cast %747 : vector<1x128xf32> to vector<1x128xf32>
    %766 = vector.broadcast %765 : vector<1x128xf32> to vector<512x128xf32>
    %767 = vector.broadcast %cst_172 : f32 to vector<512x128xf32>
    %768 = arith.select %764, %766, %767 : vector<512x128xi1>, vector<512x128xf32>
    %769 = arith.addf %762, %768 : vector<512x128xf32>
    %770 = vector.broadcast %741 : vector<1x128xi32> to vector<512x128xi32>
    %771 = arith.cmpi eq, %14, %770 : vector<512x128xi32>
    %cst_173 = arith.constant 0.000000e+00 : f32
    %772 = vector.shape_cast %749 : vector<1x128xf32> to vector<1x128xf32>
    %773 = vector.broadcast %772 : vector<1x128xf32> to vector<512x128xf32>
    %774 = vector.broadcast %cst_173 : f32 to vector<512x128xf32>
    %775 = arith.select %771, %773, %774 : vector<512x128xi1>, vector<512x128xf32>
    %776 = arith.addf %769, %775 : vector<512x128xf32>
    %c2_174 = arith.constant 2 : index
    %c0_175 = arith.constant 0 : index
    %c0_176 = arith.constant 0 : index
    %777 = vector.load %arg4[%c2_174, %c0_175, %c0_176] : memref<3x80x512xf32, #tpu.memory_space<vmem>>, vector<1x80x512xf32>
    %778 = vector.shape_cast %777 : vector<1x80x512xf32> to vector<80x512xf32>
    %cst_177 = arith.constant dense<0.000000e+00> : vector<80x128xf32>
    %779 = tpu.matmul %778, %776, %cst_177 {dimension_numbers = #tpu.dot_dimension_numbers<[1], [0], [0], [1], [0, 0, 1, 1], [], []>} : vector<80x512xf32>, vector<512x128xf32>, vector<80x128xf32> -> vector<80x128xf32>
    %780 = arith.addf %525, %779 : vector<80x128xf32>
    %781 = arith.addf %526, %657 : vector<1x128xf32>
    %cst_178 = arith.constant 1.000000e+00 : f32
    %782 = vector.broadcast %cst_178 : f32 to vector<1x128xf32>
    %783 = arith.maximumf %781, %782 : vector<1x128xf32>
    %cst_179 = arith.constant 1.000000e+00 : f32
    %784 = vector.broadcast %cst_179 : f32 to vector<1x128xf32>
    %785 = arith.divf %784, %783 : vector<1x128xf32>
    %786 = vector.broadcast %785 : vector<1x128xf32> to vector<80x128xf32>
    %787 = arith.mulf %780, %786 : vector<80x128xf32>
    %cst_180 = arith.constant dense<0.000000e+00> : vector<128xf32>
    %788 = vector.multi_reduction <add>, %787, %cst_180 [0] : vector<80x128xf32> to vector<128xf32>
    %789 = vector.shape_cast %788 : vector<128xf32> to vector<1x128xf32>
    %cst_181 = arith.constant 1.250000e-02 : f32
    %790 = vector.broadcast %cst_181 : f32 to vector<1x128xf32>
    %791 = arith.mulf %789, %790 : vector<1x128xf32>
    %792 = vector.broadcast %791 : vector<1x128xf32> to vector<80x128xf32>
    %793 = arith.subf %787, %792 : vector<80x128xf32>
    %794 = arith.mulf %793, %793 : vector<80x128xf32>
    %cst_182 = arith.constant dense<0.000000e+00> : vector<128xf32>
    %795 = vector.multi_reduction <add>, %794, %cst_182 [0] : vector<80x128xf32> to vector<128xf32>
    %796 = vector.shape_cast %795 : vector<128xf32> to vector<1x128xf32>
    %cst_183 = arith.constant 1.250000e-02 : f32
    %797 = vector.broadcast %cst_183 : f32 to vector<1x128xf32>
    %798 = arith.mulf %796, %797 : vector<1x128xf32>
    %cst_184 = arith.constant 9.99999974E-6 : f32
    %799 = vector.broadcast %cst_184 : f32 to vector<1x128xf32>
    %800 = arith.addf %798, %799 : vector<1x128xf32>
    %801 = math.rsqrt %800 : vector<1x128xf32>
    %802 = vector.broadcast %801 : vector<1x128xf32> to vector<80x128xf32>
    %803 = arith.mulf %793, %802 : vector<80x128xf32>
    %c0_185 = arith.constant 0 : index
    %c0_186 = arith.constant 0 : index
    %804 = vector.load %arg5[%c0_185, %c0_186] : memref<80x1xf32, #tpu.memory_space<vmem>>, vector<80x1xf32>
    %805 = vector.broadcast %804 : vector<80x1xf32> to vector<80x128xf32>
    %806 = arith.mulf %803, %805 : vector<80x128xf32>
    %c0_187 = arith.constant 0 : index
    %c0_188 = arith.constant 0 : index
    %807 = vector.load %arg6[%c0_187, %c0_188] : memref<80x1xf32, #tpu.memory_space<vmem>>, vector<80x1xf32>
    %808 = vector.broadcast %807 : vector<80x1xf32> to vector<80x128xf32>
    %809 = arith.addf %806, %808 : vector<80x128xf32>
    %c0_189 = arith.constant 0 : index
    %c0_190 = arith.constant 0 : index
    %810 = vector.load %arg7[%c0_189, %c0_190] : memref<4x80xf32, #tpu.memory_space<vmem>>, vector<4x80xf32>
    %cst_191 = arith.constant dense<0.000000e+00> : vector<4x128xf32>
    %811 = tpu.matmul %810, %809, %cst_191 {dimension_numbers = #tpu.dot_dimension_numbers<[1], [0], [0], [1], [0, 0, 1, 1], [], []>} : vector<4x80xf32>, vector<80x128xf32>, vector<4x128xf32> -> vector<4x128xf32>
    %c0_192 = arith.constant 0 : index
    %c0_193 = arith.constant 0 : index
    %812 = vector.load %arg8[%c0_192, %c0_193] : memref<4x1xf32, #tpu.memory_space<vmem>>, vector<4x1xf32>
    %813 = vector.broadcast %812 : vector<4x1xf32> to vector<4x128xf32>
    %814 = arith.addf %811, %813 : vector<4x128xf32>
    %c0_194 = arith.constant 0 : index
    %c0_195 = arith.constant 0 : index
    %815 = vector.load %arg10[%c0_194, %c0_195] : memref<4x128xf32, #tpu.memory_space<vmem>>, vector<4x128xf32>
    tpu.vector_store %arg10[%c0_194, %c0_195], %814 {strides = array<i32>} : memref<4x128xf32, #tpu.memory_space<vmem>>, vector<4x128xf32>,
    return
  }
  func.func @transform_0(%arg0: i32) -> (i32, i32) {
    %c0_i32 = arith.constant 0 : i32
    %c0_i32_0 = arith.constant 0 : i32
    return %c0_i32, %arg0 : i32, i32
  }
  func.func @transform_1(%arg0: i32) -> (i32, i32) {
    %c0_i32 = arith.constant 0 : i32
    %c0_i32_0 = arith.constant 0 : i32
    return %c0_i32, %arg0 : i32, i32
  }
  func.func @transform_2(%arg0: i32) -> i32 {
    %c0_i32 = arith.constant 0 : i32
    %c0_i32_0 = arith.constant 0 : i32
    return %c0_i32 : i32
  }
  func.func @transform_3(%arg0: i32) -> (i32, i32, i32) {
    %c0_i32 = arith.constant 0 : i32
    %c0_i32_0 = arith.constant 0 : i32
    %c0_i32_1 = arith.constant 0 : i32
    %c0_i32_2 = arith.constant 0 : i32
    return %c0_i32, %c0_i32_0, %c0_i32_1 : i32, i32, i32
  }
  func.func @transform_4(%arg0: i32) -> (i32, i32) {
    %c0_i32 = arith.constant 0 : i32
    %c0_i32_0 = arith.constant 0 : i32
    %c0_i32_1 = arith.constant 0 : i32
    return %c0_i32, %c0_i32_0 : i32, i32
  }
  func.func @transform_5(%arg0: i32) -> (i32, i32) {
    %c0_i32 = arith.constant 0 : i32
    %c0_i32_0 = arith.constant 0 : i32
    %c0_i32_1 = arith.constant 0 : i32
    return %c0_i32, %c0_i32_0 : i32, i32
  }
  func.func @transform_6(%arg0: i32) -> (i32, i32) {
    %c0_i32 = arith.constant 0 : i32
    %c0_i32_0 = arith.constant 0 : i32
    %c0_i32_1 = arith.constant 0 : i32
    return %c0_i32, %c0_i32_0 : i32, i32
  }
  func.func @transform_7(%arg0: i32) -> (i32, i32) {
    %c0_i32 = arith.constant 0 : i32
    %c0_i32_0 = arith.constant 0 : i32
    %c0_i32_1 = arith.constant 0 : i32
    return %c0_i32, %c0_i32_0 : i32, i32
  }
  func.func @transform_8(%arg0: i32) -> (i32, i32) {
    %c0_i32 = arith.constant 0 : i32
    %c0_i32_0 = arith.constant 0 : i32
    return %c0_i32, %arg0 : i32, i32
  }
  func.func @transform_9(%arg0: i32) -> (i32, i32) {
    %c0_i32 = arith.constant 0 : i32
    %c0_i32_0 = arith.constant 0 : i32
    return %c0_i32, %arg0 : i32, i32
  }
}

</mosaic_0001>

<llo_original>
// kernel: tpu_custom_call.1
$region0: #{tpu_custom_call.1}
  #allocation0 [shape = 'u32[]', space=smem, size = 0x4, offset = 0x4, fixed_abs, tag = 'smem constant byte address 0x4 - core index']
  #allocation1 [shape = 'u32[144,128]{1,0:T(1,128)}', space=vmem, size = 0x12000, scoped, tag = 'internal scratch']
  %s0 = inlined_call_operand.vmem [shape: f32[3,128], index: 0, kind: input, shape index: {}]
  %s1 = inlined_call_operand.vmem [shape: s32[1,128], index: 1, kind: input, shape index: {}]
  %s2 = inlined_call_operand.vmem [shape: f32[72], index: 2, kind: input, shape index: {}]
  %s3 = inlined_call_operand.hbm [shape: f32[3,80,512], index: 3, kind: input, shape index: {}]
  %s4 = inlined_call_operand.vmem [shape: f32[80,1], index: 4, kind: input, shape index: {}]
  %s5 = inlined_call_operand.vmem [shape: f32[80,1], index: 5, kind: input, shape index: {}]
  %s6 = inlined_call_operand.vmem [shape: f32[4,80], index: 6, kind: input, shape index: {}]
  %s7 = inlined_call_operand.vmem [shape: f32[4,1], index: 7, kind: input, shape index: {}]
  %s8 = inlined_call_operand.hbm [shape: f32[12,128], index: 8, kind: output, shape index: {0}]
  %s9 = inlined_call_operand.hbm [shape: f32[4,128], index: 9, kind: output, shape index: {1}]
  %10 = xla_tuple %s8, %s9
  %s11 = sld [smem:[#allocation0]]
  $region58: #{tpu_custom_call.1} parent=0
    _
  %s13 = ssub.s32 1, %s11
  %s14 = scalar_select 0, %s13, %s11
  $region1: #{tpu_custom_call.1} parent=0
    #allocation2 [shape = 'u8[512]{0}', space=smem, size = 0x200, scoped, tag = 'input window, operand 2, single buffered']
    #allocation3 [shape = 's32[1]{0}', space=sflag, size = 0x4, scoped, tag = 'scoped memory for tpu_custom_call.1']
    #allocation4 [shape = 's32[1]{0}', space=sflag, size = 0x4, scoped, tag = 'scoped memory for tpu_custom_call.1']
    #allocation5 [shape = 's32[1]{0}', space=sflag, size = 0x4, scoped, tag = 'scoped memory for tpu_custom_call.1']
    #allocation6 [shape = 'u8[491520]{0}', space=vmem, size = 0x78000, scoped, tag = 'input window, operand 3, single buffered']
    #allocation7 [shape = 'u8[8192]{0}', space=vmem, size = 0x2000, scoped, tag = 'output window, operand 0, single buffered']
    #allocation8 [shape = 'u8[2048]{0}', space=vmem, size = 0x800, scoped, tag = 'output window, operand 1, single buffered']
    #allocation9 [shape = 's32[1]{0}', space=sflag, size = 0x4, scoped, tag = 'scoped memory for tpu_custom_call.1']
    %15 = vsyncpa [#allocation5], 0
    %16 = vsyncpa [#allocation3], 0
    %17 = vsyncpa [#allocation4], 0
    %18 = vsyncpa [#allocation9], 0
    // Predicated region
    $region2: #{tpu_custom_call.1} parent=1 // pred_check
      _
    $region3: #{tpu_custom_call.1} parent=1 // pred_check_branch
      %20 = sbr.rel (0) target = $region5
    $region4: #{tpu_custom_call.1} parent=1 // pred_region
      _
    $region5: #{tpu_custom_call.1} parent=1 // pred_fallthru
      _
    // Predicated region
    $region6: #{tpu_custom_call.1} parent=1 // pred_check
      _
    $region7: #{tpu_custom_call.1} parent=1 // pred_check_branch
      %22 = sbr.rel (0) target = $region9
    $region8: #{tpu_custom_call.1} parent=1 // pred_region
      _
    $region9: #{tpu_custom_call.1} parent=1 // pred_fallthru
      _
    // Predicated region
    $region10: #{tpu_custom_call.1} parent=1 // pred_check
      _
    $region11: #{tpu_custom_call.1} parent=1 // pred_check_branch
      %24 = sbr.rel (0) target = $region13
    $region12: #{tpu_custom_call.1} parent=1 // pred_region
      %s26 = ssub.s32 16, 16
      %27 = vsyncadd [#allocation5], %s26
      %s29 = sshll.u32 %s2, 4
      %s30 = int_to_ptr.vmem [resolvable:$true] %s29
      %32 = dma.vmem_to_smem %s30, 16, [#allocation2], [#allocation5]
    $region13: #{tpu_custom_call.1} parent=1 // pred_fallthru
      _
    // Predicated region
    $region14: #{tpu_custom_call.1} parent=1 // pred_check
      _
    $region15: #{tpu_custom_call.1} parent=1 // pred_check_branch
      %34 = sbr.rel (0) target = $region17
    $region16: #{tpu_custom_call.1} parent=1 // pred_region
      %s36 = ssub.s32 15360, 15360
      %37 = vsyncadd [#allocation3], %s36
      %s38 = sshll.u32 [#allocation6], 4
      %s39 = int_to_ptr.vmem [resolvable:$true] %s38
      %44 = dma.hbm_to_vmem [thread:$0]  %s3, 15360, %s39, [#allocation3], 512, 512, 32
    $region17: #{tpu_custom_call.1} parent=1 // pred_fallthru
      _
    // Predicated region
    $region18: #{tpu_custom_call.1} parent=1 // pred_check
      _
    $region19: #{tpu_custom_call.1} parent=1 // pred_check_branch
      %46 = sbr.rel (0) target = $region21
    $region20: #{tpu_custom_call.1} parent=1 // pred_region
      _
    $region21: #{tpu_custom_call.1} parent=1 // pred_fallthru
      _
    // Predicated region
    $region22: #{tpu_custom_call.1} parent=1 // pred_check
      _
    $region23: #{tpu_custom_call.1} parent=1 // pred_check_branch
      %48 = sbr.rel (0) target = $region25
    $region24: #{tpu_custom_call.1} parent=1 // pred_region
      _
    $region25: #{tpu_custom_call.1} parent=1 // pred_fallthru
      _
    // Predicated region
    $region26: #{tpu_custom_call.1} parent=1 // pred_check
      _
    $region27: #{tpu_custom_call.1} parent=1 // pred_check_branch
      %50 = sbr.rel (0) target = $region29
    $region28: #{tpu_custom_call.1} parent=1 // pred_region
      _
    $region29: #{tpu_custom_call.1} parent=1 // pred_fallthru
      _
    // Predicated region
    $region30: #{tpu_custom_call.1} parent=1 // pred_check
      _
    $region31: #{tpu_custom_call.1} parent=1 // pred_check_branch
      %52 = sbr.rel (0) target = $region33
    $region32: #{tpu_custom_call.1} parent=1 // pred_region
      _
    $region33: #{tpu_custom_call.1} parent=1 // pred_fallthru
      _
    // Predicated region
    $region34: #{tpu_custom_call.1} parent=1 // pred_check
      _
    $region35: #{tpu_custom_call.1} parent=1 // pred_check_branch
      %54 = sbr.rel (0) target = $region37
    $region36: #{tpu_custom_call.1} parent=1 // pred_region
      %55 = dma.done [#allocation5], 16
    $region37: #{tpu_custom_call.1} parent=1 // pred_fallthru
      _
    // Predicated region
    $region38: #{tpu_custom_call.1} parent=1 // pred_check
      _
    $region39: #{tpu_custom_call.1} parent=1 // pred_check_branch
      %57 = sbr.rel (0) target = $region41
    $region40: #{tpu_custom_call.1} parent=1 // pred_region
      %58 = dma.done [#allocation3], 15360
    $region41: #{tpu_custom_call.1} parent=1 // pred_fallthru
      _
    %59 = sfence
    %v60 = vld [vmem:[%s0] sm:$0x1]
    %v61 = vld [vmem:[%s0 + $0x1] sm:$0x1]
    %v62 = vld [vmem:[%s0 + $0x2] sm:$0x1]
    %v63 = vld [vmem:[%s1] sm:$0x1]
    %vm64 = vcmp.eq.s32.totalorder %v63, 0
    %v65 = vsel %vm64, 1, 0
    %v66 = vcvt.s32.f32 %v65
    %vm67 = vcmp.eq.s32.totalorder %v63, 1
    %v68 = vsel %vm67, 1, 0
    %v69 = vcvt.s32.f32 %v68
    %v70 = vmul.u32 %v63, 256
    %v71 = vlaneseq
    %v72 = vshrl.u32 %v71, 7
    %v73 = vadd.s32 %v72, 8
    %v74 = vadd.s32 %v72, 16
    %v75 = vadd.s32 %v72, 24
    %v76 = vadd.s32 %v72, 32
    %v77 = vadd.s32 %v72, 40
    %v78 = vadd.s32 %v72, 48
    %v79 = vadd.s32 %v72, 56
    %v80 = vadd.s32 %v72, 64
    %v81 = vadd.s32 %v72, 72
    %v82 = vadd.s32 %v72, 80
    %v83 = vadd.s32 %v72, 88
    %v84 = vadd.s32 %v72, 96
    %v85 = vadd.s32 %v72, 104
    %v86 = vadd.s32 %v72, 112
    %v87 = vadd.s32 %v72, 120
    %v88 = vadd.s32 %v72, 128
    %v89 = vadd.s32 %v72, 136
    %v90 = vadd.s32 %v72, 144
    %v91 = vadd.s32 %v72, 152
    %v92 = vadd.s32 %v72, 160
    %v93 = vadd.s32 %v72, 168
    %v94 = vadd.s32 %v72, 176
    %v95 = vadd.s32 %v72, 184
    %v96 = vadd.s32 %v72, 192
    %v97 = vadd.s32 %v72, 200
    %v98 = vadd.s32 %v72, 208
    %v99 = vadd.s32 %v72, 216
    %v100 = vadd.s32 %v72, 224
    %v101 = vadd.s32 %v72, 232
    %v102 = vadd.s32 %v72, 240
    %v103 = vadd.s32 %v72, 248
    %v104 = vadd.s32 %v72, 256
    %v105 = vadd.s32 %v72, 264
    %v106 = vadd.s32 %v72, 272
    %v107 = vadd.s32 %v72, 280
    %v108 = vadd.s32 %v72, 288
    %v109 = vadd.s32 %v72, 296
    %v110 = vadd.s32 %v72, 304
    %v111 = vadd.s32 %v72, 312
    %v112 = vadd.s32 %v72, 320
    %v113 = vadd.s32 %v72, 328
    %v114 = vadd.s32 %v72, 336
    %v115 = vadd.s32 %v72, 344
    %v116 = vadd.s32 %v72, 352
    %v117 = vadd.s32 %v72, 360
    %v118 = vadd.s32 %v72, 368
    %v119 = vadd.s32 %v72, 376
    %v120 = vadd.s32 %v72, 384
    %v121 = vadd.s32 %v72, 392
    %v122 = vadd.s32 %v72, 400
    %v123 = vadd.s32 %v72, 408
    %v124 = vadd.s32 %v72, 416
    %v125 = vadd.s32 %v72, 424
    %v126 = vadd.s32 %v72, 432
    %v127 = vadd.s32 %v72, 440
    %v128 = vadd.s32 %v72, 448
    %v129 = vadd.s32 %v72, 456
    %v130 = vadd.s32 %v72, 464
    %v131 = vadd.s32 %v72, 472
    %v132 = vadd.s32 %v72, 480
    %v133 = vadd.s32 %v72, 488
    %v134 = vadd.s32 %v72, 496
    %v135 = vadd.s32 %v72, 504
    %s136 = sld [smem:[#allocation2]]
    %v137 = vstv %s136
    %v138 = vmul.f32 %v137, %v60
    %s139 = sld [smem:[#allocation2 + $0x1]]
    %v140 = vstv %s139
    %v141 = vmul.f32 %v140, %v61
    %v142 = vadd.f32 %v138, %v141
    %s143 = sld [smem:[#allocation2 + $0x2]]
    %v144 = vstv %s143
    %v145 = vmul.f32 %v144, %v62
    %v146 = vadd.f32 %v142, %v145
    %s147 = sld [smem:[#allocation2 + $0x3]]
    %v148 = vstv %s147
    %v149 = vadd.f32 %v146, %v148
    %v150 = vmul.f32 %v66, %v149
    %v151 = vadd.f32 %v150, 0.0
    %s152 = sld [smem:[#allocation2 + $0x24]]
    %v153 = vstv %s152
    %v154 = vmul.f32 %v153, %v60
    %s155 = sld [smem:[#allocation2 + $0x25]]
    %v156 = vstv %s155
    %v157 = vmul.f32 %v156, %v61
    %v158 = vadd.f32 %v154, %v157
    %s159 = sld [smem:[#allocation2 + $0x26]]
    %v160 = vstv %s159
    %v161 = vmul.f32 %v160, %v62
    %v162 = vadd.f32 %v158, %v161
    %s163 = sld [smem:[#allocation2 + $0x27]]
    %v164 = vstv %s163
    %v165 = vadd.f32 %v162, %v164
    %v166 = vmul.f32 %v69, %v165
    %v167 = vadd.f32 %v151, %v166
    %s168 = sld [smem:[#allocation2 + $0xc]]
    %v169 = vstv %s168
    %v170 = vmul.f32 %v169, %v60
    %s171 = sld [smem:[#allocation2 + $0xd]]
    %v172 = vstv %s171
    %v173 = vmul.f32 %v172, %v61
    %v174 = vadd.f32 %v170, %v173
    %s175 = sld [smem:[#allocation2 + $0xe]]
    %v176 = vstv %s175
    %v177 = vmul.f32 %v176, %v62
    %v178 = vadd.f32 %v174, %v177
    %s179 = sld [smem:[#allocation2 + $0xf]]
    %v180 = vstv %s179
    %v181 = vadd.f32 %v178, %v180
    %v182 = vmul.f32 %v66, %v181
    %v183 = vadd.f32 %v182, 0.0
    %s184 = sld [smem:[#allocation2 + $0x30]]
    %v185 = vstv %s184
    %v186 = vmul.f32 %v185, %v60
    %s187 = sld [smem:[#allocation2 + $0x31]]
    %v188 = vstv %s187
    %v189 = vmul.f32 %v188, %v61
    %v190 = vadd.f32 %v186, %v189
    %s191 = sld [smem:[#allocation2 + $0x32]]
    %v192 = vstv %s191
    %v193 = vmul.f32 %v192, %v62
    %v194 = vadd.f32 %v190, %v193
    %s195 = sld [smem:[#allocation2 + $0x33]]
    %v196 = vstv %s195
    %v197 = vadd.f32 %v194, %v196
    %v198 = vmul.f32 %v69, %v197
    %v199 = vadd.f32 %v183, %v198
    %s200 = sld [smem:[#allocation2 + $0x18]]
    %v201 = vstv %s200
    %v202 = vmul.f32 %v201, %v60
    %s203 = sld [smem:[#allocation2 + $0x19]]
    %v204 = vstv %s203
    %v205 = vmul.f32 %v204, %v61
    %v206 = vadd.f32 %v202, %v205
    %s207 = sld [smem:[#allocation2 + $0x1a]]
    %v208 = vstv %s207
    %v209 = vmul.f32 %v208, %v62
    %v210 = vadd.f32 %v206, %v209
    %s211 = sld [smem:[#allocation2 + $0x1b]]
    %v212 = vstv %s211
    %v213 = vadd.f32 %v210, %v212
    %v214 = vmul.f32 %v66, %v213
    %v215 = vadd.f32 %v214, 0.0
    %s216 = sld [smem:[#allocation2 + $0x3c]]
    %v217 = vstv %s216
    %v218 = vmul.f32 %v217, %v60
    %s219 = sld [smem:[#allocation2 + $0x3d]]
    %v220 = vstv %s219
    %v221 = vmul.f32 %v220, %v61
    %v222 = vadd.f32 %v218, %v221
    %s223 = sld [smem:[#allocation2 + $0x3e]]
    %v224 = vstv %s223
    %v225 = vmul.f32 %v224, %v62
    %v226 = vadd.f32 %v222, %v225
    %s227 = sld [smem:[#allocation2 + $0x3f]]
    %v228 = vstv %s227
    %v229 = vadd.f32 %v226, %v228
    %v230 = vmul.f32 %v69, %v229
    %v231 = vadd.f32 %v215, %v230
    %vm232 = vcmp.ne.f32.partialorder %v231, 0.0
    %v233 = vrcp.pop %v231
    %v234 = vmul.f32 %v167, %v233
    %v235 = vsel %vm232, %v234, 0.0
    %v236 = vmul.f32 %v199, %v233
    %v237 = vsel %vm232, %v236, 0.0
    %v238 = vmul.f32 %v235, 0.13333334
    %v239 = vsub.f32 %v238, 1.0
    %v240 = vsel %vm232, %v239, -2.0
    %v241 = vmul.f32 %v237, 0.13333334
    %v242 = vsub.f32 %v241, 1.0
    %v243 = vsel %vm232, %v242, -2.0
    %v244 = vand.u32 2147483647, %v240
    %vm245 = vcmp.le.f32.partialorder %v244, 1.0
    %v246 = vand.u32 2147483647, %v243
    %vm247 = vcmp.le.f32.partialorder %v246, 1.0
    %vm248 = vmand %vm245, %vm247
    %vm249 = vcmp.gt.f32.partialorder %v231, 0.0
    %vm250 = vmand %vm248, %vm249
    %v251 = vsel %vm250, 1, 0
    %v252 = vcvt.s32.f32 %v251
    %253 = vst [vmem:[#allocation7] sm:$0x1] %v240
    %254 = vst [vmem:[#allocation7 + $0x3] sm:$0x1] %v243
    %255 = vst [vmem:[#allocation7 + $0x6] sm:$0x1] %v231
    %256 = vst [vmem:[#allocation7 + $0x9] sm:$0x1] %v252
    %v257 = vsel %vm250, %v235, 0.0
    %v258 = vand.u32 2147483647, %v257
    %v259 = vmul.f32 %v258, 0.033333335
    %v260 = vfloor.f32 %v259
    %v261 = vmul.f32 %v260, 30.0
    %v262 = vsub.f32 %v258, %v261
    %vm263 = vcmp.gt.f32.partialorder %v262, 15.0
    %v264 = vsub.f32 30.0, %v262
    %v265 = vsel %vm263, %v264, %v262
    %v266 = vsel %vm250, %v237, 0.0
    %v267 = vand.u32 2147483647, %v266
    %v268 = vmul.f32 %v267, 0.033333335
    %v269 = vfloor.f32 %v268
    %v270 = vmul.f32 %v269, 30.0
    %v271 = vsub.f32 %v267, %v270
    %vm272 = vcmp.gt.f32.partialorder %v271, 15.0
    %v273 = vsub.f32 30.0, %v271
    %v274 = vsel %vm272, %v273, %v271
    %v275 = vfloor.f32 %v265
    %v276 = vfloor.f32 %v274
    %v277 = vsub.f32 %v265, %v275
    %v278 = vsub.f32 %v274, %v276
    %v279 = vsub.f32 1.0, %v277
    %v280 = vsub.f32 1.0, %v278
    %v281 = vmax.f32 %v275, 0.0
    %v282 = vmin.f32 %v281, 15.0
    %v283 = vcvt.f32.s32.to.zero.pseudo %v282
    %v284 = vadd.f32 %v275, 1.0
    %v285 = vmax.f32 %v284, 0.0
    %v286 = vmin.f32 %v285, 15.0
    %v287 = vcvt.f32.s32.to.zero.pseudo %v286
    %v288 = vmax.f32 %v276, 0.0
    %v289 = vmin.f32 %v288, 15.0
    %v290 = vcvt.f32.s32.to.zero.pseudo %v289
    %v291 = vadd.f32 %v276, 1.0
    %v292 = vmax.f32 %v291, 0.0
    %v293 = vmin.f32 %v292, 15.0
    %v294 = vcvt.f32.s32.to.zero.pseudo %v293
    %v295 = vmul.u32 %v290, 16
    %v296 = vadd.s32 %v70, %v295
    %v297 = vadd.s32 %v296, %v283
    %v298 = vadd.s32 %v296, %v287
    %v299 = vmul.u32 %v294, 16
    %v300 = vadd.s32 %v70, %v299
    %v301 = vadd.s32 %v300, %v283
    %v302 = vadd.s32 %v300, %v287
    %v303 = vmul.f32 %v280, %v279
    %v304 = vmul.f32 %v303, %v252
    %v305 = vmul.f32 %v280, %v277
    %v306 = vmul.f32 %v305, %v252
    %v307 = vmul.f32 %v278, %v279
    %v308 = vmul.f32 %v307, %v252
    %v309 = vmul.f32 %v278, %v277
    %v310 = vmul.f32 %v309, %v252
    %v311 = vlaneseq
    %v312 = vshrl.u32 %v311, 7
    %v313 = vsub.s32 0, %v312
    %v314 = vrot.slane %v297, %v313
    %vm315 = vcmp.eq.s32.totalorder %v72, %v314
    %vm316 = vcmp.eq.s32.totalorder %v73, %v314
    %vm317 = vcmp.eq.s32.totalorder %v74, %v314
    %vm318 = vcmp.eq.s32.totalorder %v75, %v314
    %vm319 = vcmp.eq.s32.totalorder %v76, %v314
    %vm320 = vcmp.eq.s32.totalorder %v77, %v314
    %vm321 = vcmp.eq.s32.totalorder %v78, %v314
    %vm322 = vcmp.eq.s32.totalorder %v79, %v314
    %vm323 = vcmp.eq.s32.totalorder %v80, %v314
    %vm324 = vcmp.eq.s32.totalorder %v81, %v314
    %vm325 = vcmp.eq.s32.totalorder %v82, %v314
    %vm326 = vcmp.eq.s32.totalorder %v83, %v314
    %vm327 = vcmp.eq.s32.totalorder %v84, %v314
    %vm328 = vcmp.eq.s32.totalorder %v85, %v314
    %vm329 = vcmp.eq.s32.totalorder %v86, %v314
    %vm330 = vcmp.eq.s32.totalorder %v87, %v314
    %vm331 = vcmp.eq.s32.totalorder %v88, %v314
    %vm332 = vcmp.eq.s32.totalorder %v89, %v314
    %vm333 = vcmp.eq.s32.totalorder %v90, %v314
    %vm334 = vcmp.eq.s32.totalorder %v91, %v314
    %vm335 = vcmp.eq.s32.totalorder %v92, %v314
    %vm336 = vcmp.eq.s32.totalorder %v93, %v314
    %vm337 = vcmp.eq.s32.totalorder %v94, %v314
    %vm338 = vcmp.eq.s32.totalorder %v95, %v314
    %vm339 = vcmp.eq.s32.totalorder %v96, %v314
    %vm340 = vcmp.eq.s32.totalorder %v97, %v314
    %vm341 = vcmp.eq.s32.totalorder %v98, %v314
    %vm342 = vcmp.eq.s32.totalorder %v99, %v314
    %vm343 = vcmp.eq.s32.totalorder %v100, %v314
    %vm344 = vcmp.eq.s32.totalorder %v101, %v314
    %vm345 = vcmp.eq.s32.totalorder %v102, %v314
    %vm346 = vcmp.eq.s32.totalorder %v103, %v314
    %vm347 = vcmp.eq.s32.totalorder %v104, %v314
    %vm348 = vcmp.eq.s32.totalorder %v105, %v314
    %vm349 = vcmp.eq.s32.totalorder %v106, %v314
    %vm350 = vcmp.eq.s32.totalorder %v107, %v314
    %vm351 = vcmp.eq.s32.totalorder %v108, %v314
    %vm352 = vcmp.eq.s32.totalorder %v109, %v314
    %vm353 = vcmp.eq.s32.totalorder %v110, %v314
    %vm354 = vcmp.eq.s32.totalorder %v111, %v314
    %vm355 = vcmp.eq.s32.totalorder %v112, %v314
    %vm356 = vcmp.eq.s32.totalorder %v113, %v314
    %vm357 = vcmp.eq.s32.totalorder %v114, %v314
    %vm358 = vcmp.eq.s32.totalorder %v115, %v314
    %vm359 = vcmp.eq.s32.totalorder %v116, %v314
    %vm360 = vcmp.eq.s32.totalorder %v117, %v314
    %vm361 = vcmp.eq.s32.totalorder %v118, %v314
    %vm362 = vcmp.eq.s32.totalorder %v119, %v314
    %vm363 = vcmp.eq.s32.totalorder %v120, %v314
    %vm364 = vcmp.eq.s32.totalorder %v121, %v314
    %vm365 = vcmp.eq.s32.totalorder %v122, %v314
    %vm366 = vcmp.eq.s32.totalorder %v123, %v314
    %vm367 = vcmp.eq.s32.totalorder %v124, %v314
    %vm368 = vcmp.eq.s32.totalorder %v125, %v314
    %vm369 = vcmp.eq.s32.totalorder %v126, %v314
    %vm370 = vcmp.eq.s32.totalorder %v127, %v314
    %vm371 = vcmp.eq.s32.totalorder %v128, %v314
    %vm372 = vcmp.eq.s32.totalorder %v129, %v314
    %vm373 = vcmp.eq.s32.totalorder %v130, %v314
    %vm374 = vcmp.eq.s32.totalorder %v131, %v314
    %vm375 = vcmp.eq.s32.totalorder %v132, %v314
    %vm376 = vcmp.eq.s32.totalorder %v133, %v314
    %vm377 = vcmp.eq.s32.totalorder %v134, %v314
    %vm378 = vcmp.eq.s32.totalorder %v135, %v314
    %v380 = vlaneseq
    %v381 = vshrl.u32 %v380, 7
    %v382 = vsub.s32 0, %v381
    %v383 = vrot.slane %v304, %v382
    %v385 = vsel %vm315, %v383, 0.0
    %v386 = vsel %vm316, %v383, 0.0
    %v387 = vsel %vm317, %v383, 0.0
    %v388 = vsel %vm318, %v383, 0.0
    %v389 = vsel %vm319, %v383, 0.0
    %v390 = vsel %vm320, %v383, 0.0
    %v391 = vsel %vm321, %v383, 0.0
    %v392 = vsel %vm322, %v383, 0.0
    %v393 = vsel %vm323, %v383, 0.0
    %v394 = vsel %vm324, %v383, 0.0
    %v395 = vsel %vm325, %v383, 0.0
    %v396 = vsel %vm326, %v383, 0.0
    %v397 = vsel %vm327, %v383, 0.0
    %v398 = vsel %vm328, %v383, 0.0
    %v399 = vsel %vm329, %v383, 0.0
    %v400 = vsel %vm330, %v383, 0.0
    %v401 = vsel %vm331, %v383, 0.0
    %v402 = vsel %vm332, %v383, 0.0
    %v403 = vsel %vm333, %v383, 0.0
    %v404 = vsel %vm334, %v383, 0.0
    %v405 = vsel %vm335, %v383, 0.0
    %v406 = vsel %vm336, %v383, 0.0
    %v407 = vsel %vm337, %v383, 0.0
    %v408 = vsel %vm338, %v383, 0.0
    %v409 = vsel %vm339, %v383, 0.0
    %v410 = vsel %vm340, %v383, 0.0
    %v411 = vsel %vm341, %v383, 0.0
    %v412 = vsel %vm342, %v383, 0.0
    %v413 = vsel %vm343, %v383, 0.0
    %v414 = vsel %vm344, %v383, 0.0
    %v415 = vsel %vm345, %v383, 0.0
    %v416 = vsel %vm346, %v383, 0.0
    %v417 = vsel %vm347, %v383, 0.0
    %v418 = vsel %vm348, %v383, 0.0
    %v419 = vsel %vm349, %v383, 0.0
    %v420 = vsel %vm350, %v383, 0.0
    %v421 = vsel %vm351, %v383, 0.0
    %v422 = vsel %vm352, %v383, 0.0
    %v423 = vsel %vm353, %v383, 0.0
    %v424 = vsel %vm354, %v383, 0.0
    %v425 = vsel %vm355, %v383, 0.0
    %v426 = vsel %vm356, %v383, 0.0
    %v427 = vsel %vm357, %v383, 0.0
    %v428 = vsel %vm358, %v383, 0.0
    %v429 = vsel %vm359, %v383, 0.0
    %v430 = vsel %vm360, %v383, 0.0
    %v431 = vsel %vm361, %v383, 0.0
    %v432 = vsel %vm362, %v383, 0.0
    %v433 = vsel %vm363, %v383, 0.0
    %v434 = vsel %vm364, %v383, 0.0
    %v435 = vsel %vm365, %v383, 0.0
    %v436 = vsel %vm366, %v383, 0.0
    %v437 = vsel %vm367, %v383, 0.0
    %v438 = vsel %vm368, %v383, 0.0
    %v439 = vsel %vm369, %v383, 0.0
    %v440 = vsel %vm370, %v383, 0.0
    %v441 = vsel %vm371, %v383, 0.0
    %v442 = vsel %vm372, %v383, 0.0
    %v443 = vsel %vm373, %v383, 0.0
    %v444 = vsel %vm374, %v383, 0.0
    %v445 = vsel %vm375, %v383, 0.0
    %v446 = vsel %vm376, %v383, 0.0
    %v447 = vsel %vm377, %v383, 0.0
    %v448 = vsel %vm378, %v383, 0.0
    %v449 = vlaneseq
    %v450 = vshrl.u32 %v449, 7
    %v451 = vsub.s32 0, %v450
    %v452 = vrot.slane %v298, %v451
    %vm453 = vcmp.eq.s32.totalorder %v72, %v452
    %vm454 = vcmp.eq.s32.totalorder %v73, %v452
    %vm455 = vcmp.eq.s32.totalorder %v74, %v452
    %vm456 = vcmp.eq.s32.totalorder %v75, %v452
    %vm457 = vcmp.eq.s32.totalorder %v76, %v452
    %vm458 = vcmp.eq.s32.totalorder %v77, %v452
    %vm459 = vcmp.eq.s32.totalorder %v78, %v452
    %vm460 = vcmp.eq.s32.totalorder %v79, %v452
    %vm461 = vcmp.eq.s32.totalorder %v80, %v452
    %vm462 = vcmp.eq.s32.totalorder %v81, %v452
    %vm463 = vcmp.eq.s32.totalorder %v82, %v452
    %vm464 = vcmp.eq.s32.totalorder %v83, %v452
    %vm465 = vcmp.eq.s32.totalorder %v84, %v452
    %vm466 = vcmp.eq.s32.totalorder %v85, %v452
    %vm467 = vcmp.eq.s32.totalorder %v86, %v452
    %vm468 = vcmp.eq.s32.totalorder %v87, %v452
    %vm469 = vcmp.eq.s32.totalorder %v88, %v452
    %vm470 = vcmp.eq.s32.totalorder %v89, %v452
    %vm471 = vcmp.eq.s32.totalorder %v90, %v452
    %vm472 = vcmp.eq.s32.totalorder %v91, %v452
    %vm473 = vcmp.eq.s32.totalorder %v92, %v452
    %vm474 = vcmp.eq.s32.totalorder %v93, %v452
    %vm475 = vcmp.eq.s32.totalorder %v94, %v452
    %vm476 = vcmp.eq.s32.totalorder %v95, %v452
    %vm477 = vcmp.eq.s32.totalorder %v96, %v452
    %vm478 = vcmp.eq.s32.totalorder %v97, %v452
    %vm479 = vcmp.eq.s32.totalorder %v98, %v452
    %vm480 = vcmp.eq.s32.totalorder %v99, %v452
    %vm481 = vcmp.eq.s32.totalorder %v100, %v452
    %vm482 = vcmp.eq.s32.totalorder %v101, %v452
    %vm483 = vcmp.eq.s32.totalorder %v102, %v452
    %vm484 = vcmp.eq.s32.totalorder %v103, %v452
    %vm485 = vcmp.eq.s32.totalorder %v104, %v452
    %vm486 = vcmp.eq.s32.totalorder %v105, %v452
    %vm487 = vcmp.eq.s32.totalorder %v106, %v452
    %vm488 = vcmp.eq.s32.totalorder %v107, %v452
    %vm489 = vcmp.eq.s32.totalorder %v108, %v452
    %vm490 = vcmp.eq.s32.totalorder %v109, %v452
    %vm491 = vcmp.eq.s32.totalorder %v110, %v452
    %vm492 = vcmp.eq.s32.totalorder %v111, %v452
    %vm493 = vcmp.eq.s32.totalorder %v112, %v452
    %vm494 = vcmp.eq.s32.totalorder %v113, %v452
    %vm495 = vcmp.eq.s32.totalorder %v114, %v452
    %vm496 = vcmp.eq.s32.totalorder %v115, %v452
    %vm497 = vcmp.eq.s32.totalorder %v116, %v452
    %vm498 = vcmp.eq.s32.totalorder %v117, %v452
    %vm499 = vcmp.eq.s32.totalorder %v118, %v452
    %vm500 = vcmp.eq.s32.totalorder %v119, %v452
    %vm501 = vcmp.eq.s32.totalorder %v120, %v452
    %vm502 = vcmp.eq.s32.totalorder %v121, %v452
    %vm503 = vcmp.eq.s32.totalorder %v122, %v452
    %vm504 = vcmp.eq.s32.totalorder %v123, %v452
    %vm505 = vcmp.eq.s32.totalorder %v124, %v452
    %vm506 = vcmp.eq.s32.totalorder %v125, %v452
    %vm507 = vcmp.eq.s32.totalorder %v126, %v452
    %vm508 = vcmp.eq.s32.totalorder %v127, %v452
    %vm509 = vcmp.eq.s32.totalorder %v128, %v452
    %vm510 = vcmp.eq.s32.totalorder %v129, %v452
    %vm511 = vcmp.eq.s32.totalorder %v130, %v452
    %vm512 = vcmp.eq.s32.totalorder %v131, %v452
    %vm513 = vcmp.eq.s32.totalorder %v132, %v452
    %vm514 = vcmp.eq.s32.totalorder %v133, %v452
    %vm515 = vcmp.eq.s32.totalorder %v134, %v452
    %vm516 = vcmp.eq.s32.totalorder %v135, %v452
    %v518 = vlaneseq
    %v519 = vshrl.u32 %v518, 7
    %v520 = vsub.s32 0, %v519
    %v521 = vrot.slane %v306, %v520
    %v523 = vsel %vm453, %v521, 0.0
    %v524 = vsel %vm454, %v521, 0.0
    %v525 = vsel %vm455, %v521, 0.0
    %v526 = vsel %vm456, %v521, 0.0
    %v527 = vsel %vm457, %v521, 0.0
    %v528 = vsel %vm458, %v521, 0.0
    %v529 = vsel %vm459, %v521, 0.0
    %v530 = vsel %vm460, %v521, 0.0
    %v531 = vsel %vm461, %v521, 0.0
    %v532 = vsel %vm462, %v521, 0.0
    %v533 = vsel %vm463, %v521, 0.0
    %v534 = vsel %vm464, %v521, 0.0
    %v535 = vsel %vm465, %v521, 0.0
    %v536 = vsel %vm466, %v521, 0.0
    %v537 = vsel %vm467, %v521, 0.0
    %v538 = vsel %vm468, %v521, 0.0
    %v539 = vsel %vm469, %v521, 0.0
    %v540 = vsel %vm470, %v521, 0.0
    %v541 = vsel %vm471, %v521, 0.0
    %v542 = vsel %vm472, %v521, 0.0
    %v543 = vsel %vm473, %v521, 0.0
    %v544 = vsel %vm474, %v521, 0.0
    %v545 = vsel %vm475, %v521, 0.0
    %v546 = vsel %vm476, %v521, 0.0
    %v547 = vsel %vm477, %v521, 0.0
    %v548 = vsel %vm478, %v521, 0.0
    %v549 = vsel %vm479, %v521, 0.0
    %v550 = vsel %vm480, %v521, 0.0
    %v551 = vsel %vm481, %v521, 0.0
    %v552 = vsel %vm482, %v521, 0.0
    %v553 = vsel %vm483, %v521, 0.0
    %v554 = vsel %vm484, %v521, 0.0
    %v555 = vsel %vm485, %v521, 0.0
    %v556 = vsel %vm486, %v521, 0.0
    %v557 = vsel %vm487, %v521, 0.0
    %v558 = vsel %vm488, %v521, 0.0
    %v559 = vsel %vm489, %v521, 0.0
    %v560 = vsel %vm490, %v521, 0.0
    %v561 = vsel %vm491, %v521, 0.0
    %v562 = vsel %vm492, %v521, 0.0
    %v563 = vsel %vm493, %v521, 0.0
    %v564 = vsel %vm494, %v521, 0.0
    %v565 = vsel %vm495, %v521, 0.0
    %v566 = vsel %vm496, %v521, 0.0
    %v567 = vsel %vm497, %v521, 0.0
    %v568 = vsel %vm498, %v521, 0.0
    %v569 = vsel %vm499, %v521, 0.0
    %v570 = vsel %vm500, %v521, 0.0
    %v571 = vsel %vm501, %v521, 0.0
    %v572 = vsel %vm502, %v521, 0.0
    %v573 = vsel %vm503, %v521, 0.0
    %v574 = vsel %vm504, %v521, 0.0
    %v575 = vsel %vm505, %v521, 0.0
    %v576 = vsel %vm506, %v521, 0.0
    %v577 = vsel %vm507, %v521, 0.0
    %v578 = vsel %vm508, %v521, 0.0
    %v579 = vsel %vm509, %v521, 0.0
    %v580 = vsel %vm510, %v521, 0.0
    %v581 = vsel %vm511, %v521, 0.0
    %v582 = vsel %vm512, %v521, 0.0
    %v583 = vsel %vm513, %v521, 0.0
    %v584 = vsel %vm514, %v521, 0.0
    %v585 = vsel %vm515, %v521, 0.0
    %v586 = vsel %vm516, %v521, 0.0
    %v587 = vadd.f32 %v385, %v523
    %v588 = vadd.f32 %v386, %v524
    %v589 = vadd.f32 %v387, %v525
    %v590 = vadd.f32 %v388, %v526
    %v591 = vadd.f32 %v389, %v527
    %v592 = vadd.f32 %v390, %v528
    %v593 = vadd.f32 %v391, %v529
    %v594 = vadd.f32 %v392, %v530
    %v595 = vadd.f32 %v393, %v531
    %v596 = vadd.f32 %v394, %v532
    %v597 = vadd.f32 %v395, %v533
    %v598 = vadd.f32 %v396, %v534
    %v599 = vadd.f32 %v397, %v535
    %v600 = vadd.f32 %v398, %v536
    %v601 = vadd.f32 %v399, %v537
    %v602 = vadd.f32 %v400, %v538
    %v603 = vadd.f32 %v401, %v539
    %v604 = vadd.f32 %v402, %v540
    %v605 = vadd.f32 %v403, %v541
    %v606 = vadd.f32 %v404, %v542
    %v607 = vadd.f32 %v405, %v543
    %v608 = vadd.f32 %v406, %v544
    %v609 = vadd.f32 %v407, %v545
    %v610 = vadd.f32 %v408, %v546
    %v611 = vadd.f32 %v409, %v547
    %v612 = vadd.f32 %v410, %v548
    %v613 = vadd.f32 %v411, %v549
    %v614 = vadd.f32 %v412, %v550
    %v615 = vadd.f32 %v413, %v551
    %v616 = vadd.f32 %v414, %v552
    %v617 = vadd.f32 %v415, %v553
    %v618 = vadd.f32 %v416, %v554
    %v619 = vadd.f32 %v417, %v555
    %v620 = vadd.f32 %v418, %v556
    %v621 = vadd.f32 %v419, %v557
    %v622 = vadd.f32 %v420, %v558
    %v623 = vadd.f32 %v421, %v559
    %v624 = vadd.f32 %v422, %v560
    %v625 = vadd.f32 %v423, %v561
    %v626 = vadd.f32 %v424, %v562
    %v627 = vadd.f32 %v425, %v563
    %v628 = vadd.f32 %v426, %v564
    %v629 = vadd.f32 %v427, %v565
    %v630 = vadd.f32 %v428, %v566
    %v631 = vadd.f32 %v429, %v567
    %v632 = vadd.f32 %v430, %v568
    %v633 = vadd.f32 %v431, %v569
    %v634 = vadd.f32 %v432, %v570
    %v635 = vadd.f32 %v433, %v571
    %v636 = vadd.f32 %v434, %v572
    %v637 = vadd.f32 %v435, %v573
    %v638 = vadd.f32 %v436, %v574
    %v639 = vadd.f32 %v437, %v575
    %v640 = vadd.f32 %v438, %v576
    %v641 = vadd.f32 %v439, %v577
    %v642 = vadd.f32 %v440, %v578
    %v643 = vadd.f32 %v441, %v579
    %v644 = vadd.f32 %v442, %v580
    %v645 = vadd.f32 %v443, %v581
    %v646 = vadd.f32 %v444, %v582
    %v647 = vadd.f32 %v445, %v583
    %v648 = vadd.f32 %v446, %v584
    %v649 = vadd.f32 %v447, %v585
    %v650 = vadd.f32 %v448, %v586
    %v651 = vlaneseq
    %v652 = vshrl.u32 %v651, 7
    %v653 = vsub.s32 0, %v652
    %v654 = vrot.slane %v301, %v653
    %vm655 = vcmp.eq.s32.totalorder %v72, %v654
    %vm656 = vcmp.eq.s32.totalorder %v73, %v654
    %vm657 = vcmp.eq.s32.totalorder %v74, %v654
    %vm658 = vcmp.eq.s32.totalorder %v75, %v654
    %vm659 = vcmp.eq.s32.totalorder %v76, %v654
    %vm660 = vcmp.eq.s32.totalorder %v77, %v654
    %vm661 = vcmp.eq.s32.totalorder %v78, %v654
    %vm662 = vcmp.eq.s32.totalorder %v79, %v654
    %vm663 = vcmp.eq.s32.totalorder %v80, %v654
    %vm664 = vcmp.eq.s32.totalorder %v81, %v654
    %vm665 = vcmp.eq.s32.totalorder %v82, %v654
    %vm666 = vcmp.eq.s32.totalorder %v83, %v654
    %vm667 = vcmp.eq.s32.totalorder %v84, %v654
    %vm668 = vcmp.eq.s32.totalorder %v85, %v654
    %vm669 = vcmp.eq.s32.totalorder %v86, %v654
    %vm670 = vcmp.eq.s32.totalorder %v87, %v654
    %vm671 = vcmp.eq.s32.totalorder %v88, %v654
    %vm672 = vcmp.eq.s32.totalorder %v89, %v654
    %vm673 = vcmp.eq.s32.totalorder %v90, %v654
    %vm674 = vcmp.eq.s32.totalorder %v91, %v654
    %vm675 = vcmp.eq.s32.totalorder %v92, %v654
    %vm676 = vcmp.eq.s32.totalorder %v93, %v654
    %vm677 = vcmp.eq.s32.totalorder %v94, %v654
    %vm678 = vcmp.eq.s32.totalorder %v95, %v654
    %vm679 = vcmp.eq.s32.totalorder %v96, %v654
    %vm680 = vcmp.eq.s32.totalorder %v97, %v654
    %vm681 = vcmp.eq.s32.totalorder %v98, %v654
    %vm682 = vcmp.eq.s32.totalorder %v99, %v654
    %vm683 = vcmp.eq.s32.totalorder %v100, %v654
    %vm684 = vcmp.eq.s32.totalorder %v101, %v654
    %vm685 = vcmp.eq.s32.totalorder %v102, %v654
    %vm686 = vcmp.eq.s32.totalorder %v103, %v654
    %vm687 = vcmp.eq.s32.totalorder %v104, %v654
    %vm688 = vcmp.eq.s32.totalorder %v105, %v654
    %vm689 = vcmp.eq.s32.totalorder %v106, %v654
    %vm690 = vcmp.eq.s32.totalorder %v107, %v654
    %vm691 = vcmp.eq.s32.totalorder %v108, %v654
    %vm692 = vcmp.eq.s32.totalorder %v109, %v654
    %vm693 = vcmp.eq.s32.totalorder %v110, %v654
    %vm694 = vcmp.eq.s32.totalorder %v111, %v654
    %vm695 = vcmp.eq.s32.totalorder %v112, %v654
    %vm696 = vcmp.eq.s32.totalorder %v113, %v654
    %vm697 = vcmp.eq.s32.totalorder %v114, %v654
    %vm698 = vcmp.eq.s32.totalorder %v115, %v654
    %vm699 = vcmp.eq.s32.totalorder %v116, %v654
    %vm700 = vcmp.eq.s32.totalorder %v117, %v654
    %vm701 = vcmp.eq.s32.totalorder %v118, %v654
    %vm702 = vcmp.eq.s32.totalorder %v119, %v654
    %vm703 = vcmp.eq.s32.totalorder %v120, %v654
    %vm704 = vcmp.eq.s32.totalorder %v121, %v654
    %vm705 = vcmp.eq.s32.totalorder %v122, %v654
    %vm706 = vcmp.eq.s32.totalorder %v123, %v654
    %vm707 = vcmp.eq.s32.totalorder %v124, %v654
    %vm708 = vcmp.eq.s32.totalorder %v125, %v654
    %vm709 = vcmp.eq.s32.totalorder %v126, %v654
    %vm710 = vcmp.eq.s32.totalorder %v127, %v654
    %vm711 = vcmp.eq.s32.totalorder %v128, %v654
    %vm712 = vcmp.eq.s32.totalorder %v129, %v654
    %vm713 = vcmp.eq.s32.totalorder %v130, %v654
    %vm714 = vcmp.eq.s32.totalorder %v131, %v654
    %vm715 = vcmp.eq.s32.totalorder %v132, %v654
    %vm716 = vcmp.eq.s32.totalorder %v133, %v654
    %vm717 = vcmp.eq.s32.totalorder %v134, %v654
    %vm718 = vcmp.eq.s32.totalorder %v135, %v654
    %v720 = vlaneseq
    %v721 = vshrl.u32 %v720, 7
    %v722 = vsub.s32 0, %v721
    %v723 = vrot.slane %v308, %v722
    %v725 = vsel %vm655, %v723, 0.0
    %v726 = vsel %vm656, %v723, 0.0
    %v727 = vsel %vm657, %v723, 0.0
    %v728 = vsel %vm658, %v723, 0.0
    %v729 = vsel %vm659, %v723, 0.0
    %v730 = vsel %vm660, %v723, 0.0
    %v731 = vsel %vm661, %v723, 0.0
    %v732 = vsel %vm662, %v723, 0.0
    %v733 = vsel %vm663, %v723, 0.0
    %v734 = vsel %vm664, %v723, 0.0
    %v735 = vsel %vm665, %v723, 0.0
    %v736 = vsel %vm666, %v723, 0.0
    %v737 = vsel %vm667, %v723, 0.0
    %v738 = vsel %vm668, %v723, 0.0
    %v739 = vsel %vm669, %v723, 0.0
    %v740 = vsel %vm670, %v723, 0.0
    %v741 = vsel %vm671, %v723, 0.0
    %v742 = vsel %vm672, %v723, 0.0
    %v743 = vsel %vm673, %v723, 0.0
    %v744 = vsel %vm674, %v723, 0.0
    %v745 = vsel %vm675, %v723, 0.0
    %v746 = vsel %vm676, %v723, 0.0
    %v747 = vsel %vm677, %v723, 0.0
    %v748 = vsel %vm678, %v723, 0.0
    %v749 = vsel %vm679, %v723, 0.0
    %v750 = vsel %vm680, %v723, 0.0
    %v751 = vsel %vm681, %v723, 0.0
    %v752 = vsel %vm682, %v723, 0.0
    %v753 = vsel %vm683, %v723, 0.0
    %v754 = vsel %vm684, %v723, 0.0
    %v755 = vsel %vm685, %v723, 0.0
    %v756 = vsel %vm686, %v723, 0.0
    %v757 = vsel %vm687, %v723, 0.0
    %v758 = vsel %vm688, %v723, 0.0
    %v759 = vsel %vm689, %v723, 0.0
    %v760 = vsel %vm690, %v723, 0.0
    %v761 = vsel %vm691, %v723, 0.0
    %v762 = vsel %vm692, %v723, 0.0
    %v763 = vsel %vm693, %v723, 0.0
    %v764 = vsel %vm694, %v723, 0.0
    %v765 = vsel %vm695, %v723, 0.0
    %v766 = vsel %vm696, %v723, 0.0
    %v767 = vsel %vm697, %v723, 0.0
    %v768 = vsel %vm698, %v723, 0.0
    %v769 = vsel %vm699, %v723, 0.0
    %v770 = vsel %vm700, %v723, 0.0
    %v771 = vsel %vm701, %v723, 0.0
    %v772 = vsel %vm702, %v723, 0.0
    %v773 = vsel %vm703, %v723, 0.0
    %v774 = vsel %vm704, %v723, 0.0
    %v775 = vsel %vm705, %v723, 0.0
    %v776 = vsel %vm706, %v723, 0.0
    %v777 = vsel %vm707, %v723, 0.0
    %v778 = vsel %vm708, %v723, 0.0
    %v779 = vsel %vm709, %v723, 0.0
    %v780 = vsel %vm710, %v723, 0.0
    %v781 = vsel %vm711, %v723, 0.0
    %v782 = vsel %vm712, %v723, 0.0
    %v783 = vsel %vm713, %v723, 0.0
    %v784 = vsel %vm714, %v723, 0.0
    %v785 = vsel %vm715, %v723, 0.0
    %v786 = vsel %vm716, %v723, 0.0
    %v787 = vsel %vm717, %v723, 0.0
    %v788 = vsel %vm718, %v723, 0.0
    %v789 = vadd.f32 %v587, %v725
    %v790 = vadd.f32 %v588, %v726
    %v791 = vadd.f32 %v589, %v727
    %v792 = vadd.f32 %v590, %v728
    %v793 = vadd.f32 %v591, %v729
    %v794 = vadd.f32 %v592, %v730
    %v795 = vadd.f32 %v593, %v731
    %v796 = vadd.f32 %v594, %v732
    %v797 = vadd.f32 %v595, %v733
    %v798 = vadd.f32 %v596, %v734
    %v799 = vadd.f32 %v597, %v735
    %v800 = vadd.f32 %v598, %v736
    %v801 = vadd.f32 %v599, %v737
    %v802 = vadd.f32 %v600, %v738
    %v803 = vadd.f32 %v601, %v739
    %v804 = vadd.f32 %v602, %v740
    %v805 = vadd.f32 %v603, %v741
    %v806 = vadd.f32 %v604, %v742
    %v807 = vadd.f32 %v605, %v743
    %v808 = vadd.f32 %v606, %v744
    %v809 = vadd.f32 %v607, %v745
    %v810 = vadd.f32 %v608, %v746
    %v811 = vadd.f32 %v609, %v747
    %v812 = vadd.f32 %v610, %v748
    %v813 = vadd.f32 %v611, %v749
    %v814 = vadd.f32 %v612, %v750
    %v815 = vadd.f32 %v613, %v751
    %v816 = vadd.f32 %v614, %v752
    %v817 = vadd.f32 %v615, %v753
    %v818 = vadd.f32 %v616, %v754
    %v819 = vadd.f32 %v617, %v755
    %v820 = vadd.f32 %v618, %v756
    %v821 = vadd.f32 %v619, %v757
    %v822 = vadd.f32 %v620, %v758
    %v823 = vadd.f32 %v621, %v759
    %v824 = vadd.f32 %v622, %v760
    %v825 = vadd.f32 %v623, %v761
    %v826 = vadd.f32 %v624, %v762
    %v827 = vadd.f32 %v625, %v763
    %v828 = vadd.f32 %v626, %v764
    %v829 = vadd.f32 %v627, %v765
    %v830 = vadd.f32 %v628, %v766
    %v831 = vadd.f32 %v629, %v767
    %v832 = vadd.f32 %v630, %v768
    %v833 = vadd.f32 %v631, %v769
    %v834 = vadd.f32 %v632, %v770
    %v835 = vadd.f32 %v633, %v771
    %v836 = vadd.f32 %v634, %v772
    %v837 = vadd.f32 %v635, %v773
    %v838 = vadd.f32 %v636, %v774
    %v839 = vadd.f32 %v637, %v775
    %v840 = vadd.f32 %v638, %v776
    %v841 = vadd.f32 %v639, %v777
    %v842 = vadd.f32 %v640, %v778
    %v843 = vadd.f32 %v641, %v779
    %v844 = vadd.f32 %v642, %v780
    %v845 = vadd.f32 %v643, %v781
    %v846 = vadd.f32 %v644, %v782
    %v847 = vadd.f32 %v645, %v783
    %v848 = vadd.f32 %v646, %v784
    %v849 = vadd.f32 %v647, %v785
    %v850 = vadd.f32 %v648, %v786
    %v851 = vadd.f32 %v649, %v787
    %v852 = vadd.f32 %v650, %v788
    %v853 = vlaneseq
    %v854 = vshrl.u32 %v853, 7
    %v855 = vsub.s32 0, %v854
    %v856 = vrot.slane %v302, %v855
    %vm857 = vcmp.eq.s32.totalorder %v72, %v856
    %vm858 = vcmp.eq.s32.totalorder %v73, %v856
    %vm859 = vcmp.eq.s32.totalorder %v74, %v856
    %vm860 = vcmp.eq.s32.totalorder %v75, %v856
    %vm861 = vcmp.eq.s32.totalorder %v76, %v856
    %vm862 = vcmp.eq.s32.totalorder %v77, %v856
    %vm863 = vcmp.eq.s32.totalorder %v78, %v856
    %vm864 = vcmp.eq.s32.totalorder %v79, %v856
    %vm865 = vcmp.eq.s32.totalorder %v80, %v856
    %vm866 = vcmp.eq.s32.totalorder %v81, %v856
    %vm867 = vcmp.eq.s32.totalorder %v82, %v856
    %vm868 = vcmp.eq.s32.totalorder %v83, %v856
    %vm869 = vcmp.eq.s32.totalorder %v84, %v856
    %vm870 = vcmp.eq.s32.totalorder %v85, %v856
    %vm871 = vcmp.eq.s32.totalorder %v86, %v856
    %vm872 = vcmp.eq.s32.totalorder %v87, %v856
    %vm873 = vcmp.eq.s32.totalorder %v88, %v856
    %vm874 = vcmp.eq.s32.totalorder %v89, %v856
    %vm875 = vcmp.eq.s32.totalorder %v90, %v856
    %vm876 = vcmp.eq.s32.totalorder %v91, %v856
    %vm877 = vcmp.eq.s32.totalorder %v92, %v856
    %vm878 = vcmp.eq.s32.totalorder %v93, %v856
    %vm879 = vcmp.eq.s32.totalorder %v94, %v856
    %vm880 = vcmp.eq.s32.totalorder %v95, %v856
    %vm881 = vcmp.eq.s32.totalorder %v96, %v856
    %vm882 = vcmp.eq.s32.totalorder %v97, %v856
    %vm883 = vcmp.eq.s32.totalorder %v98, %v856
    %vm884 = vcmp.eq.s32.totalorder %v99, %v856
    %vm885 = vcmp.eq.s32.totalorder %v100, %v856
    %vm886 = vcmp.eq.s32.totalorder %v101, %v856
    %vm887 = vcmp.eq.s32.totalorder %v102, %v856
    %vm888 = vcmp.eq.s32.totalorder %v103, %v856
    %vm889 = vcmp.eq.s32.totalorder %v104, %v856
    %vm890 = vcmp.eq.s32.totalorder %v105, %v856
    %vm891 = vcmp.eq.s32.totalorder %v106, %v856
    %vm892 = vcmp.eq.s32.totalorder %v107, %v856
    %vm893 = vcmp.eq.s32.totalorder %v108, %v856
    %vm894 = vcmp.eq.s32.totalorder %v109, %v856
    %vm895 = vcmp.eq.s32.totalorder %v110, %v856
    %vm896 = vcmp.eq.s32.totalorder %v111, %v856
    %vm897 = vcmp.eq.s32.totalorder %v112, %v856
    %vm898 = vcmp.eq.s32.totalorder %v113, %v856
    %vm899 = vcmp.eq.s32.totalorder %v114, %v856
    %vm900 = vcmp.eq.s32.totalorder %v115, %v856
    %vm901 = vcmp.eq.s32.totalorder %v116, %v856
    %vm902 = vcmp.eq.s32.totalorder %v117, %v856
    %vm903 = vcmp.eq.s32.totalorder %v118, %v856
    %vm904 = vcmp.eq.s32.totalorder %v119, %v856
    %vm905 = vcmp.eq.s32.totalorder %v120, %v856
    %vm906 = vcmp.eq.s32.totalorder %v121, %v856
    %vm907 = vcmp.eq.s32.totalorder %v122, %v856
    %vm908 = vcmp.eq.s32.totalorder %v123, %v856
    %vm909 = vcmp.eq.s32.totalorder %v124, %v856
    %vm910 = vcmp.eq.s32.totalorder %v125, %v856
    %vm911 = vcmp.eq.s32.totalorder %v126, %v856
    %vm912 = vcmp.eq.s32.totalorder %v127, %v856
    %vm913 = vcmp.eq.s32.totalorder %v128, %v856
    %vm914 = vcmp.eq.s32.totalorder %v129, %v856
    %vm915 = vcmp.eq.s32.totalorder %v130, %v856
    %vm916 = vcmp.eq.s32.totalorder %v131, %v856
    %vm917 = vcmp.eq.s32.totalorder %v132, %v856
    %vm918 = vcmp.eq.s32.totalorder %v133, %v856
    %vm919 = vcmp.eq.s32.totalorder %v134, %v856
    %vm920 = vcmp.eq.s32.totalorder %v135, %v856
    %v922 = vlaneseq
    %v923 = vshrl.u32 %v922, 7
    %v924 = vsub.s32 0, %v923
    %v925 = vrot.slane %v310, %v924
    %v927 = vsel %vm857, %v925, 0.0
    %v928 = vsel %vm858, %v925, 0.0
    %v929 = vsel %vm859, %v925, 0.0
    %v930 = vsel %vm860, %v925, 0.0
    %v931 = vsel %vm861, %v925, 0.0
    %v932 = vsel %vm862, %v925, 0.0
    %v933 = vsel %vm863, %v925, 0.0
    %v934 = vsel %vm864, %v925, 0.0
    %v935 = vsel %vm865, %v925, 0.0
    %v936 = vsel %vm866, %v925, 0.0
    %v937 = vsel %vm867, %v925, 0.0
    %v938 = vsel %vm868, %v925, 0.0
    %v939 = vsel %vm869, %v925, 0.0
    %v940 = vsel %vm870, %v925, 0.0
    %v941 = vsel %vm871, %v925, 0.0
    %v942 = vsel %vm872, %v925, 0.0
    %v943 = vsel %vm873, %v925, 0.0
    %v944 = vsel %vm874, %v925, 0.0
    %v945 = vsel %vm875, %v925, 0.0
    %v946 = vsel %vm876, %v925, 0.0
    %v947 = vsel %vm877, %v925, 0.0
    %v948 = vsel %vm878, %v925, 0.0
    %v949 = vsel %vm879, %v925, 0.0
    %v950 = vsel %vm880, %v925, 0.0
    %v951 = vsel %vm881, %v925, 0.0
    %v952 = vsel %vm882, %v925, 0.0
    %v953 = vsel %vm883, %v925, 0.0
    %v954 = vsel %vm884, %v925, 0.0
    %v955 = vsel %vm885, %v925, 0.0
    %v956 = vsel %vm886, %v925, 0.0
    %v957 = vsel %vm887, %v925, 0.0
    %v958 = vsel %vm888, %v925, 0.0
    %v959 = vsel %vm889, %v925, 0.0
    %v960 = vsel %vm890, %v925, 0.0
    %v961 = vsel %vm891, %v925, 0.0
    %v962 = vsel %vm892, %v925, 0.0
    %v963 = vsel %vm893, %v925, 0.0
    %v964 = vsel %vm894, %v925, 0.0
    %v965 = vsel %vm895, %v925, 0.0
    %v966 = vsel %vm896, %v925, 0.0
    %v967 = vsel %vm897, %v925, 0.0
    %v968 = vsel %vm898, %v925, 0.0
    %v969 = vsel %vm899, %v925, 0.0
    %v970 = vsel %vm900, %v925, 0.0
    %v971 = vsel %vm901, %v925, 0.0
    %v972 = vsel %vm902, %v925, 0.0
    %v973 = vsel %vm903, %v925, 0.0
    %v974 = vsel %vm904, %v925, 0.0
    %v975 = vsel %vm905, %v925, 0.0
    %v976 = vsel %vm906, %v925, 0.0
    %v977 = vsel %vm907, %v925, 0.0
    %v978 = vsel %vm908, %v925, 0.0
    %v979 = vsel %vm909, %v925, 0.0
    %v980 = vsel %vm910, %v925, 0.0
    %v981 = vsel %vm911, %v925, 0.0
    %v982 = vsel %vm912, %v925, 0.0
    %v983 = vsel %vm913, %v925, 0.0
    %v984 = vsel %vm914, %v925, 0.0
    %v985 = vsel %vm915, %v925, 0.0
    %v986 = vsel %vm916, %v925, 0.0
    %v987 = vsel %vm917, %v925, 0.0
    %v988 = vsel %vm918, %v925, 0.0
    %v989 = vsel %vm919, %v925, 0.0
    %v990 = vsel %vm920, %v925, 0.0
    %v991 = vadd.f32 %v789, %v927
    %v992 = vadd.f32 %v790, %v928
    %v993 = vadd.f32 %v791, %v929
    %v994 = vadd.f32 %v792, %v930
    %v995 = vadd.f32 %v793, %v931
    %v996 = vadd.f32 %v794, %v932
    %v997 = vadd.f32 %v795, %v933
    %v998 = vadd.f32 %v796, %v934
    %v999 = vadd.f32 %v797, %v935
    %v1000 = vadd.f32 %v798, %v936
    %v1001 = vadd.f32 %v799, %v937
    %v1002 = vadd.f32 %v800, %v938
    %v1003 = vadd.f32 %v801, %v939
    %v1004 = vadd.f32 %v802, %v940
    %v1005 = vadd.f32 %v803, %v941
    %v1006 = vadd.f32 %v804, %v942
    %v1007 = vadd.f32 %v805, %v943
    %v1008 = vadd.f32 %v806, %v944
    %v1009 = vadd.f32 %v807, %v945
    %v1010 = vadd.f32 %v808, %v946
    %v1011 = vadd.f32 %v809, %v947
    %v1012 = vadd.f32 %v810, %v948
    %v1013 = vadd.f32 %v811, %v949
    %v1014 = vadd.f32 %v812, %v950
    %v1015 = vadd.f32 %v813, %v951
    %v1016 = vadd.f32 %v814, %v952
    %v1017 = vadd.f32 %v815, %v953
    %v1018 = vadd.f32 %v816, %v954
    %v1019 = vadd.f32 %v817, %v955
    %v1020 = vadd.f32 %v818, %v956
    %v1021 = vadd.f32 %v819, %v957
    %v1022 = vadd.f32 %v820, %v958
    %v1023 = vadd.f32 %v821, %v959
    %v1024 = vadd.f32 %v822, %v960
    %v1025 = vadd.f32 %v823, %v961
    %v1026 = vadd.f32 %v824, %v962
    %v1027 = vadd.f32 %v825, %v963
    %v1028 = vadd.f32 %v826, %v964
    %v1029 = vadd.f32 %v827, %v965
    %v1030 = vadd.f32 %v828, %v966
    %v1031 = vadd.f32 %v829, %v967
    %v1032 = vadd.f32 %v830, %v968
    %v1033 = vadd.f32 %v831, %v969
    %v1034 = vadd.f32 %v832, %v970
    %v1035 = vadd.f32 %v833, %v971
    %v1036 = vadd.f32 %v834, %v972
    %v1037 = vadd.f32 %v835, %v973
    %v1038 = vadd.f32 %v836, %v974
    %v1039 = vadd.f32 %v837, %v975
    %v1040 = vadd.f32 %v838, %v976
    %v1041 = vadd.f32 %v839, %v977
    %v1042 = vadd.f32 %v840, %v978
    %v1043 = vadd.f32 %v841, %v979
    %v1044 = vadd.f32 %v842, %v980
    %v1045 = vadd.f32 %v843, %v981
    %v1046 = vadd.f32 %v844, %v982
    %v1047 = vadd.f32 %v845, %v983
    %v1048 = vadd.f32 %v846, %v984
    %v1049 = vadd.f32 %v847, %v985
    %v1050 = vadd.f32 %v848, %v986
    %v1051 = vadd.f32 %v849, %v987
    %v1052 = vadd.f32 %v850, %v988
    %v1053 = vadd.f32 %v851, %v989
    %v1054 = vadd.f32 %v852, %v990
    %v1055 = vld [vmem:[#allocation6] sm:$0xff]
    %v1056 = vld [vmem:[#allocation6 + $0x8] sm:$0xff]
    %v1057 = vld [vmem:[#allocation6 + $0x10] sm:$0xff]
    %v1058 = vld [vmem:[#allocation6 + $0x18] sm:$0xff]
    %v1059 = vld [vmem:[#allocation6 + $0x20] sm:$0xff]
    %v1060 = vld [vmem:[#allocation6 + $0x28] sm:$0xff]
    %v1061 = vld [vmem:[#allocation6 + $0x30] sm:$0xff]
    %v1062 = vld [vmem:[#allocation6 + $0x38] sm:$0xff]
    %v1063 = vld [vmem:[#allocation6 + $0x40] sm:$0xff]
    %v1064 = vld [vmem:[#allocation6 + $0x48] sm:$0xff]
    %v1065 = vld [vmem:[#allocation6 + $0x50] sm:$0xff]
    %v1066 = vld [vmem:[#allocation6 + $0x58] sm:$0xff]
    %v1067 = vld [vmem:[#allocation6 + $0x60] sm:$0xff]
    %v1068 = vld [vmem:[#allocation6 + $0x68] sm:$0xff]
    %v1069 = vld [vmem:[#allocation6 + $0x70] sm:$0xff]
    %v1070 = vld [vmem:[#allocation6 + $0x78] sm:$0xff]
    %v1071 = vld [vmem:[#allocation6 + $0x80] sm:$0xff]
    %v1072 = vld [vmem:[#allocation6 + $0x88] sm:$0xff]
    %v1073 = vld [vmem:[#allocation6 + $0x90] sm:$0xff]
    %v1074 = vld [vmem:[#allocation6 + $0x98] sm:$0xff]
    %v1075 = vld [vmem:[#allocation6 + $0xa0] sm:$0xff]
    %v1076 = vld [vmem:[#allocation6 + $0xa8] sm:$0xff]
    %v1077 = vld [vmem:[#allocation6 + $0xb0] sm:$0xff]
    %v1078 = vld [vmem:[#allocation6 + $0xb8] sm:$0xff]
    %v1079 = vld [vmem:[#allocation6 + $0xc0] sm:$0xff]
    %v1080 = vld [vmem:[#allocation6 + $0xc8] sm:$0xff]
    %v1081 = vld [vmem:[#allocation6 + $0xd0] sm:$0xff]
    %v1082 = vld [vmem:[#allocation6 + $0xd8] sm:$0xff]
    %v1083 = vld [vmem:[#allocation6 + $0xe0] sm:$0xff]
    %v1084 = vld [vmem:[#allocation6 + $0xe8] sm:$0xff]
    %v1085 = vld [vmem:[#allocation6 + $0xf0] sm:$0xff]
    %v1086 = vld [vmem:[#allocation6 + $0xf8] sm:$0xff]
    %v1087 = vld [vmem:[#allocation6 + $0x100] sm:$0xff]
    %v1088 = vld [vmem:[#allocation6 + $0x108] sm:$0xff]
    %v1089 = vld [vmem:[#allocation6 + $0x110] sm:$0xff]
    %v1090 = vld [vmem:[#allocation6 + $0x118] sm:$0xff]
    %v1091 = vld [vmem:[#allocation6 + $0x120] sm:$0xff]
    %v1092 = vld [vmem:[#allocation6 + $0x128] sm:$0xff]
    %v1093 = vld [vmem:[#allocation6 + $0x130] sm:$0xff]
    %v1094 = vld [vmem:[#allocation6 + $0x138] sm:$0xff]
    %v1095 = vadd.f32 %v252, 0.0
    %s1096 = sld [smem:[#allocation2 + $0x4]]
    %v1097 = vstv %s1096
    %v1098 = vmul.f32 %v1097, %v60
    %s1099 = sld [smem:[#allocation2 + $0x5]]
    %v1100 = vstv %s1099
    %v1101 = vmul.f32 %v1100, %v61
    %v1102 = vadd.f32 %v1098, %v1101
    %s1103 = sld [smem:[#allocation2 + $0x6]]
    %v1104 = vstv %s1103
    %v1105 = vmul.f32 %v1104, %v62
    %v1106 = vadd.f32 %v1102, %v1105
    %s1107 = sld [smem:[#allocation2 + $0x7]]
    %v1108 = vstv %s1107
    %v1109 = vadd.f32 %v1106, %v1108
    %v1110 = vmul.f32 %v66, %v1109
    %v1111 = vadd.f32 %v1110, 0.0
    %s1112 = sld [smem:[#allocation2 + $0x28]]
    %v1113 = vstv %s1112
    %v1114 = vmul.f32 %v1113, %v60
    %s1115 = sld [smem:[#allocation2 + $0x29]]
    %v1116 = vstv %s1115
    %v1117 = vmul.f32 %v1116, %v61
    %v1118 = vadd.f32 %v1114, %v1117
    %s1119 = sld [smem:[#allocation2 + $0x2a]]
    %v1120 = vstv %s1119
    %v1121 = vmul.f32 %v1120, %v62
    %v1122 = vadd.f32 %v1118, %v1121
    %s1123 = sld [smem:[#allocation2 + $0x2b]]
    %v1124 = vstv %s1123
    %v1125 = vadd.f32 %v1122, %v1124
    %v1126 = vmul.f32 %v69, %v1125
    %v1127 = vadd.f32 %v1111, %v1126
    %s1128 = sld [smem:[#allocation2 + $0x10]]
    %v1129 = vstv %s1128
    %v1130 = vmul.f32 %v1129, %v60
    %s1131 = sld [smem:[#allocation2 + $0x11]]
    %v1132 = vstv %s1131
    %v1133 = vmul.f32 %v1132, %v61
    %v1134 = vadd.f32 %v1130, %v1133
    %s1135 = sld [smem:[#allocation2 + $0x12]]
    %v1136 = vstv %s1135
    %v1137 = vmul.f32 %v1136, %v62
    %v1138 = vadd.f32 %v1134, %v1137
    %s1139 = sld [smem:[#allocation2 + $0x13]]
    %v1140 = vstv %s1139
    %v1141 = vadd.f32 %v1138, %v1140
    %v1142 = vmul.f32 %v66, %v1141
    %v1143 = vadd.f32 %v1142, 0.0
    %s1144 = sld [smem:[#allocation2 + $0x34]]
    %v1145 = vstv %s1144
    %v1146 = vmul.f32 %v1145, %v60
    %s1147 = sld [smem:[#allocation2 + $0x35]]
    %v1148 = vstv %s1147
    %v1149 = vmul.f32 %v1148, %v61
    %v1150 = vadd.f32 %v1146, %v1149
    %s1151 = sld [smem:[#allocation2 + $0x36]]
    %v1152 = vstv %s1151
    %v1153 = vmul.f32 %v1152, %v62
    %v1154 = vadd.f32 %v1150, %v1153
    %s1155 = sld [smem:[#allocation2 + $0x37]]
    %v1156 = vstv %s1155
    %v1157 = vadd.f32 %v1154, %v1156
    %v1158 = vmul.f32 %v69, %v1157
    %v1159 = vadd.f32 %v1143, %v1158
    %s1160 = sld [smem:[#allocation2 + $0x1c]]
    %v1161 = vstv %s1160
    %v1162 = vmul.f32 %v1161, %v60
    %s1163 = sld [smem:[#allocation2 + $0x1d]]
    %v1164 = vstv %s1163
    %v1165 = vmul.f32 %v1164, %v61
    %v1166 = vadd.f32 %v1162, %v1165
    %s1167 = sld [smem:[#allocation2 + $0x1e]]
    %v1168 = vstv %s1167
    %v1169 = vmul.f32 %v1168, %v62
    %v1170 = vadd.f32 %v1166, %v1169
    %s1171 = sld [smem:[#allocation2 + $0x1f]]
    %v1172 = vstv %s1171
    %v1173 = vadd.f32 %v1170, %v1172
    %v1174 = vmul.f32 %v66, %v1173
    %v1175 = vadd.f32 %v1174, 0.0
    %s1176 = sld [smem:[#allocation2 + $0x40]]
    %v1177 = vstv %s1176
    %v1178 = vmul.f32 %v1177, %v60
    %s1179 = sld [smem:[#allocation2 + $0x41]]
    %v1180 = vstv %s1179
    %v1181 = vmul.f32 %v1180, %v61
    %v1182 = vadd.f32 %v1178, %v1181
    %s1183 = sld [smem:[#allocation2 + $0x42]]
    %v1184 = vstv %s1183
    %v1185 = vmul.f32 %v1184, %v62
    %v1186 = vadd.f32 %v1182, %v1185
    %s1187 = sld [smem:[#allocation2 + $0x43]]
    %v1188 = vstv %s1187
    %v1189 = vadd.f32 %v1186, %v1188
    %v1190 = vmul.f32 %v69, %v1189
    %v1191 = vadd.f32 %v1175, %v1190
    %vm1192 = vcmp.ne.f32.partialorder %v1191, 0.0
    %v1193 = vrcp.pop %v1191
    %v1194 = vmul.f32 %v1127, %v1193
    %v1195 = vsel %vm1192, %v1194, 0.0
    %v1196 = vmul.f32 %v1159, %v1193
    %v1197 = vsel %vm1192, %v1196, 0.0
    %v1198 = vmul.f32 %v1195, 0.13333334
    %v1199 = vsub.f32 %v1198, 1.0
    %v1200 = vsel %vm1192, %v1199, -2.0
    %v1201 = vmul.f32 %v1197, 0.13333334
    %v1202 = vsub.f32 %v1201, 1.0
    %v1203 = vsel %vm1192, %v1202, -2.0
    %v1204 = vand.u32 2147483647, %v1200
    %vm1205 = vcmp.le.f32.partialorder %v1204, 1.0
    %v1206 = vand.u32 2147483647, %v1203
    %vm1207 = vcmp.le.f32.partialorder %v1206, 1.0
    %vm1208 = vmand %vm1205, %vm1207
    %vm1209 = vcmp.gt.f32.partialorder %v1191, 0.0
    %vm1210 = vmand %vm1208, %vm1209
    %v1211 = vsel %vm1210, 1, 0
    %v1212 = vcvt.s32.f32 %v1211
    %1213 = vst [vmem:[#allocation7 + $0x1] sm:$0x1] %v1200
    %1214 = vst [vmem:[#allocation7 + $0x4] sm:$0x1] %v1203
    %1215 = vst [vmem:[#allocation7 + $0x7] sm:$0x1] %v1191
    %1216 = vst [vmem:[#allocation7 + $0xa] sm:$0x1] %v1212
    %v1217 = vsel %vm1210, %v1195, 0.0
    %v1218 = vand.u32 2147483647, %v1217
    %v1219 = vmul.f32 %v1218, 0.033333335
    %v1220 = vfloor.f32 %v1219
    %v1221 = vmul.f32 %v1220, 30.0
    %v1222 = vsub.f32 %v1218, %v1221
    %vm1223 = vcmp.gt.f32.partialorder %v1222, 15.0
    %v1224 = vsub.f32 30.0, %v1222
    %v1225 = vsel %vm1223, %v1224, %v1222
    %v1226 = vsel %vm1210, %v1197, 0.0
    %v1227 = vand.u32 2147483647, %v1226
    %v1228 = vmul.f32 %v1227, 0.033333335
    %v1229 = vfloor.f32 %v1228
    %v1230 = vmul.f32 %v1229, 30.0
    %v1231 = vsub.f32 %v1227, %v1230
    %vm1232 = vcmp.gt.f32.partialorder %v1231, 15.0
    %v1233 = vsub.f32 30.0, %v1231
    %v1234 = vsel %vm1232, %v1233, %v1231
    %v1235 = vfloor.f32 %v1225
    %v1236 = vfloor.f32 %v1234
    %v1237 = vsub.f32 %v1225, %v1235
    %v1238 = vsub.f32 %v1234, %v1236
    %v1239 = vsub.f32 1.0, %v1237
    %v1240 = vsub.f32 1.0, %v1238
    %v1241 = vmax.f32 %v1235, 0.0
    %v1242 = vmin.f32 %v1241, 15.0
    %v1243 = vcvt.f32.s32.to.zero.pseudo %v1242
    %v1244 = vadd.f32 %v1235, 1.0
    %v1245 = vmax.f32 %v1244, 0.0
    %v1246 = vmin.f32 %v1245, 15.0
    %v1247 = vcvt.f32.s32.to.zero.pseudo %v1246
    %v1248 = vmax.f32 %v1236, 0.0
    %v1249 = vmin.f32 %v1248, 15.0
    %v1250 = vcvt.f32.s32.to.zero.pseudo %v1249
    %v1251 = vadd.f32 %v1236, 1.0
    %v1252 = vmax.f32 %v1251, 0.0
    %v1253 = vmin.f32 %v1252, 15.0
    %v1254 = vcvt.f32.s32.to.zero.pseudo %v1253
    %v1255 = vmul.u32 %v1250, 16
    %v1256 = vadd.s32 %v70, %v1255
    %v1257 = vadd.s32 %v1256, %v1243
    %v1258 = vadd.s32 %v1256, %v1247
    %v1259 = vmul.u32 %v1254, 16
    %v1260 = vadd.s32 %v70, %v1259
    %v1261 = vadd.s32 %v1260, %v1243
    %v1262 = vadd.s32 %v1260, %v1247
    %v1263 = vmul.f32 %v1240, %v1239
    %v1264 = vmul.f32 %v1263, %v1212
    %v1265 = vmul.f32 %v1240, %v1237
    %v1266 = vmul.f32 %v1265, %v1212
    %v1267 = vmul.f32 %v1238, %v1239
    %v1268 = vmul.f32 %v1267, %v1212
    %v1269 = vmul.f32 %v1238, %v1237
    %v1270 = vmul.f32 %v1269, %v1212
    %v1271 = vlaneseq
    %v1272 = vshrl.u32 %v1271, 7
    %v1273 = vsub.s32 0, %v1272
    %v1274 = vrot.slane %v1257, %v1273
    %vm1275 = vcmp.eq.s32.totalorder %v72, %v1274
    %vm1276 = vcmp.eq.s32.totalorder %v73, %v1274
    %vm1277 = vcmp.eq.s32.totalorder %v74, %v1274
    %vm1278 = vcmp.eq.s32.totalorder %v75, %v1274
    %vm1279 = vcmp.eq.s32.totalorder %v76, %v1274
    %vm1280 = vcmp.eq.s32.totalorder %v77, %v1274
    %vm1281 = vcmp.eq.s32.totalorder %v78, %v1274
    %vm1282 = vcmp.eq.s32.totalorder %v79, %v1274
    %vm1283 = vcmp.eq.s32.totalorder %v80, %v1274
    %vm1284 = vcmp.eq.s32.totalorder %v81, %v1274
    %vm1285 = vcmp.eq.s32.totalorder %v82, %v1274
    %vm1286 = vcmp.eq.s32.totalorder %v83, %v1274
    %vm1287 = vcmp.eq.s32.totalorder %v84, %v1274
    %vm1288 = vcmp.eq.s32.totalorder %v85, %v1274
    %vm1289 = vcmp.eq.s32.totalorder %v86, %v1274
    %vm1290 = vcmp.eq.s32.totalorder %v87, %v1274
    %vm1291 = vcmp.eq.s32.totalorder %v88, %v1274
    %vm1292 = vcmp.eq.s32.totalorder %v89, %v1274
    %vm1293 = vcmp.eq.s32.totalorder %v90, %v1274
    %vm1294 = vcmp.eq.s32.totalorder %v91, %v1274
    %vm1295 = vcmp.eq.s32.totalorder %v92, %v1274
    %vm1296 = vcmp.eq.s32.totalorder %v93, %v1274
    %vm1297 = vcmp.eq.s32.totalorder %v94, %v1274
    %vm1298 = vcmp.eq.s32.totalorder %v95, %v1274
    %vm1299 = vcmp.eq.s32.totalorder %v96, %v1274
    %vm1300 = vcmp.eq.s32.totalorder %v97, %v1274
    %vm1301 = vcmp.eq.s32.totalorder %v98, %v1274
    %vm1302 = vcmp.eq.s32.totalorder %v99, %v1274
    %vm1303 = vcmp.eq.s32.totalorder %v100, %v1274
    %vm1304 = vcmp.eq.s32.totalorder %v101, %v1274
    %vm1305 = vcmp.eq.s32.totalorder %v102, %v1274
    %vm1306 = vcmp.eq.s32.totalorder %v103, %v1274
    %vm1307 = vcmp.eq.s32.totalorder %v104, %v1274
    %vm1308 = vcmp.eq.s32.totalorder %v105, %v1274
    %vm1309 = vcmp.eq.s32.totalorder %v106, %v1274
    %vm1310 = vcmp.eq.s32.totalorder %v107, %v1274
    %vm1311 = vcmp.eq.s32.totalorder %v108, %v1274
    %vm1312 = vcmp.eq.s32.totalorder %v109, %v1274
    %vm1313 = vcmp.eq.s32.totalorder %v110, %v1274
    %vm1314 = vcmp.eq.s32.totalorder %v111, %v1274
    %vm1315 = vcmp.eq.s32.totalorder %v112, %v1274
    %vm1316 = vcmp.eq.s32.totalorder %v113, %v1274
    %vm1317 = vcmp.eq.s32.totalorder %v114, %v1274
    %vm1318 = vcmp.eq.s32.totalorder %v115, %v1274
    %vm1319 = vcmp.eq.s32.totalorder %v116, %v1274
    %vm1320 = vcmp.eq.s32.totalorder %v117, %v1274
    %vm1321 = vcmp.eq.s32.totalorder %v118, %v1274
    %vm1322 = vcmp.eq.s32.totalorder %v119, %v1274
    %vm1323 = vcmp.eq.s32.totalorder %v120, %v1274
    %vm1324 = vcmp.eq.s32.totalorder %v121, %v1274
    %vm1325 = vcmp.eq.s32.totalorder %v122, %v1274
    %vm1326 = vcmp.eq.s32.totalorder %v123, %v1274
    %vm1327 = vcmp.eq.s32.totalorder %v124, %v1274
    %vm1328 = vcmp.eq.s32.totalorder %v125, %v1274
    %vm1329 = vcmp.eq.s32.totalorder %v126, %v1274
    %vm1330 = vcmp.eq.s32.totalorder %v127, %v1274
    %vm1331 = vcmp.eq.s32.totalorder %v128, %v1274
    %vm1332 = vcmp.eq.s32.totalorder %v129, %v1274
    %vm1333 = vcmp.eq.s32.totalorder %v130, %v1274
    %vm1334 = vcmp.eq.s32.totalorder %v131, %v1274
    %vm1335 = vcmp.eq.s32.totalorder %v132, %v1274
    %vm1336 = vcmp.eq.s32.totalorder %v133, %v1274
    %vm1337 = vcmp.eq.s32.totalorder %v134, %v1274
    %vm1338 = vcmp.eq.s32.totalorder %v135, %v1274
    %v1340 = vlaneseq
    %v1341 = vshrl.u32 %v1340, 7
    %v1342 = vsub.s32 0, %v1341
    %v1343 = vrot.slane %v1264, %v1342
    %v1345 = vsel %vm1275, %v1343, 0.0
    %v1346 = vsel %vm1276, %v1343, 0.0
    %v1347 = vsel %vm1277, %v1343, 0.0
    %v1348 = vsel %vm1278, %v1343, 0.0
    %v1349 = vsel %vm1279, %v1343, 0.0
    %v1350 = vsel %vm1280, %v1343, 0.0
    %v1351 = vsel %vm1281, %v1343, 0.0
    %v1352 = vsel %vm1282, %v1343, 0.0
    %v1353 = vsel %vm1283, %v1343, 0.0
    %v1354 = vsel %vm1284, %v1343, 0.0
    %v1355 = vsel %vm1285, %v1343, 0.0
    %v1356 = vsel %vm1286, %v1343, 0.0
    %v1357 = vsel %vm1287, %v1343, 0.0
    %v1358 = vsel %vm1288, %v1343, 0.0
    %v1359 = vsel %vm1289, %v1343, 0.0
    %v1360 = vsel %vm1290, %v1343, 0.0
    %v1361 = vsel %vm1291, %v1343, 0.0
    %v1362 = vsel %vm1292, %v1343, 0.0
    %v1363 = vsel %vm1293, %v1343, 0.0
    %v1364 = vsel %vm1294, %v1343, 0.0
    %v1365 = vsel %vm1295, %v1343, 0.0
    %v1366 = vsel %vm1296, %v1343, 0.0
    %v1367 = vsel %vm1297, %v1343, 0.0
    %v1368 = vsel %vm1298, %v1343, 0.0
    %v1369 = vsel %vm1299, %v1343, 0.0
    %v1370 = vsel %vm1300, %v1343, 0.0
    %v1371 = vsel %vm1301, %v1343, 0.0
    %v1372 = vsel %vm1302, %v1343, 0.0
    %v1373 = vsel %vm1303, %v1343, 0.0
    %v1374 = vsel %vm1304, %v1343, 0.0
    %v1375 = vsel %vm1305, %v1343, 0.0
    %v1376 = vsel %vm1306, %v1343, 0.0
    %v1377 = vsel %vm1307, %v1343, 0.0
    %v1378 = vsel %vm1308, %v1343, 0.0
    %v1379 = vsel %vm1309, %v1343, 0.0
    %v1380 = vsel %vm1310, %v1343, 0.0
    %v1381 = vsel %vm1311, %v1343, 0.0
    %v1382 = vsel %vm1312, %v1343, 0.0
    %v1383 = vsel %vm1313, %v1343, 0.0
    %v1384 = vsel %vm1314, %v1343, 0.0
    %v1385 = vsel %vm1315, %v1343, 0.0
    %v1386 = vsel %vm1316, %v1343, 0.0
    %v1387 = vsel %vm1317, %v1343, 0.0
    %v1388 = vsel %vm1318, %v1343, 0.0
    %v1389 = vsel %vm1319, %v1343, 0.0
    %v1390 = vsel %vm1320, %v1343, 0.0
    %v1391 = vsel %vm1321, %v1343, 0.0
    %v1392 = vsel %vm1322, %v1343, 0.0
    %v1393 = vsel %vm1323, %v1343, 0.0
    %v1394 = vsel %vm1324, %v1343, 0.0
    %v1395 = vsel %vm1325, %v1343, 0.0
    %v1396 = vsel %vm1326, %v1343, 0.0
    %v1397 = vsel %vm1327, %v1343, 0.0
    %v1398 = vsel %vm1328, %v1343, 0.0
    %v1399 = vsel %vm1329, %v1343, 0.0
    %v1400 = vsel %vm1330, %v1343, 0.0
    %v1401 = vsel %vm1331, %v1343, 0.0
    %v1402 = vsel %vm1332, %v1343, 0.0
    %v1403 = vsel %vm1333, %v1343, 0.0
    %v1404 = vsel %vm1334, %v1343, 0.0
    %v1405 = vsel %vm1335, %v1343, 0.0
    %v1406 = vsel %vm1336, %v1343, 0.0
    %v1407 = vsel %vm1337, %v1343, 0.0
    %v1408 = vsel %vm1338, %v1343, 0.0
    %v1409 = vlaneseq
    %v1410 = vshrl.u32 %v1409, 7
    %v1411 = vsub.s32 0, %v1410
    %v1412 = vrot.slane %v1258, %v1411
    %vm1413 = vcmp.eq.s32.totalorder %v72, %v1412
    %vm1414 = vcmp.eq.s32.totalorder %v73, %v1412
    %vm1415 = vcmp.eq.s32.totalorder %v74, %v1412
    %vm1416 = vcmp.eq.s32.totalorder %v75, %v1412
    %vm1417 = vcmp.eq.s32.totalorder %v76, %v1412
    %vm1418 = vcmp.eq.s32.totalorder %v77, %v1412
    %vm1419 = vcmp.eq.s32.totalorder %v78, %v1412
    %vm1420 = vcmp.eq.s32.totalorder %v79, %v1412
    %vm1421 = vcmp.eq.s32.totalorder %v80, %v1412
    %vm1422 = vcmp.eq.s32.totalorder %v81, %v1412
    %vm1423 = vcmp.eq.s32.totalorder %v82, %v1412
    %vm1424 = vcmp.eq.s32.totalorder %v83, %v1412
    %vm1425 = vcmp.eq.s32.totalorder %v84, %v1412
    %vm1426 = vcmp.eq.s32.totalorder %v85, %v1412
    %vm1427 = vcmp.eq.s32.totalorder %v86, %v1412
    %vm1428 = vcmp.eq.s32.totalorder %v87, %v1412
    %vm1429 = vcmp.eq.s32.totalorder %v88, %v1412
    %vm1430 = vcmp.eq.s32.totalorder %v89, %v1412
    %vm1431 = vcmp.eq.s32.totalorder %v90, %v1412
    %vm1432 = vcmp.eq.s32.totalorder %v91, %v1412
    %vm1433 = vcmp.eq.s32.totalorder %v92, %v1412
    %vm1434 = vcmp.eq.s32.totalorder %v93, %v1412
    %vm1435 = vcmp.eq.s32.totalorder %v94, %v1412
    %vm1436 = vcmp.eq.s32.totalorder %v95, %v1412
    %vm1437 = vcmp.eq.s32.totalorder %v96, %v1412
    %vm1438 = vcmp.eq.s32.totalorder %v97, %v1412
    %vm1439 = vcmp.eq.s32.totalorder %v98, %v1412
    %vm1440 = vcmp.eq.s32.totalorder %v99, %v1412
    %vm1441 = vcmp.eq.s32.totalorder %v100, %v1412
    %vm1442 = vcmp.eq.s32.totalorder %v101, %v1412
    %vm1443 = vcmp.eq.s32.totalorder %v102, %v1412
    %vm1444 = vcmp.eq.s32.totalorder %v103, %v1412
    %vm1445 = vcmp.eq.s32.totalorder %v104, %v1412
    %vm1446 = vcmp.eq.s32.totalorder %v105, %v1412
    %vm1447 = vcmp.eq.s32.totalorder %v106, %v1412
    %vm1448 = vcmp.eq.s32.totalorder %v107, %v1412
    %vm1449 = vcmp.eq.s32.totalorder %v108, %v1412
    %vm1450 = vcmp.eq.s32.totalorder %v109, %v1412
    %vm1451 = vcmp.eq.s32.totalorder %v110, %v1412
    %vm1452 = vcmp.eq.s32.totalorder %v111, %v1412
    %vm1453 = vcmp.eq.s32.totalorder %v112, %v1412
    %vm1454 = vcmp.eq.s32.totalorder %v113, %v1412
    %vm1455 = vcmp.eq.s32.totalorder %v114, %v1412
    %vm1456 = vcmp.eq.s32.totalorder %v115, %v1412
    %vm1457 = vcmp.eq.s32.totalorder %v116, %v1412
    %vm1458 = vcmp.eq.s32.totalorder %v117, %v1412
    %vm1459 = vcmp.eq.s32.totalorder %v118, %v1412
    %vm1460 = vcmp.eq.s32.totalorder %v119, %v1412
    %vm1461 = vcmp.eq.s32.totalorder %v120, %v1412
    %vm1462 = vcmp.eq.s32.totalorder %v121, %v1412
    %vm1463 = vcmp.eq.s32.totalorder %v122, %v1412
    %vm1464 = vcmp.eq.s32.totalorder %v123, %v1412
    %vm1465 = vcmp.eq.s32.totalorder %v124, %v1412
    %vm1466 = vcmp.eq.s32.totalorder %v125, %v1412
    %vm1467 = vcmp.eq.s32.totalorder %v126, %v1412
    %vm1468 = vcmp.eq.s32.totalorder %v127, %v1412
    %vm1469 = vcmp.eq.s32.totalorder %v128, %v1412
    %vm1470 = vcmp.eq.s32.totalorder %v129, %v1412
    %vm1471 = vcmp.eq.s32.totalorder %v130, %v1412
    %vm1472 = vcmp.eq.s32.totalorder %v131, %v1412
    %vm1473 = vcmp.eq.s32.totalorder %v132, %v1412
    %vm1474 = vcmp.eq.s32.totalorder %v133, %v1412
    %vm1475 = vcmp.eq.s32.totalorder %v134, %v1412
    %vm1476 = vcmp.eq.s32.totalorder %v135, %v1412
    %v1478 = vlaneseq
    %v1479 = vshrl.u32 %v1478, 7
    %v1480 = vsub.s32 0, %v1479
    %v1481 = vrot.slane %v1266, %v1480
    %v1483 = vsel %vm1413, %v1481, 0.0
    %v1484 = vsel %vm1414, %v1481, 0.0
    %v1485 = vsel %vm1415, %v1481, 0.0
    %v1486 = vsel %vm1416, %v1481, 0.0
    %v1487 = vsel %vm1417, %v1481, 0.0
    %v1488 = vsel %vm1418, %v1481, 0.0
    %v1489 = vsel %vm1419, %v1481, 0.0
    %v1490 = vsel %vm1420, %v1481, 0.0
    %v1491 = vsel %vm1421, %v1481, 0.0
    %v1492 = vsel %vm1422, %v1481, 0.0
    %v1493 = vsel %vm1423, %v1481, 0.0
    %v1494 = vsel %vm1424, %v1481, 0.0
    %v1495 = vsel %vm1425, %v1481, 0.0
    %v1496 = vsel %vm1426, %v1481, 0.0
    %v1497 = vsel %vm1427, %v1481, 0.0
    %v1498 = vsel %vm1428, %v1481, 0.0
    %v1499 = vsel %vm1429, %v1481, 0.0
    %v1500 = vsel %vm1430, %v1481, 0.0
    %v1501 = vsel %vm1431, %v1481, 0.0
    %v1502 = vsel %vm1432, %v1481, 0.0
    %v1503 = vsel %vm1433, %v1481, 0.0
    %v1504 = vsel %vm1434, %v1481, 0.0
    %v1505 = vsel %vm1435, %v1481, 0.0
    %v1506 = vsel %vm1436, %v1481, 0.0
    %v1507 = vsel %vm1437, %v1481, 0.0
    %v1508 = vsel %vm1438, %v1481, 0.0
    %v1509 = vsel %vm1439, %v1481, 0.0
    %v1510 = vsel %vm1440, %v1481, 0.0
    %v1511 = vsel %vm1441, %v1481, 0.0
    %v1512 = vsel %vm1442, %v1481, 0.0
    %v1513 = vsel %vm1443, %v1481, 0.0
    %v1514 = vsel %vm1444, %v1481, 0.0
    %v1515 = vsel %vm1445, %v1481, 0.0
    %v1516 = vsel %vm1446, %v1481, 0.0
    %v1517 = vsel %vm1447, %v1481, 0.0
    %v1518 = vsel %vm1448, %v1481, 0.0
    %v1519 = vsel %vm1449, %v1481, 0.0
    %v1520 = vsel %vm1450, %v1481, 0.0
    %v1521 = vsel %vm1451, %v1481, 0.0
    %v1522 = vsel %vm1452, %v1481, 0.0
    %v1523 = vsel %vm1453, %v1481, 0.0
    %v1524 = vsel %vm1454, %v1481, 0.0
    %v1525 = vsel %vm1455, %v1481, 0.0
    %v1526 = vsel %vm1456, %v1481, 0.0
    %v1527 = vsel %vm1457, %v1481, 0.0
    %v1528 = vsel %vm1458, %v1481, 0.0
    %v1529 = vsel %vm1459, %v1481, 0.0
    %v1530 = vsel %vm1460, %v1481, 0.0
    %v1531 = vsel %vm1461, %v1481, 0.0
    %v1532 = vsel %vm1462, %v1481, 0.0
    %v1533 = vsel %vm1463, %v1481, 0.0
    %v1534 = vsel %vm1464, %v1481, 0.0
    %v1535 = vsel %vm1465, %v1481, 0.0
    %v1536 = vsel %vm1466, %v1481, 0.0
    %v1537 = vsel %vm1467, %v1481, 0.0
    %v1538 = vsel %vm1468, %v1481, 0.0
    %v1539 = vsel %vm1469, %v1481, 0.0
    %v1540 = vsel %vm1470, %v1481, 0.0
    %v1541 = vsel %vm1471, %v1481, 0.0
    %v1542 = vsel %vm1472, %v1481, 0.0
    %v1543 = vsel %vm1473, %v1481, 0.0
    %v1544 = vsel %vm1474, %v1481, 0.0
    %v1545 = vsel %vm1475, %v1481, 0.0
    %v1546 = vsel %vm1476, %v1481, 0.0
    %v1547 = vadd.f32 %v1345, %v1483
    %v1548 = vadd.f32 %v1346, %v1484
    %v1549 = vadd.f32 %v1347, %v1485
    %v1550 = vadd.f32 %v1348, %v1486
    %v1551 = vadd.f32 %v1349, %v1487
    %v1552 = vadd.f32 %v1350, %v1488
    %v1553 = vadd.f32 %v1351, %v1489
    %v1554 = vadd.f32 %v1352, %v1490
    %v1555 = vadd.f32 %v1353, %v1491
    %v1556 = vadd.f32 %v1354, %v1492
    %v1557 = vadd.f32 %v1355, %v1493
    %v1558 = vadd.f32 %v1356, %v1494
    %v1559 = vadd.f32 %v1357, %v1495
    %v1560 = vadd.f32 %v1358, %v1496
    %v1561 = vadd.f32 %v1359, %v1497
    %v1562 = vadd.f32 %v1360, %v1498
    %v1563 = vadd.f32 %v1361, %v1499
    %v1564 = vadd.f32 %v1362, %v1500
    %v1565 = vadd.f32 %v1363, %v1501
    %v1566 = vadd.f32 %v1364, %v1502
    %v1567 = vadd.f32 %v1365, %v1503
    %v1568 = vadd.f32 %v1366, %v1504
    %v1569 = vadd.f32 %v1367, %v1505
    %v1570 = vadd.f32 %v1368, %v1506
    %v1571 = vadd.f32 %v1369, %v1507
    %v1572 = vadd.f32 %v1370, %v1508
    %v1573 = vadd.f32 %v1371, %v1509
    %v1574 = vadd.f32 %v1372, %v1510
    %v1575 = vadd.f32 %v1373, %v1511
    %v1576 = vadd.f32 %v1374, %v1512
    %v1577 = vadd.f32 %v1375, %v1513
    %v1578 = vadd.f32 %v1376, %v1514
    %v1579 = vadd.f32 %v1377, %v1515
    %v1580 = vadd.f32 %v1378, %v1516
    %v1581 = vadd.f32 %v1379, %v1517
    %v1582 = vadd.f32 %v1380, %v1518
    %v1583 = vadd.f32 %v1381, %v1519
    %v1584 = vadd.f32 %v1382, %v1520
    %v1585 = vadd.f32 %v1383, %v1521
    %v1586 = vadd.f32 %v1384, %v1522
    %v1587 = vadd.f32 %v1385, %v1523
    %v1588 = vadd.f32 %v1386, %v1524
    %v1589 = vadd.f32 %v1387, %v1525
    %v1590 = vadd.f32 %v1388, %v1526
    %v1591 = vadd.f32 %v1389, %v1527
    %v1592 = vadd.f32 %v1390, %v1528
    %v1593 = vadd.f32 %v1391, %v1529
    %v1594 = vadd.f32 %v1392, %v1530
    %v1595 = vadd.f32 %v1393, %v1531
    %v1596 = vadd.f32 %v1394, %v1532
    %v1597 = vadd.f32 %v1395, %v1533
    %v1598 = vadd.f32 %v1396, %v1534
    %v1599 = vadd.f32 %v1397, %v1535
    %v1600 = vadd.f32 %v1398, %v1536
    %v1601 = vadd.f32 %v1399, %v1537
    %v1602 = vadd.f32 %v1400, %v1538
    %v1603 = vadd.f32 %v1401, %v1539
    %v1604 = vadd.f32 %v1402, %v1540
    %v1605 = vadd.f32 %v1403, %v1541
    %v1606 = vadd.f32 %v1404, %v1542
    %v1607 = vadd.f32 %v1405, %v1543
    %v1608 = vadd.f32 %v1406, %v1544
    %v1609 = vadd.f32 %v1407, %v1545
    %v1610 = vadd.f32 %v1408, %v1546
    %v1611 = vlaneseq
    %v1612 = vshrl.u32 %v1611, 7
    %v1613 = vsub.s32 0, %v1612
    %v1614 = vrot.slane %v1261, %v1613
    %vm1615 = vcmp.eq.s32.totalorder %v72, %v1614
    %vm1616 = vcmp.eq.s32.totalorder %v73, %v1614
    %vm1617 = vcmp.eq.s32.totalorder %v74, %v1614
    %vm1618 = vcmp.eq.s32.totalorder %v75, %v1614
    %vm1619 = vcmp.eq.s32.totalorder %v76, %v1614
    %vm1620 = vcmp.eq.s32.totalorder %v77, %v1614
    %vm1621 = vcmp.eq.s32.totalorder %v78, %v1614
    %vm1622 = vcmp.eq.s32.totalorder %v79, %v1614
    %vm1623 = vcmp.eq.s32.totalorder %v80, %v1614
    %vm1624 = vcmp.eq.s32.totalorder %v81, %v1614
    %vm1625 = vcmp.eq.s32.totalorder %v82, %v1614
    %vm1626 = vcmp.eq.s32.totalorder %v83, %v1614
    %vm1627 = vcmp.eq.s32.totalorder %v84, %v1614
    %vm1628 = vcmp.eq.s32.totalorder %v85, %v1614
    %vm1629 = vcmp.eq.s32.totalorder %v86, %v1614
    %vm1630 = vcmp.eq.s32.totalorder %v87, %v1614
    %vm1631 = vcmp.eq.s32.totalorder %v88, %v1614
    %vm1632 = vcmp.eq.s32.totalorder %v89, %v1614
    %vm1633 = vcmp.eq.s32.totalorder %v90, %v1614
    %vm1634 = vcmp.eq.s32.totalorder %v91, %v1614
    %vm1635 = vcmp.eq.s32.totalorder %v92, %v1614
    %vm1636 = vcmp.eq.s32.totalorder %v93, %v1614
    %vm1637 = vcmp.eq.s32.totalorder %v94, %v1614
    %vm1638 = vcmp.eq.s32.totalorder %v95, %v1614
    %vm1639 = vcmp.eq.s32.totalorder %v96, %v1614
    %vm1640 = vcmp.eq.s32.totalorder %v97, %v1614
    %vm1641 = vcmp.eq.s32.totalorder %v98, %v1614
    %vm1642 = vcmp.eq.s32.totalorder %v99, %v1614
    %vm1643 = vcmp.eq.s32.totalorder %v100, %v1614
    %vm1644 = vcmp.eq.s32.totalorder %v101, %v1614
    %vm1645 = vcmp.eq.s32.totalorder %v102, %v1614
    %vm1646 = vcmp.eq.s32.totalorder %v103, %v1614
    %vm1647 = vcmp.eq.s32.totalorder %v104, %v1614
    %vm1648 = vcmp.eq.s32.totalorder %v105, %v1614
    %vm1649 = vcmp.eq.s32.totalorder %v106, %v1614
    %vm1650 = vcmp.eq.s32.totalorder %v107, %v1614
    %vm1651 = vcmp.eq.s32.totalorder %v108, %v1614
    %vm1652 = vcmp.eq.s32.totalorder %v109, %v1614
    %vm1653 = vcmp.eq.s32.totalorder %v110, %v1614
    %vm1654 = vcmp.eq.s32.totalorder %v111, %v1614
    %vm1655 = vcmp.eq.s32.totalorder %v112, %v1614
    %vm1656 = vcmp.eq.s32.totalorder %v113, %v1614
    %vm1657 = vcmp.eq.s32.totalorder %v114, %v1614
    %vm1658 = vcmp.eq.s32.totalorder %v115, %v1614
    %vm1659 = vcmp.eq.s32.totalorder %v116, %v1614
    %vm1660 = vcmp.eq.s32.totalorder %v117, %v1614
    %vm1661 = vcmp.eq.s32.totalorder %v118, %v1614
    %vm1662 = vcmp.eq.s32.totalorder %v119, %v1614
    %vm1663 = vcmp.eq.s32.totalorder %v120, %v1614
    %vm1664 = vcmp.eq.s32.totalorder %v121, %v1614
    %vm1665 = vcmp.eq.s32.totalorder %v122, %v1614
    %vm1666 = vcmp.eq.s32.totalorder %v123, %v1614
    %vm1667 = vcmp.eq.s32.totalorder %v124, %v1614
    %vm1668 = vcmp.eq.s32.totalorder %v125, %v1614
    %vm1669 = vcmp.eq.s32.totalorder %v126, %v1614
    %vm1670 = vcmp.eq.s32.totalorder %v127, %v1614
    %vm1671 = vcmp.eq.s32.totalorder %v128, %v1614
    %vm1672 = vcmp.eq.s32.totalorder %v129, %v1614
    %vm1673 = vcmp.eq.s32.totalorder %v130, %v1614
    %vm1674 = vcmp.eq.s32.totalorder %v131, %v1614
    %vm1675 = vcmp.eq.s32.totalorder %v132, %v1614
    %vm1676 = vcmp.eq.s32.totalorder %v133, %v1614
    %vm1677 = vcmp.eq.s32.totalorder %v134, %v1614
    %vm1678 = vcmp.eq.s32.totalorder %v135, %v1614
    %v1680 = vlaneseq
    %v1681 = vshrl.u32 %v1680, 7
    %v1682 = vsub.s32 0, %v1681
    %v1683 = vrot.slane %v1268, %v1682
    %v1685 = vsel %vm1615, %v1683, 0.0
    %v1686 = vsel %vm1616, %v1683, 0.0
    %v1687 = vsel %vm1617, %v1683, 0.0
    %v1688 = vsel %vm1618, %v1683, 0.0
    %v1689 = vsel %vm1619, %v1683, 0.0
    %v1690 = vsel %vm1620, %v1683, 0.0
    %v1691 = vsel %vm1621, %v1683, 0.0
    %v1692 = vsel %vm1622, %v1683, 0.0
    %v1693 = vsel %vm1623, %v1683, 0.0
    %v1694 = vsel %vm1624, %v1683, 0.0
    %v1695 = vsel %vm1625, %v1683, 0.0
    %v1696 = vsel %vm1626, %v1683, 0.0
    %v1697 = vsel %vm1627, %v1683, 0.0
    %v1698 = vsel %vm1628, %v1683, 0.0
    %v1699 = vsel %vm1629, %v1683, 0.0
    %v1700 = vsel %vm1630, %v1683, 0.0
    %v1701 = vsel %vm1631, %v1683, 0.0
    %v1702 = vsel %vm1632, %v1683, 0.0
    %v1703 = vsel %vm1633, %v1683, 0.0
    %v1704 = vsel %vm1634, %v1683, 0.0
    %v1705 = vsel %vm1635, %v1683, 0.0
    %v1706 = vsel %vm1636, %v1683, 0.0
    %v1707 = vsel %vm1637, %v1683, 0.0
    %v1708 = vsel %vm1638, %v1683, 0.0
    %v1709 = vsel %vm1639, %v1683, 0.0
    %v1710 = vsel %vm1640, %v1683, 0.0
    %v1711 = vsel %vm1641, %v1683, 0.0
    %v1712 = vsel %vm1642, %v1683, 0.0
    %v1713 = vsel %vm1643, %v1683, 0.0
    %v1714 = vsel %vm1644, %v1683, 0.0
    %v1715 = vsel %vm1645, %v1683, 0.0
    %v1716 = vsel %vm1646, %v1683, 0.0
    %v1717 = vsel %vm1647, %v1683, 0.0
    %v1718 = vsel %vm1648, %v1683, 0.0
    %v1719 = vsel %vm1649, %v1683, 0.0
    %v1720 = vsel %vm1650, %v1683, 0.0
    %v1721 = vsel %vm1651, %v1683, 0.0
    %v1722 = vsel %vm1652, %v1683, 0.0
    %v1723 = vsel %vm1653, %v1683, 0.0
    %v1724 = vsel %vm1654, %v1683, 0.0
    %v1725 = vsel %vm1655, %v1683, 0.0
    %v1726 = vsel %vm1656, %v1683, 0.0
    %v1727 = vsel %vm1657, %v1683, 0.0
    %v1728 = vsel %vm1658, %v1683, 0.0
    %v1729 = vsel %vm1659, %v1683, 0.0
    %v1730 = vsel %vm1660, %v1683, 0.0
    %v1731 = vsel %vm1661, %v1683, 0.0
    %v1732 = vsel %vm1662, %v1683, 0.0
    %v1733 = vsel %vm1663, %v1683, 0.0
    %v1734 = vsel %vm1664, %v1683, 0.0
    %v1735 = vsel %vm1665, %v1683, 0.0
    %v1736 = vsel %vm1666, %v1683, 0.0
    %v1737 = vsel %vm1667, %v1683, 0.0
    %v1738 = vsel %vm1668, %v1683, 0.0
    %v1739 = vsel %vm1669, %v1683, 0.0
    %v1740 = vsel %vm1670, %v1683, 0.0
    %v1741 = vsel %vm1671, %v1683, 0.0
    %v1742 = vsel %vm1672, %v1683, 0.0
    %v1743 = vsel %vm1673, %v1683, 0.0
    %v1744 = vsel %vm1674, %v1683, 0.0
    %v1745 = vsel %vm1675, %v1683, 0.0
    %v1746 = vsel %vm1676, %v1683, 0.0
    %v1747 = vsel %vm1677, %v1683, 0.0
    %v1748 = vsel %vm1678, %v1683, 0.0
    %v1749 = vadd.f32 %v1547, %v1685
    %v1750 = vadd.f32 %v1548, %v1686
    %v1751 = vadd.f32 %v1549, %v1687
    %v1752 = vadd.f32 %v1550, %v1688
    %v1753 = vadd.f32 %v1551, %v1689
    %v1754 = vadd.f32 %v1552, %v1690
    %v1755 = vadd.f32 %v1553, %v1691
    %v1756 = vadd.f32 %v1554, %v1692
    %v1757 = vadd.f32 %v1555, %v1693
    %v1758 = vadd.f32 %v1556, %v1694
    %v1759 = vadd.f32 %v1557, %v1695
    %v1760 = vadd.f32 %v1558, %v1696
    %v1761 = vadd.f32 %v1559, %v1697
    %v1762 = vadd.f32 %v1560, %v1698
    %v1763 = vadd.f32 %v1561, %v1699
    %v1764 = vadd.f32 %v1562, %v1700
    %v1765 = vadd.f32 %v1563, %v1701
    %v1766 = vadd.f32 %v1564, %v1702
    %v1767 = vadd.f32 %v1565, %v1703
    %v1768 = vadd.f32 %v1566, %v1704
    %v1769 = vadd.f32 %v1567, %v1705
    %v1770 = vadd.f32 %v1568, %v1706
    %v1771 = vadd.f32 %v1569, %v1707
    %v1772 = vadd.f32 %v1570, %v1708
    %v1773 = vadd.f32 %v1571, %v1709
    %v1774 = vadd.f32 %v1572, %v1710
    %v1775 = vadd.f32 %v1573, %v1711
    %v1776 = vadd.f32 %v1574, %v1712
    %v1777 = vadd.f32 %v1575, %v1713
    %v1778 = vadd.f32 %v1576, %v1714
    %v1779 = vadd.f32 %v1577, %v1715
    %v1780 = vadd.f32 %v1578, %v1716
    %v1781 = vadd.f32 %v1579, %v1717
    %v1782 = vadd.f32 %v1580, %v1718
    %v1783 = vadd.f32 %v1581, %v1719
    %v1784 = vadd.f32 %v1582, %v1720
    %v1785 = vadd.f32 %v1583, %v1721
    %v1786 = vadd.f32 %v1584, %v1722
    %v1787 = vadd.f32 %v1585, %v1723
    %v1788 = vadd.f32 %v1586, %v1724
    %v1789 = vadd.f32 %v1587, %v1725
    %v1790 = vadd.f32 %v1588, %v1726
    %v1791 = vadd.f32 %v1589, %v1727
    %v1792 = vadd.f32 %v1590, %v1728
    %v1793 = vadd.f32 %v1591, %v1729
    %v1794 = vadd.f32 %v1592, %v1730
    %v1795 = vadd.f32 %v1593, %v1731
    %v1796 = vadd.f32 %v1594, %v1732
    %v1797 = vadd.f32 %v1595, %v1733
    %v1798 = vadd.f32 %v1596, %v1734
    %v1799 = vadd.f32 %v1597, %v1735
    %v1800 = vadd.f32 %v1598, %v1736
    %v1801 = vadd.f32 %v1599, %v1737
    %v1802 = vadd.f32 %v1600, %v1738
    %v1803 = vadd.f32 %v1601, %v1739
    %v1804 = vadd.f32 %v1602, %v1740
    %v1805 = vadd.f32 %v1603, %v1741
    %v1806 = vadd.f32 %v1604, %v1742
    %v1807 = vadd.f32 %v1605, %v1743
    %v1808 = vadd.f32 %v1606, %v1744
    %v1809 = vadd.f32 %v1607, %v1745
    %v1810 = vadd.f32 %v1608, %v1746
    %v1811 = vadd.f32 %v1609, %v1747
    %v1812 = vadd.f32 %v1610, %v1748
    %v1813 = vlaneseq
    %v1814 = vshrl.u32 %v1813, 7
    %v1815 = vsub.s32 0, %v1814
    %v1816 = vrot.slane %v1262, %v1815
    %vm1817 = vcmp.eq.s32.totalorder %v72, %v1816
    %vm1818 = vcmp.eq.s32.totalorder %v73, %v1816
    %vm1819 = vcmp.eq.s32.totalorder %v74, %v1816
    %vm1820 = vcmp.eq.s32.totalorder %v75, %v1816
    %vm1821 = vcmp.eq.s32.totalorder %v76, %v1816
    %vm1822 = vcmp.eq.s32.totalorder %v77, %v1816
    %vm1823 = vcmp.eq.s32.totalorder %v78, %v1816
    %vm1824 = vcmp.eq.s32.totalorder %v79, %v1816
    %vm1825 = vcmp.eq.s32.totalorder %v80, %v1816
    %vm1826 = vcmp.eq.s32.totalorder %v81, %v1816
    %vm1827 = vcmp.eq.s32.totalorder %v82, %v1816
    %vm1828 = vcmp.eq.s32.totalorder %v83, %v1816
    %vm1829 = vcmp.eq.s32.totalorder %v84, %v1816
    %vm1830 = vcmp.eq.s32.totalorder %v85, %v1816
    %vm1831 = vcmp.eq.s32.totalorder %v86, %v1816
    %vm1832 = vcmp.eq.s32.totalorder %v87, %v1816
    %vm1833 = vcmp.eq.s32.totalorder %v88, %v1816
    %vm1834 = vcmp.eq.s32.totalorder %v89, %v1816
    %vm1835 = vcmp.eq.s32.totalorder %v90, %v1816
    %vm1836 = vcmp.eq.s32.totalorder %v91, %v1816
    %vm1837 = vcmp.eq.s32.totalorder %v92, %v1816
    %vm1838 = vcmp.eq.s32.totalorder %v93, %v1816
    %vm1839 = vcmp.eq.s32.totalorder %v94, %v1816
    %vm1840 = vcmp.eq.s32.totalorder %v95, %v1816
    %vm1841 = vcmp.eq.s32.totalorder %v96, %v1816
    %vm1842 = vcmp.eq.s32.totalorder %v97, %v1816
    %vm1843 = vcmp.eq.s32.totalorder %v98, %v1816
    %vm1844 = vcmp.eq.s32.totalorder %v99, %v1816
    %vm1845 = vcmp.eq.s32.totalorder %v100, %v1816
    %vm1846 = vcmp.eq.s32.totalorder %v101, %v1816
    %vm1847 = vcmp.eq.s32.totalorder %v102, %v1816
    %vm1848 = vcmp.eq.s32.totalorder %v103, %v1816
    %vm1849 = vcmp.eq.s32.totalorder %v104, %v1816
    %vm1850 = vcmp.eq.s32.totalorder %v105, %v1816
    %vm1851 = vcmp.eq.s32.totalorder %v106, %v1816
    %vm1852 = vcmp.eq.s32.totalorder %v107, %v1816
    %vm1853 = vcmp.eq.s32.totalorder %v108, %v1816
    %vm1854 = vcmp.eq.s32.totalorder %v109, %v1816
    %vm1855 = vcmp.eq.s32.totalorder %v110, %v1816
    %vm1856 = vcmp.eq.s32.totalorder %v111, %v1816
    %vm1857 = vcmp.eq.s32.totalorder %v112, %v1816
    %vm1858 = vcmp.eq.s32.totalorder %v113, %v1816
    %vm1859 = vcmp.eq.s32.totalorder %v114, %v1816
    %vm1860 = vcmp.eq.s32.totalorder %v115, %v1816
    %vm1861 = vcmp.eq.s32.totalorder %v116, %v1816
    %vm1862 = vcmp.eq.s32.totalorder %v117, %v1816
    %vm1863 = vcmp.eq.s32.totalorder %v118, %v1816
    %vm1864 = vcmp.eq.s32.totalorder %v119, %v1816
    %vm1865 = vcmp.eq.s32.totalorder %v120, %v1816
    %vm1866 = vcmp.eq.s32.totalorder %v121, %v1816
    %vm1867 = vcmp.eq.s32.totalorder %v122, %v1816
    %vm1868 = vcmp.eq.s32.totalorder %v123, %v1816
    %vm1869 = vcmp.eq.s32.totalorder %v124, %v1816
    %vm1870 = vcmp.eq.s32.totalorder %v125, %v1816
    %vm1871 = vcmp.eq.s32.totalorder %v126, %v1816
    %vm1872 = vcmp.eq.s32.totalorder %v127, %v1816
    %vm1873 = vcmp.eq.s32.totalorder %v128, %v1816
    %vm1874 = vcmp.eq.s32.totalorder %v129, %v1816
    %vm1875 = vcmp.eq.s32.totalorder %v130, %v1816
    %vm1876 = vcmp.eq.s32.totalorder %v131, %v1816
    %vm1877 = vcmp.eq.s32.totalorder %v132, %v1816
    %vm1878 = vcmp.eq.s32.totalorder %v133, %v1816
    %vm1879 = vcmp.eq.s32.totalorder %v134, %v1816
    %vm1880 = vcmp.eq.s32.totalorder %v135, %v1816
    %v1882 = vlaneseq
    %v1883 = vshrl.u32 %v1882, 7
    %v1884 = vsub.s32 0, %v1883
    %v1885 = vrot.slane %v1270, %v1884
    %v1887 = vsel %vm1817, %v1885, 0.0
    %v1888 = vsel %vm1818, %v1885, 0.0
    %v1889 = vsel %vm1819, %v1885, 0.0
    %v1890 = vsel %vm1820, %v1885, 0.0
    %v1891 = vsel %vm1821, %v1885, 0.0
    %v1892 = vsel %vm1822, %v1885, 0.0
    %v1893 = vsel %vm1823, %v1885, 0.0
    %v1894 = vsel %vm1824, %v1885, 0.0
    %v1895 = vsel %vm1825, %v1885, 0.0
    %v1896 = vsel %vm1826, %v1885, 0.0
    %v1897 = vsel %vm1827, %v1885, 0.0
    %v1898 = vsel %vm1828, %v1885, 0.0
    %v1899 = vsel %vm1829, %v1885, 0.0
    %v1900 = vsel %vm1830, %v1885, 0.0
    %v1901 = vsel %vm1831, %v1885, 0.0
    %v1902 = vsel %vm1832, %v1885, 0.0
    %v1903 = vsel %vm1833, %v1885, 0.0
    %v1904 = vsel %vm1834, %v1885, 0.0
    %v1905 = vsel %vm1835, %v1885, 0.0
    %v1906 = vsel %vm1836, %v1885, 0.0
    %v1907 = vsel %vm1837, %v1885, 0.0
    %v1908 = vsel %vm1838, %v1885, 0.0
    %v1909 = vsel %vm1839, %v1885, 0.0
    %v1910 = vsel %vm1840, %v1885, 0.0
    %v1911 = vsel %vm1841, %v1885, 0.0
    %v1912 = vsel %vm1842, %v1885, 0.0
    %v1913 = vsel %vm1843, %v1885, 0.0
    %v1914 = vsel %vm1844, %v1885, 0.0
    %v1915 = vsel %vm1845, %v1885, 0.0
    %v1916 = vsel %vm1846, %v1885, 0.0
    %v1917 = vsel %vm1847, %v1885, 0.0
    %v1918 = vsel %vm1848, %v1885, 0.0
    %v1919 = vsel %vm1849, %v1885, 0.0
    %v1920 = vsel %vm1850, %v1885, 0.0
    %v1921 = vsel %vm1851, %v1885, 0.0
    %v1922 = vsel %vm1852, %v1885, 0.0
    %v1923 = vsel %vm1853, %v1885, 0.0
    %v1924 = vsel %vm1854, %v1885, 0.0
    %v1925 = vsel %vm1855, %v1885, 0.0
    %v1926 = vsel %vm1856, %v1885, 0.0
    %v1927 = vsel %vm1857, %v1885, 0.0
    %v1928 = vsel %vm1858, %v1885, 0.0
    %v1929 = vsel %vm1859, %v1885, 0.0
    %v1930 = vsel %vm1860, %v1885, 0.0
    %v1931 = vsel %vm1861, %v1885, 0.0
    %v1932 = vsel %vm1862, %v1885, 0.0
    %v1933 = vsel %vm1863, %v1885, 0.0
    %v1934 = vsel %vm1864, %v1885, 0.0
    %v1935 = vsel %vm1865, %v1885, 0.0
    %v1936 = vsel %vm1866, %v1885, 0.0
    %v1937 = vsel %vm1867, %v1885, 0.0
    %v1938 = vsel %vm1868, %v1885, 0.0
    %v1939 = vsel %vm1869, %v1885, 0.0
    %v1940 = vsel %vm1870, %v1885, 0.0
    %v1941 = vsel %vm1871, %v1885, 0.0
    %v1942 = vsel %vm1872, %v1885, 0.0
    %v1943 = vsel %vm1873, %v1885, 0.0
    %v1944 = vsel %vm1874, %v1885, 0.0
    %v1945 = vsel %vm1875, %v1885, 0.0
    %v1946 = vsel %vm1876, %v1885, 0.0
    %v1947 = vsel %vm1877, %v1885, 0.0
    %v1948 = vsel %vm1878, %v1885, 0.0
    %v1949 = vsel %vm1879, %v1885, 0.0
    %v1950 = vsel %vm1880, %v1885, 0.0
    %v1951 = vadd.f32 %v1749, %v1887
    %v1952 = vadd.f32 %v1750, %v1888
    %v1953 = vadd.f32 %v1751, %v1889
    %v1954 = vadd.f32 %v1752, %v1890
    %v1955 = vadd.f32 %v1753, %v1891
    %v1956 = vadd.f32 %v1754, %v1892
    %v1957 = vadd.f32 %v1755, %v1893
    %v1958 = vadd.f32 %v1756, %v1894
    %v1959 = vadd.f32 %v1757, %v1895
    %v1960 = vadd.f32 %v1758, %v1896
    %v1961 = vadd.f32 %v1759, %v1897
    %v1962 = vadd.f32 %v1760, %v1898
    %v1963 = vadd.f32 %v1761, %v1899
    %v1964 = vadd.f32 %v1762, %v1900
    %v1965 = vadd.f32 %v1763, %v1901
    %v1966 = vadd.f32 %v1764, %v1902
    %v1967 = vadd.f32 %v1765, %v1903
    %v1968 = vadd.f32 %v1766, %v1904
    %v1969 = vadd.f32 %v1767, %v1905
    %v1970 = vadd.f32 %v1768, %v1906
    %v1971 = vadd.f32 %v1769, %v1907
    %v1972 = vadd.f32 %v1770, %v1908
    %v1973 = vadd.f32 %v1771, %v1909
    %v1974 = vadd.f32 %v1772, %v1910
    %v1975 = vadd.f32 %v1773, %v1911
    %v1976 = vadd.f32 %v1774, %v1912
    %v1977 = vadd.f32 %v1775, %v1913
    %v1978 = vadd.f32 %v1776, %v1914
    %v1979 = vadd.f32 %v1777, %v1915
    %v1980 = vadd.f32 %v1778, %v1916
    %v1981 = vadd.f32 %v1779, %v1917
    %v1982 = vadd.f32 %v1780, %v1918
    %v1983 = vadd.f32 %v1781, %v1919
    %v1984 = vadd.f32 %v1782, %v1920
    %v1985 = vadd.f32 %v1783, %v1921
    %v1986 = vadd.f32 %v1784, %v1922
    %v1987 = vadd.f32 %v1785, %v1923
    %v1988 = vadd.f32 %v1786, %v1924
    %v1989 = vadd.f32 %v1787, %v1925
    %v1990 = vadd.f32 %v1788, %v1926
    %v1991 = vadd.f32 %v1789, %v1927
    %v1992 = vadd.f32 %v1790, %v1928
    %v1993 = vadd.f32 %v1791, %v1929
    %v1994 = vadd.f32 %v1792, %v1930
    %v1995 = vadd.f32 %v1793, %v1931
    %v1996 = vadd.f32 %v1794, %v1932
    %v1997 = vadd.f32 %v1795, %v1933
    %v1998 = vadd.f32 %v1796, %v1934
    %v1999 = vadd.f32 %v1797, %v1935
    %v2000 = vadd.f32 %v1798, %v1936
    %v2001 = vadd.f32 %v1799, %v1937
    %v2002 = vadd.f32 %v1800, %v1938
    %v2003 = vadd.f32 %v1801, %v1939
    %v2004 = vadd.f32 %v1802, %v1940
    %v2005 = vadd.f32 %v1803, %v1941
    %v2006 = vadd.f32 %v1804, %v1942
    %v2007 = vadd.f32 %v1805, %v1943
    %v2008 = vadd.f32 %v1806, %v1944
    %v2009 = vadd.f32 %v1807, %v1945
    %v2010 = vadd.f32 %v1808, %v1946
    %v2011 = vadd.f32 %v1809, %v1947
    %v2012 = vadd.f32 %v1810, %v1948
    %v2013 = vadd.f32 %v1811, %v1949
    %v2014 = vadd.f32 %v1812, %v1950
    %s2015 = scalar_lea.vmem [#allocation6], 320
    %v2016 = vld [vmem:[%s2015] sm:$0xff]
    %v2017 = vld [vmem:[%s2015 + $0x8] sm:$0xff]
    %v2018 = vld [vmem:[%s2015 + $0x10] sm:$0xff]
    %v2019 = vld [vmem:[%s2015 + $0x18] sm:$0xff]
    %v2020 = vld [vmem:[%s2015 + $0x20] sm:$0xff]
    %v2021 = vld [vmem:[%s2015 + $0x28] sm:$0xff]
    %v2022 = vld [vmem:[%s2015 + $0x30] sm:$0xff]
    %v2023 = vld [vmem:[%s2015 + $0x38] sm:$0xff]
    %v2024 = vld [vmem:[%s2015 + $0x40] sm:$0xff]
    %v2025 = vld [vmem:[%s2015 + $0x48] sm:$0xff]
    %v2026 = vld [vmem:[%s2015 + $0x50] sm:$0xff]
    %v2027 = vld [vmem:[%s2015 + $0x58] sm:$0xff]
    %v2028 = vld [vmem:[%s2015 + $0x60] sm:$0xff]
    %v2029 = vld [vmem:[%s2015 + $0x68] sm:$0xff]
    %v2030 = vld [vmem:[%s2015 + $0x70] sm:$0xff]
    %v2031 = vld [vmem:[%s2015 + $0x78] sm:$0xff]
    %v2032 = vld [vmem:[%s2015 + $0x80] sm:$0xff]
    %v2033 = vld [vmem:[%s2015 + $0x88] sm:$0xff]
    %v2034 = vld [vmem:[%s2015 + $0x90] sm:$0xff]
    %v2035 = vld [vmem:[%s2015 + $0x98] sm:$0xff]
    %v2036 = vld [vmem:[%s2015 + $0xa0] sm:$0xff]
    %v2037 = vld [vmem:[%s2015 + $0xa8] sm:$0xff]
    %v2038 = vld [vmem:[%s2015 + $0xb0] sm:$0xff]
    %v2039 = vld [vmem:[%s2015 + $0xb8] sm:$0xff]
    %v2040 = vld [vmem:[%s2015 + $0xc0] sm:$0xff]
    %v2041 = vld [vmem:[%s2015 + $0xc8] sm:$0xff]
    %v2042 = vld [vmem:[%s2015 + $0xd0] sm:$0xff]
    %v2043 = vld [vmem:[%s2015 + $0xd8] sm:$0xff]
    %v2044 = vld [vmem:[%s2015 + $0xe0] sm:$0xff]
    %v2045 = vld [vmem:[%s2015 + $0xe8] sm:$0xff]
    %v2046 = vld [vmem:[%s2015 + $0xf0] sm:$0xff]
    %v2047 = vld [vmem:[%s2015 + $0xf8] sm:$0xff]
    %v2048 = vld [vmem:[%s2015 + $0x100] sm:$0xff]
    %v2049 = vld [vmem:[%s2015 + $0x108] sm:$0xff]
    %v2050 = vld [vmem:[%s2015 + $0x110] sm:$0xff]
    %v2051 = vld [vmem:[%s2015 + $0x118] sm:$0xff]
    %v2052 = vld [vmem:[%s2015 + $0x120] sm:$0xff]
    %v2053 = vld [vmem:[%s2015 + $0x128] sm:$0xff]
    %v2054 = vld [vmem:[%s2015 + $0x130] sm:$0xff]
    %v2055 = vld [vmem:[%s2015 + $0x138] sm:$0xff]
    %2056 = vmatprep.subr.mxu0 0.0
    %2057 = vmatpush1.msra.mxu0 %v1951
    %2058 = vmatprep.subr.mxu0 0.0
    %2059 = vmatpush1.msra.mxu0 %v1952
    %2060 = vmatprep.subr.mxu0 0.0
    %2061 = vmatpush1.msra.mxu0 %v1953
    %2062 = vmatprep.subr.mxu0 0.0
    %2063 = vmatpush1.msra.mxu0 %v1954
    %2064 = vmatprep.subr.mxu0 0.0
    %2065 = vmatpush1.msra.mxu0 %v1955
    %2066 = vmatprep.subr.mxu0 0.0
    %2067 = vmatpush1.msra.mxu0 %v1956
    %2068 = vmatprep.subr.mxu0 0.0
    %2069 = vmatpush1.msra.mxu0 %v1957
    %2070 = vmatprep.subr.mxu0 0.0
    %2071 = vmatpush1.msra.mxu0 %v1958
    %2072 = vmatprep.subr.mxu0 0.0
    %2073 = vmatpush1.msra.mxu0 %v1959
    %2074 = vmatprep.subr.mxu0 0.0
    %2075 = vmatpush1.msra.mxu0 %v1960
    %2076 = vmatprep.subr.mxu0 0.0
    %2077 = vmatpush1.msra.mxu0 %v1961
    %2078 = vmatprep.subr.mxu0 0.0
    %2079 = vmatpush1.msra.mxu0 %v1962
    %2080 = vmatprep.subr.mxu0 0.0
    %2081 = vmatpush1.msra.mxu0 %v1963
    %2082 = vmatprep.subr.mxu0 0.0
    %2083 = vmatpush1.msra.mxu0 %v1964
    %2084 = vmatprep.subr.mxu0 0.0
    %2085 = vmatpush1.msra.mxu0 %v1965
    %2086 = vmatprep.subr.mxu0 0.0
    %2087 = vmatpush1.msra.mxu0 %v1966
    %2088 = vmatprep.subr.mxu0 0.0
    %2089 = vmatpush1.msra.mxu0 %v1967
    %2090 = vmatprep.subr.mxu0 0.0
    %2091 = vmatpush1.msra.mxu0 %v1968
    %2092 = vmatprep.subr.mxu0 0.0
    %2093 = vmatpush1.msra.mxu0 %v1969
    %2094 = vmatprep.subr.mxu0 0.0
    %2095 = vmatpush1.msra.mxu0 %v1970
    %2096 = vmatprep.subr.mxu0 0.0
    %2097 = vmatpush1.msra.mxu0 %v1971
    %2098 = vmatprep.subr.mxu0 0.0
    %2099 = vmatpush1.msra.mxu0 %v1972
    %2100 = vmatprep.subr.mxu0 0.0
    %2101 = vmatpush1.msra.mxu0 %v1973
    %2102 = vmatprep.subr.mxu0 0.0
    %2103 = vmatpush1.msra.mxu0 %v1974
    %2104 = vmatprep.subr.mxu0 0.0
    %2105 = vmatpush1.msra.mxu0 %v1975
    %2106 = vmatprep.subr.mxu0 0.0
    %2107 = vmatpush1.msra.mxu0 %v1976
    %2108 = vmatprep.subr.mxu0 0.0
    %2109 = vmatpush1.msra.mxu0 %v1977
    %2110 = vmatprep.subr.mxu0 0.0
    %2111 = vmatpush1.msra.mxu0 %v1978
    %2112 = vmatprep.subr.mxu0 0.0
    %2113 = vmatpush1.msra.mxu0 %v1979
    %2114 = vmatprep.subr.mxu0 0.0
    %2115 = vmatpush1.msra.mxu0 %v1980
    %2116 = vmatprep.subr.mxu0 0.0
    %2117 = vmatpush1.msra.mxu0 %v1981
    %2118 = vmatprep.subr.mxu0 0.0
    %2119 = vmatpush1.msra.mxu0 %v1982
    %2120 = vmatprep.mubr.f32.mxu0 %v2017
    %2121 = vmatmul.mubr.f32.gmra.mrb[0].mxu0 %v2016
    %v2122 = vpop.f32.mrb[0].mxu0
    %v2123 = vadd.f32 0.0, %v2122
    %v2124 = vpop.f32.mrb[0].mxu0
    %2125 = vmatprep.mubr.f32.mxu0 %v2021
    %2126 = vmatmul.mubr.f32.gmra.mrb[0].mxu0 %v2020
    %v2127 = vpop.f32.mrb[0].mxu0
    %v2128 = vadd.f32 0.0, %v2127
    %v2129 = vpop.f32.mrb[0].mxu0
    %2130 = vmatprep.mubr.f32.mxu0 %v2025
    %2131 = vmatmul.mubr.f32.gmra.mrb[0].mxu0 %v2024
    %v2132 = vpop.f32.mrb[0].mxu0
    %v2133 = vadd.f32 0.0, %v2132
    %v2134 = vpop.f32.mrb[0].mxu0
    %2135 = vmatprep.mubr.f32.mxu0 %v2029
    %2136 = vmatmul.mubr.f32.gmra.mrb[0].mxu0 %v2028
    %v2137 = vpop.f32.mrb[0].mxu0
    %v2138 = vadd.f32 0.0, %v2137
    %v2139 = vpop.f32.mrb[0].mxu0
    %2140 = vmatprep.mubr.f32.mxu0 %v2033
    %2141 = vmatmul.mubr.f32.gmra.mrb[0].mxu0 %v2032
    %v2142 = vpop.f32.mrb[0].mxu0
    %v2143 = vadd.f32 0.0, %v2142
    %v2144 = vpop.f32.mrb[0].mxu0
    %2145 = vmatprep.mubr.f32.mxu0 %v2037
    %2146 = vmatmul.mubr.f32.gmra.mrb[0].mxu0 %v2036
    %v2147 = vpop.f32.mrb[0].mxu0
    %v2148 = vadd.f32 0.0, %v2147
    %v2149 = vpop.f32.mrb[0].mxu0
    %2150 = vmatprep.mubr.f32.mxu0 %v2041
    %2151 = vmatmul.mubr.f32.gmra.mrb[0].mxu0 %v2040
    %v2152 = vpop.f32.mrb[0].mxu0
    %v2153 = vadd.f32 0.0, %v2152
    %v2154 = vpop.f32.mrb[0].mxu0
    %2155 = vmatprep.mubr.f32.mxu0 %v2045
    %2156 = vmatmul.mubr.f32.gmra.mrb[0].mxu0 %v2044
    %v2157 = vpop.f32.mrb[0].mxu0
    %v2158 = vadd.f32 0.0, %v2157
    %v2159 = vpop.f32.mrb[0].mxu0
    %2160 = vmatprep.mubr.f32.mxu0 %v2049
    %2161 = vmatmul.mubr.f32.gmra.mrb[0].mxu0 %v2048
    %v2162 = vpop.f32.mrb[0].mxu0
    %v2163 = vadd.f32 0.0, %v2162
    %v2164 = vpop.f32.mrb[0].mxu0
    %2165 = vmatprep.mubr.f32.mxu0 %v2053
    %2166 = vmatmul.mubr.f32.gmra.mrb[0].mxu0 %v2052
    %v2167 = vpop.f32.mrb[0].mxu0
    %v2168 = vadd.f32 0.0, %v2167
    %v2169 = vpop.f32.mrb[0].mxu0
    %2170 = vdwg.mxu0
    %2171 = vmatprep.subr.mxu0 0.0
    %2172 = vmatpush1.msra.mxu0 %v1983
    %2173 = vmatprep.subr.mxu0 0.0
    %2174 = vmatpush1.msra.mxu0 %v1984
    %2175 = vmatprep.subr.mxu0 0.0
    %2176 = vmatpush1.msra.mxu0 %v1985
    %2177 = vmatprep.subr.mxu0 0.0
    %2178 = vmatpush1.msra.mxu0 %v1986
    %2179 = vmatprep.subr.mxu0 0.0
    %2180 = vmatpush1.msra.mxu0 %v1987
    %2181 = vmatprep.subr.mxu0 0.0
    %2182 = vmatpush1.msra.mxu0 %v1988
    %2183 = vmatprep.subr.mxu0 0.0
    %2184 = vmatpush1.msra.mxu0 %v1989
    %2185 = vmatprep.subr.mxu0 0.0
    %2186 = vmatpush1.msra.mxu0 %v1990
    %2187 = vmatprep.subr.mxu0 0.0
    %2188 = vmatpush1.msra.mxu0 %v1991
    %2189 = vmatprep.subr.mxu0 0.0
    %2190 = vmatpush1.msra.mxu0 %v1992
    %2191 = vmatprep.subr.mxu0 0.0
    %2192 = vmatpush1.msra.mxu0 %v1993
    %2193 = vmatprep.subr.mxu0 0.0
    %2194 = vmatpush1.msra.mxu0 %v1994
    %2195 = vmatprep.subr.mxu0 0.0
    %2196 = vmatpush1.msra.mxu0 %v1995
    %2197 = vmatprep.subr.mxu0 0.0
    %2198 = vmatpush1.msra.mxu0 %v1996
    %2199 = vmatprep.subr.mxu0 0.0
    %2200 = vmatpush1.msra.mxu0 %v1997
    %2201 = vmatprep.subr.mxu0 0.0
    %2202 = vmatpush1.msra.mxu0 %v1998
    %2203 = vmatprep.subr.mxu0 0.0
    %2204 = vmatpush1.msra.mxu0 %v1999
    %2205 = vmatprep.subr.mxu0 0.0
    %2206 = vmatpush1.msra.mxu0 %v2000
    %2207 = vmatprep.subr.mxu0 0.0
    %2208 = vmatpush1.msra.mxu0 %v2001
    %2209 = vmatprep.subr.mxu0 0.0
    %2210 = vmatpush1.msra.mxu0 %v2002
    %2211 = vmatprep.subr.mxu0 0.0
    %2212 = vmatpush1.msra.mxu0 %v2003
    %2213 = vmatprep.subr.mxu0 0.0
    %2214 = vmatpush1.msra.mxu0 %v2004
    %2215 = vmatprep.subr.mxu0 0.0
    %2216 = vmatpush1.msra.mxu0 %v2005
    %2217 = vmatprep.subr.mxu0 0.0
    %2218 = vmatpush1.msra.mxu0 %v2006
    %2219 = vmatprep.subr.mxu0 0.0
    %2220 = vmatpush1.msra.mxu0 %v2007
    %2221 = vmatprep.subr.mxu0 0.0
    %2222 = vmatpush1.msra.mxu0 %v2008
    %2223 = vmatprep.subr.mxu0 0.0
    %2224 = vmatpush1.msra.mxu0 %v2009
    %2225 = vmatprep.subr.mxu0 0.0
    %2226 = vmatpush1.msra.mxu0 %v2010
    %2227 = vmatprep.subr.mxu0 0.0
    %2228 = vmatpush1.msra.mxu0 %v2011
    %2229 = vmatprep.subr.mxu0 0.0
    %2230 = vmatpush1.msra.mxu0 %v2012
    %2231 = vmatprep.subr.mxu0 0.0
    %2232 = vmatpush1.msra.mxu0 %v2013
    %2233 = vmatprep.subr.mxu0 0.0
    %2234 = vmatpush1.msra.mxu0 %v2014
    %2235 = vmatprep.mubr.f32.mxu0 %v2019
    %2236 = vmatmul.mubr.f32.gmra.mrb[0].mxu0 %v2018
    %v2237 = vpop.f32.mrb[0].mxu0
    %v2238 = vadd.f32 %v2123, %v2237
    %v2239 = vpop.f32.mrb[0].mxu0
    %2240 = vmatprep.mubr.f32.mxu0 %v2023
    %2241 = vmatmul.mubr.f32.gmra.mrb[0].mxu0 %v2022
    %v2242 = vpop.f32.mrb[0].mxu0
    %v2243 = vadd.f32 %v2128, %v2242
    %v2244 = vpop.f32.mrb[0].mxu0
    %2245 = vmatprep.mubr.f32.mxu0 %v2027
    %2246 = vmatmul.mubr.f32.gmra.mrb[0].mxu0 %v2026
    %v2247 = vpop.f32.mrb[0].mxu0
    %v2248 = vadd.f32 %v2133, %v2247
    %v2249 = vpop.f32.mrb[0].mxu0
    %2250 = vmatprep.mubr.f32.mxu0 %v2031
    %2251 = vmatmul.mubr.f32.gmra.mrb[0].mxu0 %v2030
    %v2252 = vpop.f32.mrb[0].mxu0
    %v2253 = vadd.f32 %v2138, %v2252
    %v2254 = vpop.f32.mrb[0].mxu0
    %2255 = vmatprep.mubr.f32.mxu0 %v2035
    %2256 = vmatmul.mubr.f32.gmra.mrb[0].mxu0 %v2034
    %v2257 = vpop.f32.mrb[0].mxu0
    %v2258 = vadd.f32 %v2143, %v2257
    %v2259 = vpop.f32.mrb[0].mxu0
    %2260 = vmatprep.mubr.f32.mxu0 %v2039
    %2261 = vmatmul.mubr.f32.gmra.mrb[0].mxu0 %v2038
    %v2262 = vpop.f32.mrb[0].mxu0
    %v2263 = vadd.f32 %v2148, %v2262
    %v2264 = vpop.f32.mrb[0].mxu0
    %2265 = vmatprep.mubr.f32.mxu0 %v2043
    %2266 = vmatmul.mubr.f32.gmra.mrb[0].mxu0 %v2042
    %v2267 = vpop.f32.mrb[0].mxu0
    %v2268 = vadd.f32 %v2153, %v2267
    %v2269 = vpop.f32.mrb[0].mxu0
    %2270 = vmatprep.mubr.f32.mxu0 %v2047
    %2271 = vmatmul.mubr.f32.gmra.mrb[0].mxu0 %v2046
    %v2272 = vpop.f32.mrb[0].mxu0
    %v2273 = vadd.f32 %v2158, %v2272
    %v2274 = vpop.f32.mrb[0].mxu0
    %2275 = vmatprep.mubr.f32.mxu0 %v2051
    %2276 = vmatmul.mubr.f32.gmra.mrb[0].mxu0 %v2050
    %v2277 = vpop.f32.mrb[0].mxu0
    %v2278 = vadd.f32 %v2163, %v2277
    %v2279 = vpop.f32.mrb[0].mxu0
    %2280 = vmatprep.mubr.f32.mxu0 %v2055
    %2281 = vmatmul.mubr.f32.gmra.mrb[0].mxu0 %v2054
    %v2282 = vpop.f32.mrb[0].mxu0
    %v2283 = vadd.f32 %v2168, %v2282
    %v2284 = vpop.f32.mrb[0].mxu0
    %2285 = vdwg.mxu0
    %2286 = vmatprep.subr.mxu0 0.0
    %2287 = vmatpush1.msra.mxu0 %v991
    %2288 = vmatprep.subr.mxu0 0.0
    %2289 = vmatpush1.msra.mxu0 %v992
    %2290 = vmatprep.subr.mxu0 0.0
    %2291 = vmatpush1.msra.mxu0 %v993
    %2292 = vmatprep.subr.mxu0 0.0
    %2293 = vmatpush1.msra.mxu0 %v994
    %2294 = vmatprep.subr.mxu0 0.0
    %2295 = vmatpush1.msra.mxu0 %v995
    %2296 = vmatprep.subr.mxu0 0.0
    %2297 = vmatpush1.msra.mxu0 %v996
    %2298 = vmatprep.subr.mxu0 0.0
    %2299 = vmatpush1.msra.mxu0 %v997
    %2300 = vmatprep.subr.mxu0 0.0
    %2301 = vmatpush1.msra.mxu0 %v998
    %2302 = vmatprep.subr.mxu0 0.0
    %2303 = vmatpush1.msra.mxu0 %v999
    %2304 = vmatprep.subr.mxu0 0.0
    %2305 = vmatpush1.msra.mxu0 %v1000
    %2306 = vmatprep.subr.mxu0 0.0
    %2307 = vmatpush1.msra.mxu0 %v1001
    %2308 = vmatprep.subr.mxu0 0.0
    %2309 = vmatpush1.msra.mxu0 %v1002
    %2310 = vmatprep.subr.mxu0 0.0
    %2311 = vmatpush1.msra.mxu0 %v1003
    %2312 = vmatprep.subr.mxu0 0.0
    %2313 = vmatpush1.msra.mxu0 %v1004
    %2314 = vmatprep.subr.mxu0 0.0
    %2315 = vmatpush1.msra.mxu0 %v1005
    %2316 = vmatprep.subr.mxu0 0.0
    %2317 = vmatpush1.msra.mxu0 %v1006
    %2318 = vmatprep.subr.mxu0 0.0
    %2319 = vmatpush1.msra.mxu0 %v1007
    %2320 = vmatprep.subr.mxu0 0.0
    %2321 = vmatpush1.msra.mxu0 %v1008
    %2322 = vmatprep.subr.mxu0 0.0
    %2323 = vmatpush1.msra.mxu0 %v1009
    %2324 = vmatprep.subr.mxu0 0.0
    %2325 = vmatpush1.msra.mxu0 %v1010
    %2326 = vmatprep.subr.mxu0 0.0
    %2327 = vmatpush1.msra.mxu0 %v1011
    %2328 = vmatprep.subr.mxu0 0.0
    %2329 = vmatpush1.msra.mxu0 %v1012
    %2330 = vmatprep.subr.mxu0 0.0
    %2331 = vmatpush1.msra.mxu0 %v1013
    %2332 = vmatprep.subr.mxu0 0.0
    %2333 = vmatpush1.msra.mxu0 %v1014
    %2334 = vmatprep.subr.mxu0 0.0
    %2335 = vmatpush1.msra.mxu0 %v1015
    %2336 = vmatprep.subr.mxu0 0.0
    %2337 = vmatpush1.msra.mxu0 %v1016
    %2338 = vmatprep.subr.mxu0 0.0
    %2339 = vmatpush1.msra.mxu0 %v1017
    %2340 = vmatprep.subr.mxu0 0.0
    %2341 = vmatpush1.msra.mxu0 %v1018
    %2342 = vmatprep.subr.mxu0 0.0
    %2343 = vmatpush1.msra.mxu0 %v1019
    %2344 = vmatprep.subr.mxu0 0.0
    %2345 = vmatpush1.msra.mxu0 %v1020
    %2346 = vmatprep.subr.mxu0 0.0
    %2347 = vmatpush1.msra.mxu0 %v1021
    %2348 = vmatprep.subr.mxu0 0.0
    %2349 = vmatpush1.msra.mxu0 %v1022
    %2350 = vmatprep.mubr.f32.mxu0 %v1056
    %2351 = vmatmul.mubr.f32.gmra.mrb[0].mxu0 %v1055
    %v2352 = vpop.f32.mrb[0].mxu0
    %v2353 = vadd.f32 %v2238, %v2352
    %v2354 = vpop.f32.mrb[0].mxu0
    %2355 = vmatprep.mubr.f32.mxu0 %v1060
    %2356 = vmatmul.mubr.f32.gmra.mrb[0].mxu0 %v1059
    %v2357 = vpop.f32.mrb[0].mxu0
    %v2358 = vadd.f32 %v2243, %v2357
    %v2359 = vpop.f32.mrb[0].mxu0
    %2360 = vmatprep.mubr.f32.mxu0 %v1064
    %2361 = vmatmul.mubr.f32.gmra.mrb[0].mxu0 %v1063
    %v2362 = vpop.f32.mrb[0].mxu0
    %v2363 = vadd.f32 %v2248, %v2362
    %v2364 = vpop.f32.mrb[0].mxu0
    %2365 = vmatprep.mubr.f32.mxu0 %v1068
    %2366 = vmatmul.mubr.f32.gmra.mrb[0].mxu0 %v1067
    %v2367 = vpop.f32.mrb[0].mxu0
    %v2368 = vadd.f32 %v2253, %v2367
    %v2369 = vpop.f32.mrb[0].mxu0
    %2370 = vmatprep.mubr.f32.mxu0 %v1072
    %2371 = vmatmul.mubr.f32.gmra.mrb[0].mxu0 %v1071
    %v2372 = vpop.f32.mrb[0].mxu0
    %v2373 = vadd.f32 %v2258, %v2372
    %v2374 = vpop.f32.mrb[0].mxu0
    %2375 = vmatprep.mubr.f32.mxu0 %v1076
    %2376 = vmatmul.mubr.f32.gmra.mrb[0].mxu0 %v1075
    %v2377 = vpop.f32.mrb[0].mxu0
    %v2378 = vadd.f32 %v2263, %v2377
    %v2379 = vpop.f32.mrb[0].mxu0
    %2380 = vmatprep.mubr.f32.mxu0 %v1080
    %2381 = vmatmul.mubr.f32.gmra.mrb[0].mxu0 %v1079
    %v2382 = vpop.f32.mrb[0].mxu0
    %v2383 = vadd.f32 %v2268, %v2382
    %v2384 = vpop.f32.mrb[0].mxu0
    %2385 = vmatprep.mubr.f32.mxu0 %v1084
    %2386 = vmatmul.mubr.f32.gmra.mrb[0].mxu0 %v1083
    %v2387 = vpop.f32.mrb[0].mxu0
    %v2388 = vadd.f32 %v2273, %v2387
    %v2389 = vpop.f32.mrb[0].mxu0
    %2390 = vmatprep.mubr.f32.mxu0 %v1088
    %2391 = vmatmul.mubr.f32.gmra.mrb[0].mxu0 %v1087
    %v2392 = vpop.f32.mrb[0].mxu0
    %v2393 = vadd.f32 %v2278, %v2392
    %v2394 = vpop.f32.mrb[0].mxu0
    %2395 = vmatprep.mubr.f32.mxu0 %v1092
    %2396 = vmatmul.mubr.f32.gmra.mrb[0].mxu0 %v1091
    %v2397 = vpop.f32.mrb[0].mxu0
    %v2398 = vadd.f32 %v2283, %v2397
    %v2399 = vpop.f32.mrb[0].mxu0
    %2400 = vdwg.mxu0
    %2401 = vmatprep.subr.mxu0 0.0
    %2402 = vmatpush1.msra.mxu0 %v1023
    %2403 = vmatprep.subr.mxu0 0.0
    %2404 = vmatpush1.msra.mxu0 %v1024
    %2405 = vmatprep.subr.mxu0 0.0
    %2406 = vmatpush1.msra.mxu0 %v1025
    %2407 = vmatprep.subr.mxu0 0.0
    %2408 = vmatpush1.msra.mxu0 %v1026
    %2409 = vmatprep.subr.mxu0 0.0
    %2410 = vmatpush1.msra.mxu0 %v1027
    %2411 = vmatprep.subr.mxu0 0.0
    %2412 = vmatpush1.msra.mxu0 %v1028
    %2413 = vmatprep.subr.mxu0 0.0
    %2414 = vmatpush1.msra.mxu0 %v1029
    %2415 = vmatprep.subr.mxu0 0.0
    %2416 = vmatpush1.msra.mxu0 %v1030
    %2417 = vmatprep.subr.mxu0 0.0
    %2418 = vmatpush1.msra.mxu0 %v1031
    %2419 = vmatprep.subr.mxu0 0.0
    %2420 = vmatpush1.msra.mxu0 %v1032
    %2421 = vmatprep.subr.mxu0 0.0
    %2422 = vmatpush1.msra.mxu0 %v1033
    %2423 = vmatprep.subr.mxu0 0.0
    %2424 = vmatpush1.msra.mxu0 %v1034
    %2425 = vmatprep.subr.mxu0 0.0
    %2426 = vmatpush1.msra.mxu0 %v1035
    %2427 = vmatprep.subr.mxu0 0.0
    %2428 = vmatpush1.msra.mxu0 %v1036
    %2429 = vmatprep.subr.mxu0 0.0
    %2430 = vmatpush1.msra.mxu0 %v1037
    %2431 = vmatprep.subr.mxu0 0.0
    %2432 = vmatpush1.msra.mxu0 %v1038
    %2433 = vmatprep.subr.mxu0 0.0
    %2434 = vmatpush1.msra.mxu0 %v1039
    %2435 = vmatprep.subr.mxu0 0.0
    %2436 = vmatpush1.msra.mxu0 %v1040
    %2437 = vmatprep.subr.mxu0 0.0
    %2438 = vmatpush1.msra.mxu0 %v1041
    %2439 = vmatprep.subr.mxu0 0.0
    %2440 = vmatpush1.msra.mxu0 %v1042
    %2441 = vmatprep.subr.mxu0 0.0
    %2442 = vmatpush1.msra.mxu0 %v1043
    %2443 = vmatprep.subr.mxu0 0.0
    %2444 = vmatpush1.msra.mxu0 %v1044
    %2445 = vmatprep.subr.mxu0 0.0
    %2446 = vmatpush1.msra.mxu0 %v1045
    %2447 = vmatprep.subr.mxu0 0.0
    %2448 = vmatpush1.msra.mxu0 %v1046
    %2449 = vmatprep.subr.mxu0 0.0
    %2450 = vmatpush1.msra.mxu0 %v1047
    %2451 = vmatprep.subr.mxu0 0.0
    %2452 = vmatpush1.msra.mxu0 %v1048
    %2453 = vmatprep.subr.mxu0 0.0
    %2454 = vmatpush1.msra.mxu0 %v1049
    %2455 = vmatprep.subr.mxu0 0.0
    %2456 = vmatpush1.msra.mxu0 %v1050
    %2457 = vmatprep.subr.mxu0 0.0
    %2458 = vmatpush1.msra.mxu0 %v1051
    %2459 = vmatprep.subr.mxu0 0.0
    %2460 = vmatpush1.msra.mxu0 %v1052
    %2461 = vmatprep.subr.mxu0 0.0
    %2462 = vmatpush1.msra.mxu0 %v1053
    %2463 = vmatprep.subr.mxu0 0.0
    %2464 = vmatpush1.msra.mxu0 %v1054
    %2465 = vmatprep.mubr.f32.mxu0 %v1058
    %2466 = vmatmul.mubr.f32.gmra.mrb[0].mxu0 %v1057
    %v2467 = vpop.f32.mrb[0].mxu0
    %v2468 = vadd.f32 %v2353, %v2467
    %v2469 = vpop.f32.mrb[0].mxu0
    %2470 = vmatprep.mubr.f32.mxu0 %v1062
    %2471 = vmatmul.mubr.f32.gmra.mrb[0].mxu0 %v1061
    %v2472 = vpop.f32.mrb[0].mxu0
    %v2473 = vadd.f32 %v2358, %v2472
    %v2474 = vpop.f32.mrb[0].mxu0
    %2475 = vmatprep.mubr.f32.mxu0 %v1066
    %2476 = vmatmul.mubr.f32.gmra.mrb[0].mxu0 %v1065
    %v2477 = vpop.f32.mrb[0].mxu0
    %v2478 = vadd.f32 %v2363, %v2477
    %v2479 = vpop.f32.mrb[0].mxu0
    %2480 = vmatprep.mubr.f32.mxu0 %v1070
    %2481 = vmatmul.mubr.f32.gmra.mrb[0].mxu0 %v1069
    %v2482 = vpop.f32.mrb[0].mxu0
    %v2483 = vadd.f32 %v2368, %v2482
    %v2484 = vpop.f32.mrb[0].mxu0
    %2485 = vmatprep.mubr.f32.mxu0 %v1074
    %2486 = vmatmul.mubr.f32.gmra.mrb[0].mxu0 %v1073
    %v2487 = vpop.f32.mrb[0].mxu0
    %v2488 = vadd.f32 %v2373, %v2487
    %v2489 = vpop.f32.mrb[0].mxu0
    %2490 = vmatprep.mubr.f32.mxu0 %v1078
    %2491 = vmatmul.mubr.f32.gmra.mrb[0].mxu0 %v1077
    %v2492 = vpop.f32.mrb[0].mxu0
    %v2493 = vadd.f32 %v2378, %v2492
    %v2494 = vpop.f32.mrb[0].mxu0
    %2495 = vmatprep.mubr.f32.mxu0 %v1082
    %2496 = vmatmul.mubr.f32.gmra.mrb[0].mxu0 %v1081
    %v2497 = vpop.f32.mrb[0].mxu0
    %v2498 = vadd.f32 %v2383, %v2497
    %v2499 = vpop.f32.mrb[0].mxu0
    %2500 = vmatprep.mubr.f32.mxu0 %v1086
    %2501 = vmatmul.mubr.f32.gmra.mrb[0].mxu0 %v1085
    %v2502 = vpop.f32.mrb[0].mxu0
    %v2503 = vadd.f32 %v2388, %v2502
    %v2504 = vpop.f32.mrb[0].mxu0
    %2505 = vmatprep.mubr.f32.mxu0 %v1090
    %2506 = vmatmul.mubr.f32.gmra.mrb[0].mxu0 %v1089
    %v2507 = vpop.f32.mrb[0].mxu0
    %v2508 = vadd.f32 %v2393, %v2507
    %v2509 = vpop.f32.mrb[0].mxu0
    %2510 = vmatprep.mubr.f32.mxu0 %v1094
    %2511 = vmatmul.mubr.f32.gmra.mrb[0].mxu0 %v1093
    %v2512 = vpop.f32.mrb[0].mxu0
    %v2513 = vadd.f32 %v2398, %v2512
    %v2514 = vpop.f32.mrb[0].mxu0
    %2515 = vdwg.mxu0
    %v2516 = vadd.f32 %v1095, %v1212
    %s2517 = sld [smem:[#allocation2 + $0x8]]
    %v2518 = vstv %s2517
    %v2519 = vmul.f32 %v2518, %v60
    %s2520 = sld [smem:[#allocation2 + $0x9]]
    %v2521 = vstv %s2520
    %v2522 = vmul.f32 %v2521, %v61
    %v2523 = vadd.f32 %v2519, %v2522
    %s2524 = sld [smem:[#allocation2 + $0xa]]
    %v2525 = vstv %s2524
    %v2526 = vmul.f32 %v2525, %v62
    %v2527 = vadd.f32 %v2523, %v2526
    %s2528 = sld [smem:[#allocation2 + $0xb]]
    %v2529 = vstv %s2528
    %v2530 = vadd.f32 %v2527, %v2529
    %v2531 = vmul.f32 %v66, %v2530
    %v2532 = vadd.f32 %v2531, 0.0
    %s2533 = sld [smem:[#allocation2 + $0x2c]]
    %v2534 = vstv %s2533
    %v2535 = vmul.f32 %v2534, %v60
    %s2536 = sld [smem:[#allocation2 + $0x2d]]
    %v2537 = vstv %s2536
    %v2538 = vmul.f32 %v2537, %v61
    %v2539 = vadd.f32 %v2535, %v2538
    %s2540 = sld [smem:[#allocation2 + $0x2e]]
    %v2541 = vstv %s2540
    %v2542 = vmul.f32 %v2541, %v62
    %v2543 = vadd.f32 %v2539, %v2542
    %s2544 = sld [smem:[#allocation2 + $0x2f]]
    %v2545 = vstv %s2544
    %v2546 = vadd.f32 %v2543, %v2545
    %v2547 = vmul.f32 %v69, %v2546
    %v2548 = vadd.f32 %v2532, %v2547
    %s2549 = sld [smem:[#allocation2 + $0x14]]
    %v2550 = vstv %s2549
    %v2551 = vmul.f32 %v2550, %v60
    %s2552 = sld [smem:[#allocation2 + $0x15]]
    %v2553 = vstv %s2552
    %v2554 = vmul.f32 %v2553, %v61
    %v2555 = vadd.f32 %v2551, %v2554
    %s2556 = sld [smem:[#allocation2 + $0x16]]
    %v2557 = vstv %s2556
    %v2558 = vmul.f32 %v2557, %v62
    %v2559 = vadd.f32 %v2555, %v2558
    %s2560 = sld [smem:[#allocation2 + $0x17]]
    %v2561 = vstv %s2560
    %v2562 = vadd.f32 %v2559, %v2561
    %v2563 = vmul.f32 %v66, %v2562
    %v2564 = vadd.f32 %v2563, 0.0
    %s2565 = sld [smem:[#allocation2 + $0x38]]
    %v2566 = vstv %s2565
    %v2567 = vmul.f32 %v2566, %v60
    %s2568 = sld [smem:[#allocation2 + $0x39]]
    %v2569 = vstv %s2568
    %v2570 = vmul.f32 %v2569, %v61
    %v2571 = vadd.f32 %v2567, %v2570
    %s2572 = sld [smem:[#allocation2 + $0x3a]]
    %v2573 = vstv %s2572
    %v2574 = vmul.f32 %v2573, %v62
    %v2575 = vadd.f32 %v2571, %v2574
    %s2576 = sld [smem:[#allocation2 + $0x3b]]
    %v2577 = vstv %s2576
    %v2578 = vadd.f32 %v2575, %v2577
    %v2579 = vmul.f32 %v69, %v2578
    %v2580 = vadd.f32 %v2564, %v2579
    %s2581 = sld [smem:[#allocation2 + $0x20]]
    %v2582 = vstv %s2581
    %v2583 = vmul.f32 %v2582, %v60
    %s2584 = sld [smem:[#allocation2 + $0x21]]
    %v2585 = vstv %s2584
    %v2586 = vmul.f32 %v2585, %v61
    %v2587 = vadd.f32 %v2583, %v2586
    %s2588 = sld [smem:[#allocation2 + $0x22]]
    %v2589 = vstv %s2588
    %v2590 = vmul.f32 %v2589, %v62
    %v2591 = vadd.f32 %v2587, %v2590
    %s2592 = sld [smem:[#allocation2 + $0x23]]
    %v2593 = vstv %s2592
    %v2594 = vadd.f32 %v2591, %v2593
    %v2595 = vmul.f32 %v66, %v2594
    %v2596 = vadd.f32 %v2595, 0.0
    %s2597 = sld [smem:[#allocation2 + $0x44]]
    %v2598 = vstv %s2597
    %v2599 = vmul.f32 %v2598, %v60
    %s2600 = sld [smem:[#allocation2 + $0x45]]
    %v2601 = vstv %s2600
    %v2602 = vmul.f32 %v2601, %v61
    %v2603 = vadd.f32 %v2599, %v2602
    %s2604 = sld [smem:[#allocation2 + $0x46]]
    %v2605 = vstv %s2604
    %v2606 = vmul.f32 %v2605, %v62
    %v2607 = vadd.f32 %v2603, %v2606
    %s2608 = sld [smem:[#allocation2 + $0x47]]
    %v2609 = vstv %s2608
    %v2610 = vadd.f32 %v2607, %v2609
    %v2611 = vmul.f32 %v69, %v2610
    %v2612 = vadd.f32 %v2596, %v2611
    %vm2613 = vcmp.ne.f32.partialorder %v2612, 0.0
    %v2614 = vrcp.pop %v2612
    %v2615 = vmul.f32 %v2548, %v2614
    %v2616 = vsel %vm2613, %v2615, 0.0
    %v2617 = vmul.f32 %v2580, %v2614
    %v2618 = vsel %vm2613, %v2617, 0.0
    %v2619 = vmul.f32 %v2616, 0.13333334
    %v2620 = vsub.f32 %v2619, 1.0
    %v2621 = vsel %vm2613, %v2620, -2.0
    %v2622 = vmul.f32 %v2618, 0.13333334
    %v2623 = vsub.f32 %v2622, 1.0
    %v2624 = vsel %vm2613, %v2623, -2.0
    %v2625 = vand.u32 2147483647, %v2621
    %vm2626 = vcmp.le.f32.partialorder %v2625, 1.0
    %v2627 = vand.u32 2147483647, %v2624
    %vm2628 = vcmp.le.f32.partialorder %v2627, 1.0
    %vm2629 = vmand %vm2626, %vm2628
    %vm2630 = vcmp.gt.f32.partialorder %v2612, 0.0
    %vm2631 = vmand %vm2629, %vm2630
    %v2632 = vsel %vm2631, 1, 0
    %v2633 = vcvt.s32.f32 %v2632
    %2634 = vst [vmem:[#allocation7 + $0x2] sm:$0x1] %v2621
    %2635 = vst [vmem:[#allocation7 + $0x5] sm:$0x1] %v2624
    %2636 = vst [vmem:[#allocation7 + $0x8] sm:$0x1] %v2612
    %2637 = vst [vmem:[#allocation7 + $0xb] sm:$0x1] %v2633
    %v2638 = vsel %vm2631, %v2616, 0.0
    %v2639 = vand.u32 2147483647, %v2638
    %v2640 = vmul.f32 %v2639, 0.033333335
    %v2641 = vfloor.f32 %v2640
    %v2642 = vmul.f32 %v2641, 30.0
    %v2643 = vsub.f32 %v2639, %v2642
    %vm2644 = vcmp.gt.f32.partialorder %v2643, 15.0
    %v2645 = vsub.f32 30.0, %v2643
    %v2646 = vsel %vm2644, %v2645, %v2643
    %v2647 = vsel %vm2631, %v2618, 0.0
    %v2648 = vand.u32 2147483647, %v2647
    %v2649 = vmul.f32 %v2648, 0.033333335
    %v2650 = vfloor.f32 %v2649
    %v2651 = vmul.f32 %v2650, 30.0
    %v2652 = vsub.f32 %v2648, %v2651
    %vm2653 = vcmp.gt.f32.partialorder %v2652, 15.0
    %v2654 = vsub.f32 30.0, %v2652
    %v2655 = vsel %vm2653, %v2654, %v2652
    %v2656 = vfloor.f32 %v2646
    %v2657 = vfloor.f32 %v2655
    %v2658 = vsub.f32 %v2646, %v2656
    %v2659 = vsub.f32 %v2655, %v2657
    %v2660 = vsub.f32 1.0, %v2658
    %v2661 = vsub.f32 1.0, %v2659
    %v2662 = vmax.f32 %v2656, 0.0
    %v2663 = vmin.f32 %v2662, 15.0
    %v2664 = vcvt.f32.s32.to.zero.pseudo %v2663
    %v2665 = vadd.f32 %v2656, 1.0
    %v2666 = vmax.f32 %v2665, 0.0
    %v2667 = vmin.f32 %v2666, 15.0
    %v2668 = vcvt.f32.s32.to.zero.pseudo %v2667
    %v2669 = vmax.f32 %v2657, 0.0
    %v2670 = vmin.f32 %v2669, 15.0
    %v2671 = vcvt.f32.s32.to.zero.pseudo %v2670
    %v2672 = vadd.f32 %v2657, 1.0
    %v2673 = vmax.f32 %v2672, 0.0
    %v2674 = vmin.f32 %v2673, 15.0
    %v2675 = vcvt.f32.s32.to.zero.pseudo %v2674
    %v2676 = vmul.u32 %v2671, 16
    %v2677 = vadd.s32 %v70, %v2676
    %v2678 = vadd.s32 %v2677, %v2664
    %v2679 = vadd.s32 %v2677, %v2668
    %v2680 = vmul.u32 %v2675, 16
    %v2681 = vadd.s32 %v70, %v2680
    %v2682 = vadd.s32 %v2681, %v2664
    %v2683 = vadd.s32 %v2681, %v2668
    %v2684 = vmul.f32 %v2661, %v2660
    %v2685 = vmul.f32 %v2684, %v2633
    %v2686 = vmul.f32 %v2661, %v2658
    %v2687 = vmul.f32 %v2686, %v2633
    %v2688 = vmul.f32 %v2659, %v2660
    %v2689 = vmul.f32 %v2688, %v2633
    %v2690 = vmul.f32 %v2659, %v2658
    %v2691 = vmul.f32 %v2690, %v2633
    %v2692 = vlaneseq
    %v2693 = vshrl.u32 %v2692, 7
    %v2694 = vsub.s32 0, %v2693
    %v2695 = vrot.slane %v2678, %v2694
    %vm2696 = vcmp.eq.s32.totalorder %v72, %v2695
    %vm2697 = vcmp.eq.s32.totalorder %v73, %v2695
    %vm2698 = vcmp.eq.s32.totalorder %v74, %v2695
    %vm2699 = vcmp.eq.s32.totalorder %v75, %v2695
    %vm2700 = vcmp.eq.s32.totalorder %v76, %v2695
    %vm2701 = vcmp.eq.s32.totalorder %v77, %v2695
    %vm2702 = vcmp.eq.s32.totalorder %v78, %v2695
    %vm2703 = vcmp.eq.s32.totalorder %v79, %v2695
    %vm2704 = vcmp.eq.s32.totalorder %v80, %v2695
    %vm2705 = vcmp.eq.s32.totalorder %v81, %v2695
    %vm2706 = vcmp.eq.s32.totalorder %v82, %v2695
    %vm2707 = vcmp.eq.s32.totalorder %v83, %v2695
    %vm2708 = vcmp.eq.s32.totalorder %v84, %v2695
    %vm2709 = vcmp.eq.s32.totalorder %v85, %v2695
    %vm2710 = vcmp.eq.s32.totalorder %v86, %v2695
    %vm2711 = vcmp.eq.s32.totalorder %v87, %v2695
    %vm2712 = vcmp.eq.s32.totalorder %v88, %v2695
    %vm2713 = vcmp.eq.s32.totalorder %v89, %v2695
    %vm2714 = vcmp.eq.s32.totalorder %v90, %v2695
    %vm2715 = vcmp.eq.s32.totalorder %v91, %v2695
    %vm2716 = vcmp.eq.s32.totalorder %v92, %v2695
    %vm2717 = vcmp.eq.s32.totalorder %v93, %v2695
    %vm2718 = vcmp.eq.s32.totalorder %v94, %v2695
    %vm2719 = vcmp.eq.s32.totalorder %v95, %v2695
    %vm2720 = vcmp.eq.s32.totalorder %v96, %v2695
    %vm2721 = vcmp.eq.s32.totalorder %v97, %v2695
    %vm2722 = vcmp.eq.s32.totalorder %v98, %v2695
    %vm2723 = vcmp.eq.s32.totalorder %v99, %v2695
    %vm2724 = vcmp.eq.s32.totalorder %v100, %v2695
    %vm2725 = vcmp.eq.s32.totalorder %v101, %v2695
    %vm2726 = vcmp.eq.s32.totalorder %v102, %v2695
    %vm2727 = vcmp.eq.s32.totalorder %v103, %v2695
    %vm2728 = vcmp.eq.s32.totalorder %v104, %v2695
    %vm2729 = vcmp.eq.s32.totalorder %v105, %v2695
    %vm2730 = vcmp.eq.s32.totalorder %v106, %v2695
    %vm2731 = vcmp.eq.s32.totalorder %v107, %v2695
    %vm2732 = vcmp.eq.s32.totalorder %v108, %v2695
    %vm2733 = vcmp.eq.s32.totalorder %v109, %v2695
    %vm2734 = vcmp.eq.s32.totalorder %v110, %v2695
    %vm2735 = vcmp.eq.s32.totalorder %v111, %v2695
    %vm2736 = vcmp.eq.s32.totalorder %v112, %v2695
    %vm2737 = vcmp.eq.s32.totalorder %v113, %v2695
    %vm2738 = vcmp.eq.s32.totalorder %v114, %v2695
    %vm2739 = vcmp.eq.s32.totalorder %v115, %v2695
    %vm2740 = vcmp.eq.s32.totalorder %v116, %v2695
    %vm2741 = vcmp.eq.s32.totalorder %v117, %v2695
    %vm2742 = vcmp.eq.s32.totalorder %v118, %v2695
    %vm2743 = vcmp.eq.s32.totalorder %v119, %v2695
    %vm2744 = vcmp.eq.s32.totalorder %v120, %v2695
    %vm2745 = vcmp.eq.s32.totalorder %v121, %v2695
    %vm2746 = vcmp.eq.s32.totalorder %v122, %v2695
    %vm2747 = vcmp.eq.s32.totalorder %v123, %v2695
    %vm2748 = vcmp.eq.s32.totalorder %v124, %v2695
    %vm2749 = vcmp.eq.s32.totalorder %v125, %v2695
    %vm2750 = vcmp.eq.s32.totalorder %v126, %v2695
    %vm2751 = vcmp.eq.s32.totalorder %v127, %v2695
    %vm2752 = vcmp.eq.s32.totalorder %v128, %v2695
    %vm2753 = vcmp.eq.s32.totalorder %v129, %v2695
    %vm2754 = vcmp.eq.s32.totalorder %v130, %v2695
    %vm2755 = vcmp.eq.s32.totalorder %v131, %v2695
    %vm2756 = vcmp.eq.s32.totalorder %v132, %v2695
    %vm2757 = vcmp.eq.s32.totalorder %v133, %v2695
    %vm2758 = vcmp.eq.s32.totalorder %v134, %v2695
    %vm2759 = vcmp.eq.s32.totalorder %v135, %v2695
    %v2761 = vlaneseq
    %v2762 = vshrl.u32 %v2761, 7
    %v2763 = vsub.s32 0, %v2762
    %v2764 = vrot.slane %v2685, %v2763
    %v2766 = vsel %vm2696, %v2764, 0.0
    %v2767 = vsel %vm2697, %v2764, 0.0
    %v2768 = vsel %vm2698, %v2764, 0.0
    %v2769 = vsel %vm2699, %v2764, 0.0
    %v2770 = vsel %vm2700, %v2764, 0.0
    %v2771 = vsel %vm2701, %v2764, 0.0
    %v2772 = vsel %vm2702, %v2764, 0.0
    %v2773 = vsel %vm2703, %v2764, 0.0
    %v2774 = vsel %vm2704, %v2764, 0.0
    %v2775 = vsel %vm2705, %v2764, 0.0
    %v2776 = vsel %vm2706, %v2764, 0.0
    %v2777 = vsel %vm2707, %v2764, 0.0
    %v2778 = vsel %vm2708, %v2764, 0.0
    %v2779 = vsel %vm2709, %v2764, 0.0
    %v2780 = vsel %vm2710, %v2764, 0.0
    %v2781 = vsel %vm2711, %v2764, 0.0
    %v2782 = vsel %vm2712, %v2764, 0.0
    %v2783 = vsel %vm2713, %v2764, 0.0
    %v2784 = vsel %vm2714, %v2764, 0.0
    %v2785 = vsel %vm2715, %v2764, 0.0
    %v2786 = vsel %vm2716, %v2764, 0.0
    %v2787 = vsel %vm2717, %v2764, 0.0
    %v2788 = vsel %vm2718, %v2764, 0.0
    %v2789 = vsel %vm2719, %v2764, 0.0
    %v2790 = vsel %vm2720, %v2764, 0.0
    %v2791 = vsel %vm2721, %v2764, 0.0
    %v2792 = vsel %vm2722, %v2764, 0.0
    %v2793 = vsel %vm2723, %v2764, 0.0
    %v2794 = vsel %vm2724, %v2764, 0.0
    %v2795 = vsel %vm2725, %v2764, 0.0
    %v2796 = vsel %vm2726, %v2764, 0.0
    %v2797 = vsel %vm2727, %v2764, 0.0
    %v2798 = vsel %vm2728, %v2764, 0.0
    %v2799 = vsel %vm2729, %v2764, 0.0
    %v2800 = vsel %vm2730, %v2764, 0.0
    %v2801 = vsel %vm2731, %v2764, 0.0
    %v2802 = vsel %vm2732, %v2764, 0.0
    %v2803 = vsel %vm2733, %v2764, 0.0
    %v2804 = vsel %vm2734, %v2764, 0.0
    %v2805 = vsel %vm2735, %v2764, 0.0
    %v2806 = vsel %vm2736, %v2764, 0.0
    %v2807 = vsel %vm2737, %v2764, 0.0
    %v2808 = vsel %vm2738, %v2764, 0.0
    %v2809 = vsel %vm2739, %v2764, 0.0
    %v2810 = vsel %vm2740, %v2764, 0.0
    %v2811 = vsel %vm2741, %v2764, 0.0
    %v2812 = vsel %vm2742, %v2764, 0.0
    %v2813 = vsel %vm2743, %v2764, 0.0
    %v2814 = vsel %vm2744, %v2764, 0.0
    %v2815 = vsel %vm2745, %v2764, 0.0
    %v2816 = vsel %vm2746, %v2764, 0.0
    %v2817 = vsel %vm2747, %v2764, 0.0
    %v2818 = vsel %vm2748, %v2764, 0.0
    %v2819 = vsel %vm2749, %v2764, 0.0
    %v2820 = vsel %vm2750, %v2764, 0.0
    %v2821 = vsel %vm2751, %v2764, 0.0
    %v2822 = vsel %vm2752, %v2764, 0.0
    %v2823 = vsel %vm2753, %v2764, 0.0
    %v2824 = vsel %vm2754, %v2764, 0.0
    %v2825 = vsel %vm2755, %v2764, 0.0
    %v2826 = vsel %vm2756, %v2764, 0.0
    %v2827 = vsel %vm2757, %v2764, 0.0
    %v2828 = vsel %vm2758, %v2764, 0.0
    %v2829 = vsel %vm2759, %v2764, 0.0
    %v2830 = vlaneseq
    %v2831 = vshrl.u32 %v2830, 7
    %v2832 = vsub.s32 0, %v2831
    %v2833 = vrot.slane %v2679, %v2832
    %vm2834 = vcmp.eq.s32.totalorder %v72, %v2833
    %vm2835 = vcmp.eq.s32.totalorder %v73, %v2833
    %vm2836 = vcmp.eq.s32.totalorder %v74, %v2833
    %vm2837 = vcmp.eq.s32.totalorder %v75, %v2833
    %vm2838 = vcmp.eq.s32.totalorder %v76, %v2833
    %vm2839 = vcmp.eq.s32.totalorder %v77, %v2833
    %vm2840 = vcmp.eq.s32.totalorder %v78, %v2833
    %vm2841 = vcmp.eq.s32.totalorder %v79, %v2833
    %vm2842 = vcmp.eq.s32.totalorder %v80, %v2833
    %vm2843 = vcmp.eq.s32.totalorder %v81, %v2833
    %vm2844 = vcmp.eq.s32.totalorder %v82, %v2833
    %vm2845 = vcmp.eq.s32.totalorder %v83, %v2833
    %vm2846 = vcmp.eq.s32.totalorder %v84, %v2833
    %vm2847 = vcmp.eq.s32.totalorder %v85, %v2833
    %vm2848 = vcmp.eq.s32.totalorder %v86, %v2833
    %vm2849 = vcmp.eq.s32.totalorder %v87, %v2833
    %vm2850 = vcmp.eq.s32.totalorder %v88, %v2833
    %vm2851 = vcmp.eq.s32.totalorder %v89, %v2833
    %vm2852 = vcmp.eq.s32.totalorder %v90, %v2833
    %vm2853 = vcmp.eq.s32.totalorder %v91, %v2833
    %vm2854 = vcmp.eq.s32.totalorder %v92, %v2833
    %vm2855 = vcmp.eq.s32.totalorder %v93, %v2833
    %vm2856 = vcmp.eq.s32.totalorder %v94, %v2833
    %vm2857 = vcmp.eq.s32.totalorder %v95, %v2833
    %vm2858 = vcmp.eq.s32.totalorder %v96, %v2833
    %vm2859 = vcmp.eq.s32.totalorder %v97, %v2833
    %vm2860 = vcmp.eq.s32.totalorder %v98, %v2833
    %vm2861 = vcmp.eq.s32.totalorder %v99, %v2833
    %vm2862 = vcmp.eq.s32.totalorder %v100, %v2833
    %vm2863 = vcmp.eq.s32.totalorder %v101, %v2833
    %vm2864 = vcmp.eq.s32.totalorder %v102, %v2833
    %vm2865 = vcmp.eq.s32.totalorder %v103, %v2833
    %vm2866 = vcmp.eq.s32.totalorder %v104, %v2833
    %vm2867 = vcmp.eq.s32.totalorder %v105, %v2833
    %vm2868 = vcmp.eq.s32.totalorder %v106, %v2833
    %vm2869 = vcmp.eq.s32.totalorder %v107, %v2833
    %vm2870 = vcmp.eq.s32.totalorder %v108, %v2833
    %vm2871 = vcmp.eq.s32.totalorder %v109, %v2833
    %vm2872 = vcmp.eq.s32.totalorder %v110, %v2833
    %vm2873 = vcmp.eq.s32.totalorder %v111, %v2833
    %vm2874 = vcmp.eq.s32.totalorder %v112, %v2833
    %vm2875 = vcmp.eq.s32.totalorder %v113, %v2833
    %vm2876 = vcmp.eq.s32.totalorder %v114, %v2833
    %vm2877 = vcmp.eq.s32.totalorder %v115, %v2833
    %vm2878 = vcmp.eq.s32.totalorder %v116, %v2833
    %vm2879 = vcmp.eq.s32.totalorder %v117, %v2833
    %vm2880 = vcmp.eq.s32.totalorder %v118, %v2833
    %vm2881 = vcmp.eq.s32.totalorder %v119, %v2833
    %vm2882 = vcmp.eq.s32.totalorder %v120, %v2833
    %vm2883 = vcmp.eq.s32.totalorder %v121, %v2833
    %vm2884 = vcmp.eq.s32.totalorder %v122, %v2833
    %vm2885 = vcmp.eq.s32.totalorder %v123, %v2833
    %vm2886 = vcmp.eq.s32.totalorder %v124, %v2833
    %vm2887 = vcmp.eq.s32.totalorder %v125, %v2833
    %vm2888 = vcmp.eq.s32.totalorder %v126, %v2833
    %vm2889 = vcmp.eq.s32.totalorder %v127, %v2833
    %vm2890 = vcmp.eq.s32.totalorder %v128, %v2833
    %vm2891 = vcmp.eq.s32.totalorder %v129, %v2833
    %vm2892 = vcmp.eq.s32.totalorder %v130, %v2833
    %vm2893 = vcmp.eq.s32.totalorder %v131, %v2833
    %vm2894 = vcmp.eq.s32.totalorder %v132, %v2833
    %vm2895 = vcmp.eq.s32.totalorder %v133, %v2833
    %vm2896 = vcmp.eq.s32.totalorder %v134, %v2833
    %vm2897 = vcmp.eq.s32.totalorder %v135, %v2833
    %v2899 = vlaneseq
    %v2900 = vshrl.u32 %v2899, 7
    %v2901 = vsub.s32 0, %v2900
    %v2902 = vrot.slane %v2687, %v2901
    %v2904 = vsel %vm2834, %v2902, 0.0
    %v2905 = vsel %vm2835, %v2902, 0.0
    %v2906 = vsel %vm2836, %v2902, 0.0
    %v2907 = vsel %vm2837, %v2902, 0.0
    %v2908 = vsel %vm2838, %v2902, 0.0
    %v2909 = vsel %vm2839, %v2902, 0.0
    %v2910 = vsel %vm2840, %v2902, 0.0
    %v2911 = vsel %vm2841, %v2902, 0.0
    %v2912 = vsel %vm2842, %v2902, 0.0
    %v2913 = vsel %vm2843, %v2902, 0.0
    %v2914 = vsel %vm2844, %v2902, 0.0
    %v2915 = vsel %vm2845, %v2902, 0.0
    %v2916 = vsel %vm2846, %v2902, 0.0
    %v2917 = vsel %vm2847, %v2902, 0.0
    %v2918 = vsel %vm2848, %v2902, 0.0
    %v2919 = vsel %vm2849, %v2902, 0.0
    %v2920 = vsel %vm2850, %v2902, 0.0
    %v2921 = vsel %vm2851, %v2902, 0.0
    %v2922 = vsel %vm2852, %v2902, 0.0
    %v2923 = vsel %vm2853, %v2902, 0.0
    %v2924 = vsel %vm2854, %v2902, 0.0
    %v2925 = vsel %vm2855, %v2902, 0.0
    %v2926 = vsel %vm2856, %v2902, 0.0
    %v2927 = vsel %vm2857, %v2902, 0.0
    %v2928 = vsel %vm2858, %v2902, 0.0
    %v2929 = vsel %vm2859, %v2902, 0.0
    %v2930 = vsel %vm2860, %v2902, 0.0
    %v2931 = vsel %vm2861, %v2902, 0.0
    %v2932 = vsel %vm2862, %v2902, 0.0
    %v2933 = vsel %vm2863, %v2902, 0.0
    %v2934 = vsel %vm2864, %v2902, 0.0
    %v2935 = vsel %vm2865, %v2902, 0.0
    %v2936 = vsel %vm2866, %v2902, 0.0
    %v2937 = vsel %vm2867, %v2902, 0.0
    %v2938 = vsel %vm2868, %v2902, 0.0
    %v2939 = vsel %vm2869, %v2902, 0.0
    %v2940 = vsel %vm2870, %v2902, 0.0
    %v2941 = vsel %vm2871, %v2902, 0.0
    %v2942 = vsel %vm2872, %v2902, 0.0
    %v2943 = vsel %vm2873, %v2902, 0.0
    %v2944 = vsel %vm2874, %v2902, 0.0
    %v2945 = vsel %vm2875, %v2902, 0.0
    %v2946 = vsel %vm2876, %v2902, 0.0
    %v2947 = vsel %vm2877, %v2902, 0.0
    %v2948 = vsel %vm2878, %v2902, 0.0
    %v2949 = vsel %vm2879, %v2902, 0.0
    %v2950 = vsel %vm2880, %v2902, 0.0
    %v2951 = vsel %vm2881, %v2902, 0.0
    %v2952 = vsel %vm2882, %v2902, 0.0
    %v2953 = vsel %vm2883, %v2902, 0.0
    %v2954 = vsel %vm2884, %v2902, 0.0
    %v2955 = vsel %vm2885, %v2902, 0.0
    %v2956 = vsel %vm2886, %v2902, 0.0
    %v2957 = vsel %vm2887, %v2902, 0.0
    %v2958 = vsel %vm2888, %v2902, 0.0
    %v2959 = vsel %vm2889, %v2902, 0.0
    %v2960 = vsel %vm2890, %v2902, 0.0
    %v2961 = vsel %vm2891, %v2902, 0.0
    %v2962 = vsel %vm2892, %v2902, 0.0
    %v2963 = vsel %vm2893, %v2902, 0.0
    %v2964 = vsel %vm2894, %v2902, 0.0
    %v2965 = vsel %vm2895, %v2902, 0.0
    %v2966 = vsel %vm2896, %v2902, 0.0
    %v2967 = vsel %vm2897, %v2902, 0.0
    %v2968 = vadd.f32 %v2766, %v2904
    %v2969 = vadd.f32 %v2767, %v2905
    %v2970 = vadd.f32 %v2768, %v2906
    %v2971 = vadd.f32 %v2769, %v2907
    %v2972 = vadd.f32 %v2770, %v2908
    %v2973 = vadd.f32 %v2771, %v2909
    %v2974 = vadd.f32 %v2772, %v2910
    %v2975 = vadd.f32 %v2773, %v2911
    %v2976 = vadd.f32 %v2774, %v2912
    %v2977 = vadd.f32 %v2775, %v2913
    %v2978 = vadd.f32 %v2776, %v2914
    %v2979 = vadd.f32 %v2777, %v2915
    %v2980 = vadd.f32 %v2778, %v2916
    %v2981 = vadd.f32 %v2779, %v2917
    %v2982 = vadd.f32 %v2780, %v2918
    %v2983 = vadd.f32 %v2781, %v2919
    %v2984 = vadd.f32 %v2782, %v2920
    %v2985 = vadd.f32 %v2783, %v2921
    %v2986 = vadd.f32 %v2784, %v2922
    %v2987 = vadd.f32 %v2785, %v2923
    %v2988 = vadd.f32 %v2786, %v2924
    %v2989 = vadd.f32 %v2787, %v2925
    %v2990 = vadd.f32 %v2788, %v2926
    %v2991 = vadd.f32 %v2789, %v2927
    %v2992 = vadd.f32 %v2790, %v2928
    %v2993 = vadd.f32 %v2791, %v2929
    %v2994 = vadd.f32 %v2792, %v2930
    %v2995 = vadd.f32 %v2793, %v2931
    %v2996 = vadd.f32 %v2794, %v2932
    %v2997 = vadd.f32 %v2795, %v2933
    %v2998 = vadd.f32 %v2796, %v2934
    %v2999 = vadd.f32 %v2797, %v2935
    %v3000 = vadd.f32 %v2798, %v2936
    %v3001 = vadd.f32 %v2799, %v2937
    %v3002 = vadd.f32 %v2800, %v2938
    %v3003 = vadd.f32 %v2801, %v2939
    %v3004 = vadd.f32 %v2802, %v2940
    %v3005 = vadd.f32 %v2803, %v2941
    %v3006 = vadd.f32 %v2804, %v2942
    %v3007 = vadd.f32 %v2805, %v2943
    %v3008 = vadd.f32 %v2806, %v2944
    %v3009 = vadd.f32 %v2807, %v2945
    %v3010 = vadd.f32 %v2808, %v2946
    %v3011 = vadd.f32 %v2809, %v2947
    %v3012 = vadd.f32 %v2810, %v2948
    %v3013 = vadd.f32 %v2811, %v2949
    %v3014 = vadd.f32 %v2812, %v2950
    %v3015 = vadd.f32 %v2813, %v2951
    %v3016 = vadd.f32 %v2814, %v2952
    %v3017 = vadd.f32 %v2815, %v2953
    %v3018 = vadd.f32 %v2816, %v2954
    %v3019 = vadd.f32 %v2817, %v2955
    %v3020 = vadd.f32 %v2818, %v2956
    %v3021 = vadd.f32 %v2819, %v2957
    %v3022 = vadd.f32 %v2820, %v2958
    %v3023 = vadd.f32 %v2821, %v2959
    %v3024 = vadd.f32 %v2822, %v2960
    %v3025 = vadd.f32 %v2823, %v2961
    %v3026 = vadd.f32 %v2824, %v2962
    %v3027 = vadd.f32 %v2825, %v2963
    %v3028 = vadd.f32 %v2826, %v2964
    %v3029 = vadd.f32 %v2827, %v2965
    %v3030 = vadd.f32 %v2828, %v2966
    %v3031 = vadd.f32 %v2829, %v2967
    %v3032 = vlaneseq
    %v3033 = vshrl.u32 %v3032, 7
    %v3034 = vsub.s32 0, %v3033
    %v3035 = vrot.slane %v2682, %v3034
    %vm3036 = vcmp.eq.s32.totalorder %v72, %v3035
    %vm3037 = vcmp.eq.s32.totalorder %v73, %v3035
    %vm3038 = vcmp.eq.s32.totalorder %v74, %v3035
    %vm3039 = vcmp.eq.s32.totalorder %v75, %v3035
    %vm3040 = vcmp.eq.s32.totalorder %v76, %v3035
    %vm3041 = vcmp.eq.s32.totalorder %v77, %v3035
    %vm3042 = vcmp.eq.s32.totalorder %v78, %v3035
    %vm3043 = vcmp.eq.s32.totalorder %v79, %v3035
    %vm3044 = vcmp.eq.s32.totalorder %v80, %v3035
    %vm3045 = vcmp.eq.s32.totalorder %v81, %v3035
    %vm3046 = vcmp.eq.s32.totalorder %v82, %v3035
    %vm3047 = vcmp.eq.s32.totalorder %v83, %v3035
    %vm3048 = vcmp.eq.s32.totalorder %v84, %v3035
    %vm3049 = vcmp.eq.s32.totalorder %v85, %v3035
    %vm3050 = vcmp.eq.s32.totalorder %v86, %v3035
    %vm3051 = vcmp.eq.s32.totalorder %v87, %v3035
    %vm3052 = vcmp.eq.s32.totalorder %v88, %v3035
    %vm3053 = vcmp.eq.s32.totalorder %v89, %v3035
    %vm3054 = vcmp.eq.s32.totalorder %v90, %v3035
    %vm3055 = vcmp.eq.s32.totalorder %v91, %v3035
    %vm3056 = vcmp.eq.s32.totalorder %v92, %v3035
    %vm3057 = vcmp.eq.s32.totalorder %v93, %v3035
    %vm3058 = vcmp.eq.s32.totalorder %v94, %v3035
    %vm3059 = vcmp.eq.s32.totalorder %v95, %v3035
    %vm3060 = vcmp.eq.s32.totalorder %v96, %v3035
    %vm3061 = vcmp.eq.s32.totalorder %v97, %v3035
    %vm3062 = vcmp.eq.s32.totalorder %v98, %v3035
    %vm3063 = vcmp.eq.s32.totalorder %v99, %v3035
    %vm3064 = vcmp.eq.s32.totalorder %v100, %v3035
    %vm3065 = vcmp.eq.s32.totalorder %v101, %v3035
    %vm3066 = vcmp.eq.s32.totalorder %v102, %v3035
    %vm3067 = vcmp.eq.s32.totalorder %v103, %v3035
    %vm3068 = vcmp.eq.s32.totalorder %v104, %v3035
    %vm3069 = vcmp.eq.s32.totalorder %v105, %v3035
    %vm3070 = vcmp.eq.s32.totalorder %v106, %v3035
    %vm3071 = vcmp.eq.s32.totalorder %v107, %v3035
    %vm3072 = vcmp.eq.s32.totalorder %v108, %v3035
    %vm3073 = vcmp.eq.s32.totalorder %v109, %v3035
    %vm3074 = vcmp.eq.s32.totalorder %v110, %v3035
    %vm3075 = vcmp.eq.s32.totalorder %v111, %v3035
    %vm3076 = vcmp.eq.s32.totalorder %v112, %v3035
    %vm3077 = vcmp.eq.s32.totalorder %v113, %v3035
    %vm3078 = vcmp.eq.s32.totalorder %v114, %v3035
    %vm3079 = vcmp.eq.s32.totalorder %v115, %v3035
    %vm3080 = vcmp.eq.s32.totalorder %v116, %v3035
    %vm3081 = vcmp.eq.s32.totalorder %v117, %v3035
    %vm3082 = vcmp.eq.s32.totalorder %v118, %v3035
    %vm3083 = vcmp.eq.s32.totalorder %v119, %v3035
    %vm3084 = vcmp.eq.s32.totalorder %v120, %v3035
    %vm3085 = vcmp.eq.s32.totalorder %v121, %v3035
    %vm3086 = vcmp.eq.s32.totalorder %v122, %v3035
    %vm3087 = vcmp.eq.s32.totalorder %v123, %v3035
    %vm3088 = vcmp.eq.s32.totalorder %v124, %v3035
    %vm3089 = vcmp.eq.s32.totalorder %v125, %v3035
    %vm3090 = vcmp.eq.s32.totalorder %v126, %v3035
    %vm3091 = vcmp.eq.s32.totalorder %v127, %v3035
    %vm3092 = vcmp.eq.s32.totalorder %v128, %v3035
    %vm3093 = vcmp.eq.s32.totalorder %v129, %v3035
    %vm3094 = vcmp.eq.s32.totalorder %v130, %v3035
    %vm3095 = vcmp.eq.s32.totalorder %v131, %v3035
    %vm3096 = vcmp.eq.s32.totalorder %v132, %v3035
    %vm3097 = vcmp.eq.s32.totalorder %v133, %v3035
    %vm3098 = vcmp.eq.s32.totalorder %v134, %v3035
    %vm3099 = vcmp.eq.s32.totalorder %v135, %v3035
    %v3101 = vlaneseq
    %v3102 = vshrl.u32 %v3101, 7
    %v3103 = vsub.s32 0, %v3102
    %v3104 = vrot.slane %v2689, %v3103
    %v3106 = vsel %vm3036, %v3104, 0.0
    %v3107 = vsel %vm3037, %v3104, 0.0
    %v3108 = vsel %vm3038, %v3104, 0.0
    %v3109 = vsel %vm3039, %v3104, 0.0
    %v3110 = vsel %vm3040, %v3104, 0.0
    %v3111 = vsel %vm3041, %v3104, 0.0
    %v3112 = vsel %vm3042, %v3104, 0.0
    %v3113 = vsel %vm3043, %v3104, 0.0
    %v3114 = vsel %vm3044, %v3104, 0.0
    %v3115 = vsel %vm3045, %v3104, 0.0
    %v3116 = vsel %vm3046, %v3104, 0.0
    %v3117 = vsel %vm3047, %v3104, 0.0
    %v3118 = vsel %vm3048, %v3104, 0.0
    %v3119 = vsel %vm3049, %v3104, 0.0
    %v3120 = vsel %vm3050, %v3104, 0.0
    %v3121 = vsel %vm3051, %v3104, 0.0
    %v3122 = vsel %vm3052, %v3104, 0.0
    %v3123 = vsel %vm3053, %v3104, 0.0
    %v3124 = vsel %vm3054, %v3104, 0.0
    %v3125 = vsel %vm3055, %v3104, 0.0
    %v3126 = vsel %vm3056, %v3104, 0.0
    %v3127 = vsel %vm3057, %v3104, 0.0
    %v3128 = vsel %vm3058, %v3104, 0.0
    %v3129 = vsel %vm3059, %v3104, 0.0
    %v3130 = vsel %vm3060, %v3104, 0.0
    %v3131 = vsel %vm3061, %v3104, 0.0
    %v3132 = vsel %vm3062, %v3104, 0.0
    %v3133 = vsel %vm3063, %v3104, 0.0
    %v3134 = vsel %vm3064, %v3104, 0.0
    %v3135 = vsel %vm3065, %v3104, 0.0
    %v3136 = vsel %vm3066, %v3104, 0.0
    %v3137 = vsel %vm3067, %v3104, 0.0
    %v3138 = vsel %vm3068, %v3104, 0.0
    %v3139 = vsel %vm3069, %v3104, 0.0
    %v3140 = vsel %vm3070, %v3104, 0.0
    %v3141 = vsel %vm3071, %v3104, 0.0
    %v3142 = vsel %vm3072, %v3104, 0.0
    %v3143 = vsel %vm3073, %v3104, 0.0
    %v3144 = vsel %vm3074, %v3104, 0.0
    %v3145 = vsel %vm3075, %v3104, 0.0
    %v3146 = vsel %vm3076, %v3104, 0.0
    %v3147 = vsel %vm3077, %v3104, 0.0
    %v3148 = vsel %vm3078, %v3104, 0.0
    %v3149 = vsel %vm3079, %v3104, 0.0
    %v3150 = vsel %vm3080, %v3104, 0.0
    %v3151 = vsel %vm3081, %v3104, 0.0
    %v3152 = vsel %vm3082, %v3104, 0.0
    %v3153 = vsel %vm3083, %v3104, 0.0
    %v3154 = vsel %vm3084, %v3104, 0.0
    %v3155 = vsel %vm3085, %v3104, 0.0
    %v3156 = vsel %vm3086, %v3104, 0.0
    %v3157 = vsel %vm3087, %v3104, 0.0
    %v3158 = vsel %vm3088, %v3104, 0.0
    %v3159 = vsel %vm3089, %v3104, 0.0
    %v3160 = vsel %vm3090, %v3104, 0.0
    %v3161 = vsel %vm3091, %v3104, 0.0
    %v3162 = vsel %vm3092, %v3104, 0.0
    %v3163 = vsel %vm3093, %v3104, 0.0
    %v3164 = vsel %vm3094, %v3104, 0.0
    %v3165 = vsel %vm3095, %v3104, 0.0
    %v3166 = vsel %vm3096, %v3104, 0.0
    %v3167 = vsel %vm3097, %v3104, 0.0
    %v3168 = vsel %vm3098, %v3104, 0.0
    %v3169 = vsel %vm3099, %v3104, 0.0
    %v3170 = vadd.f32 %v2968, %v3106
    %v3171 = vadd.f32 %v2969, %v3107
    %v3172 = vadd.f32 %v2970, %v3108
    %v3173 = vadd.f32 %v2971, %v3109
    %v3174 = vadd.f32 %v2972, %v3110
    %v3175 = vadd.f32 %v2973, %v3111
    %v3176 = vadd.f32 %v2974, %v3112
    %v3177 = vadd.f32 %v2975, %v3113
    %v3178 = vadd.f32 %v2976, %v3114
    %v3179 = vadd.f32 %v2977, %v3115
    %v3180 = vadd.f32 %v2978, %v3116
    %v3181 = vadd.f32 %v2979, %v3117
    %v3182 = vadd.f32 %v2980, %v3118
    %v3183 = vadd.f32 %v2981, %v3119
    %v3184 = vadd.f32 %v2982, %v3120
    %v3185 = vadd.f32 %v2983, %v3121
    %v3186 = vadd.f32 %v2984, %v3122
    %v3187 = vadd.f32 %v2985, %v3123
    %v3188 = vadd.f32 %v2986, %v3124
    %v3189 = vadd.f32 %v2987, %v3125
    %v3190 = vadd.f32 %v2988, %v3126
    %v3191 = vadd.f32 %v2989, %v3127
    %v3192 = vadd.f32 %v2990, %v3128
    %v3193 = vadd.f32 %v2991, %v3129
    %v3194 = vadd.f32 %v2992, %v3130
    %v3195 = vadd.f32 %v2993, %v3131
    %v3196 = vadd.f32 %v2994, %v3132
    %v3197 = vadd.f32 %v2995, %v3133
    %v3198 = vadd.f32 %v2996, %v3134
    %v3199 = vadd.f32 %v2997, %v3135
    %v3200 = vadd.f32 %v2998, %v3136
    %v3201 = vadd.f32 %v2999, %v3137
    %v3202 = vadd.f32 %v3000, %v3138
    %v3203 = vadd.f32 %v3001, %v3139
    %v3204 = vadd.f32 %v3002, %v3140
    %v3205 = vadd.f32 %v3003, %v3141
    %v3206 = vadd.f32 %v3004, %v3142
    %v3207 = vadd.f32 %v3005, %v3143
    %v3208 = vadd.f32 %v3006, %v3144
    %v3209 = vadd.f32 %v3007, %v3145
    %v3210 = vadd.f32 %v3008, %v3146
    %v3211 = vadd.f32 %v3009, %v3147
    %v3212 = vadd.f32 %v3010, %v3148
    %v3213 = vadd.f32 %v3011, %v3149
    %v3214 = vadd.f32 %v3012, %v3150
    %v3215 = vadd.f32 %v3013, %v3151
    %v3216 = vadd.f32 %v3014, %v3152
    %v3217 = vadd.f32 %v3015, %v3153
    %v3218 = vadd.f32 %v3016, %v3154
    %v3219 = vadd.f32 %v3017, %v3155
    %v3220 = vadd.f32 %v3018, %v3156
    %v3221 = vadd.f32 %v3019, %v3157
    %v3222 = vadd.f32 %v3020, %v3158
    %v3223 = vadd.f32 %v3021, %v3159
    %v3224 = vadd.f32 %v3022, %v3160
    %v3225 = vadd.f32 %v3023, %v3161
    %v3226 = vadd.f32 %v3024, %v3162
    %v3227 = vadd.f32 %v3025, %v3163
    %v3228 = vadd.f32 %v3026, %v3164
    %v3229 = vadd.f32 %v3027, %v3165
    %v3230 = vadd.f32 %v3028, %v3166
    %v3231 = vadd.f32 %v3029, %v3167
    %v3232 = vadd.f32 %v3030, %v3168
    %v3233 = vadd.f32 %v3031, %v3169
    %v3234 = vlaneseq
    %v3235 = vshrl.u32 %v3234, 7
    %v3236 = vsub.s32 0, %v3235
    %v3237 = vrot.slane %v2683, %v3236
    %vm3238 = vcmp.eq.s32.totalorder %v72, %v3237
    %vm3239 = vcmp.eq.s32.totalorder %v73, %v3237
    %vm3240 = vcmp.eq.s32.totalorder %v74, %v3237
    %vm3241 = vcmp.eq.s32.totalorder %v75, %v3237
    %vm3242 = vcmp.eq.s32.totalorder %v76, %v3237
    %vm3243 = vcmp.eq.s32.totalorder %v77, %v3237
    %vm3244 = vcmp.eq.s32.totalorder %v78, %v3237
    %vm3245 = vcmp.eq.s32.totalorder %v79, %v3237
    %vm3246 = vcmp.eq.s32.totalorder %v80, %v3237
    %vm3247 = vcmp.eq.s32.totalorder %v81, %v3237
    %vm3248 = vcmp.eq.s32.totalorder %v82, %v3237
    %vm3249 = vcmp.eq.s32.totalorder %v83, %v3237
    %vm3250 = vcmp.eq.s32.totalorder %v84, %v3237
    %vm3251 = vcmp.eq.s32.totalorder %v85, %v3237
    %vm3252 = vcmp.eq.s32.totalorder %v86, %v3237
    %vm3253 = vcmp.eq.s32.totalorder %v87, %v3237
    %vm3254 = vcmp.eq.s32.totalorder %v88, %v3237
    %vm3255 = vcmp.eq.s32.totalorder %v89, %v3237
    %vm3256 = vcmp.eq.s32.totalorder %v90, %v3237
    %vm3257 = vcmp.eq.s32.totalorder %v91, %v3237
    %vm3258 = vcmp.eq.s32.totalorder %v92, %v3237
    %vm3259 = vcmp.eq.s32.totalorder %v93, %v3237
    %vm3260 = vcmp.eq.s32.totalorder %v94, %v3237
    %vm3261 = vcmp.eq.s32.totalorder %v95, %v3237
    %vm3262 = vcmp.eq.s32.totalorder %v96, %v3237
    %vm3263 = vcmp.eq.s32.totalorder %v97, %v3237
    %vm3264 = vcmp.eq.s32.totalorder %v98, %v3237
    %vm3265 = vcmp.eq.s32.totalorder %v99, %v3237
    %vm3266 = vcmp.eq.s32.totalorder %v100, %v3237
    %vm3267 = vcmp.eq.s32.totalorder %v101, %v3237
    %vm3268 = vcmp.eq.s32.totalorder %v102, %v3237
    %vm3269 = vcmp.eq.s32.totalorder %v103, %v3237
    %vm3270 = vcmp.eq.s32.totalorder %v104, %v3237
    %vm3271 = vcmp.eq.s32.totalorder %v105, %v3237
    %vm3272 = vcmp.eq.s32.totalorder %v106, %v3237
    %vm3273 = vcmp.eq.s32.totalorder %v107, %v3237
    %vm3274 = vcmp.eq.s32.totalorder %v108, %v3237
    %vm3275 = vcmp.eq.s32.totalorder %v109, %v3237
    %vm3276 = vcmp.eq.s32.totalorder %v110, %v3237
    %vm3277 = vcmp.eq.s32.totalorder %v111, %v3237
    %vm3278 = vcmp.eq.s32.totalorder %v112, %v3237
    %vm3279 = vcmp.eq.s32.totalorder %v113, %v3237
    %vm3280 = vcmp.eq.s32.totalorder %v114, %v3237
    %vm3281 = vcmp.eq.s32.totalorder %v115, %v3237
    %vm3282 = vcmp.eq.s32.totalorder %v116, %v3237
    %vm3283 = vcmp.eq.s32.totalorder %v117, %v3237
    %vm3284 = vcmp.eq.s32.totalorder %v118, %v3237
    %vm3285 = vcmp.eq.s32.totalorder %v119, %v3237
    %vm3286 = vcmp.eq.s32.totalorder %v120, %v3237
    %vm3287 = vcmp.eq.s32.totalorder %v121, %v3237
    %vm3288 = vcmp.eq.s32.totalorder %v122, %v3237
    %vm3289 = vcmp.eq.s32.totalorder %v123, %v3237
    %vm3290 = vcmp.eq.s32.totalorder %v124, %v3237
    %vm3291 = vcmp.eq.s32.totalorder %v125, %v3237
    %vm3292 = vcmp.eq.s32.totalorder %v126, %v3237
    %vm3293 = vcmp.eq.s32.totalorder %v127, %v3237
    %vm3294 = vcmp.eq.s32.totalorder %v128, %v3237
    %vm3295 = vcmp.eq.s32.totalorder %v129, %v3237
    %vm3296 = vcmp.eq.s32.totalorder %v130, %v3237
    %vm3297 = vcmp.eq.s32.totalorder %v131, %v3237
    %vm3298 = vcmp.eq.s32.totalorder %v132, %v3237
    %vm3299 = vcmp.eq.s32.totalorder %v133, %v3237
    %vm3300 = vcmp.eq.s32.totalorder %v134, %v3237
    %vm3301 = vcmp.eq.s32.totalorder %v135, %v3237
    %v3303 = vlaneseq
    %v3304 = vshrl.u32 %v3303, 7
    %v3305 = vsub.s32 0, %v3304
    %v3306 = vrot.slane %v2691, %v3305
    %v3308 = vsel %vm3238, %v3306, 0.0
    %v3309 = vsel %vm3239, %v3306, 0.0
    %v3310 = vsel %vm3240, %v3306, 0.0
    %v3311 = vsel %vm3241, %v3306, 0.0
    %v3312 = vsel %vm3242, %v3306, 0.0
    %v3313 = vsel %vm3243, %v3306, 0.0
    %v3314 = vsel %vm3244, %v3306, 0.0
    %v3315 = vsel %vm3245, %v3306, 0.0
    %v3316 = vsel %vm3246, %v3306, 0.0
    %v3317 = vsel %vm3247, %v3306, 0.0
    %v3318 = vsel %vm3248, %v3306, 0.0
    %v3319 = vsel %vm3249, %v3306, 0.0
    %v3320 = vsel %vm3250, %v3306, 0.0
    %v3321 = vsel %vm3251, %v3306, 0.0
    %v3322 = vsel %vm3252, %v3306, 0.0
    %v3323 = vsel %vm3253, %v3306, 0.0
    %v3324 = vsel %vm3254, %v3306, 0.0
    %v3325 = vsel %vm3255, %v3306, 0.0
    %v3326 = vsel %vm3256, %v3306, 0.0
    %v3327 = vsel %vm3257, %v3306, 0.0
    %v3328 = vsel %vm3258, %v3306, 0.0
    %v3329 = vsel %vm3259, %v3306, 0.0
    %v3330 = vsel %vm3260, %v3306, 0.0
    %v3331 = vsel %vm3261, %v3306, 0.0
    %v3332 = vsel %vm3262, %v3306, 0.0
    %v3333 = vsel %vm3263, %v3306, 0.0
    %v3334 = vsel %vm3264, %v3306, 0.0
    %v3335 = vsel %vm3265, %v3306, 0.0
    %v3336 = vsel %vm3266, %v3306, 0.0
    %v3337 = vsel %vm3267, %v3306, 0.0
    %v3338 = vsel %vm3268, %v3306, 0.0
    %v3339 = vsel %vm3269, %v3306, 0.0
    %v3340 = vsel %vm3270, %v3306, 0.0
    %v3341 = vsel %vm3271, %v3306, 0.0
    %v3342 = vsel %vm3272, %v3306, 0.0
    %v3343 = vsel %vm3273, %v3306, 0.0
    %v3344 = vsel %vm3274, %v3306, 0.0
    %v3345 = vsel %vm3275, %v3306, 0.0
    %v3346 = vsel %vm3276, %v3306, 0.0
    %v3347 = vsel %vm3277, %v3306, 0.0
    %v3348 = vsel %vm3278, %v3306, 0.0
    %v3349 = vsel %vm3279, %v3306, 0.0
    %v3350 = vsel %vm3280, %v3306, 0.0
    %v3351 = vsel %vm3281, %v3306, 0.0
    %v3352 = vsel %vm3282, %v3306, 0.0
    %v3353 = vsel %vm3283, %v3306, 0.0
    %v3354 = vsel %vm3284, %v3306, 0.0
    %v3355 = vsel %vm3285, %v3306, 0.0
    %v3356 = vsel %vm3286, %v3306, 0.0
    %v3357 = vsel %vm3287, %v3306, 0.0
    %v3358 = vsel %vm3288, %v3306, 0.0
    %v3359 = vsel %vm3289, %v3306, 0.0
    %v3360 = vsel %vm3290, %v3306, 0.0
    %v3361 = vsel %vm3291, %v3306, 0.0
    %v3362 = vsel %vm3292, %v3306, 0.0
    %v3363 = vsel %vm3293, %v3306, 0.0
    %v3364 = vsel %vm3294, %v3306, 0.0
    %v3365 = vsel %vm3295, %v3306, 0.0
    %v3366 = vsel %vm3296, %v3306, 0.0
    %v3367 = vsel %vm3297, %v3306, 0.0
    %v3368 = vsel %vm3298, %v3306, 0.0
    %v3369 = vsel %vm3299, %v3306, 0.0
    %v3370 = vsel %vm3300, %v3306, 0.0
    %v3371 = vsel %vm3301, %v3306, 0.0
    %v3372 = vadd.f32 %v3170, %v3308
    %v3373 = vadd.f32 %v3171, %v3309
    %v3374 = vadd.f32 %v3172, %v3310
    %v3375 = vadd.f32 %v3173, %v3311
    %v3376 = vadd.f32 %v3174, %v3312
    %v3377 = vadd.f32 %v3175, %v3313
    %v3378 = vadd.f32 %v3176, %v3314
    %v3379 = vadd.f32 %v3177, %v3315
    %v3380 = vadd.f32 %v3178, %v3316
    %v3381 = vadd.f32 %v3179, %v3317
    %v3382 = vadd.f32 %v3180, %v3318
    %v3383 = vadd.f32 %v3181, %v3319
    %v3384 = vadd.f32 %v3182, %v3320
    %v3385 = vadd.f32 %v3183, %v3321
    %v3386 = vadd.f32 %v3184, %v3322
    %v3387 = vadd.f32 %v3185, %v3323
    %v3388 = vadd.f32 %v3186, %v3324
    %v3389 = vadd.f32 %v3187, %v3325
    %v3390 = vadd.f32 %v3188, %v3326
    %v3391 = vadd.f32 %v3189, %v3327
    %v3392 = vadd.f32 %v3190, %v3328
    %v3393 = vadd.f32 %v3191, %v3329
    %v3394 = vadd.f32 %v3192, %v3330
    %v3395 = vadd.f32 %v3193, %v3331
    %v3396 = vadd.f32 %v3194, %v3332
    %v3397 = vadd.f32 %v3195, %v3333
    %v3398 = vadd.f32 %v3196, %v3334
    %v3399 = vadd.f32 %v3197, %v3335
    %v3400 = vadd.f32 %v3198, %v3336
    %v3401 = vadd.f32 %v3199, %v3337
    %v3402 = vadd.f32 %v3200, %v3338
    %v3403 = vadd.f32 %v3201, %v3339
    %v3404 = vadd.f32 %v3202, %v3340
    %v3405 = vadd.f32 %v3203, %v3341
    %v3406 = vadd.f32 %v3204, %v3342
    %v3407 = vadd.f32 %v3205, %v3343
    %v3408 = vadd.f32 %v3206, %v3344
    %v3409 = vadd.f32 %v3207, %v3345
    %v3410 = vadd.f32 %v3208, %v3346
    %v3411 = vadd.f32 %v3209, %v3347
    %v3412 = vadd.f32 %v3210, %v3348
    %v3413 = vadd.f32 %v3211, %v3349
    %v3414 = vadd.f32 %v3212, %v3350
    %v3415 = vadd.f32 %v3213, %v3351
    %v3416 = vadd.f32 %v3214, %v3352
    %v3417 = vadd.f32 %v3215, %v3353
    %v3418 = vadd.f32 %v3216, %v3354
    %v3419 = vadd.f32 %v3217, %v3355
    %v3420 = vadd.f32 %v3218, %v3356
    %v3421 = vadd.f32 %v3219, %v3357
    %v3422 = vadd.f32 %v3220, %v3358
    %v3423 = vadd.f32 %v3221, %v3359
    %v3424 = vadd.f32 %v3222, %v3360
    %v3425 = vadd.f32 %v3223, %v3361
    %v3426 = vadd.f32 %v3224, %v3362
    %v3427 = vadd.f32 %v3225, %v3363
    %v3428 = vadd.f32 %v3226, %v3364
    %v3429 = vadd.f32 %v3227, %v3365
    %v3430 = vadd.f32 %v3228, %v3366
    %v3431 = vadd.f32 %v3229, %v3367
    %v3432 = vadd.f32 %v3230, %v3368
    %v3433 = vadd.f32 %v3231, %v3369
    %v3434 = vadd.f32 %v3232, %v3370
    %v3435 = vadd.f32 %v3233, %v3371
    %s3436 = scalar_lea.vmem [#allocation6], 640
    %v3437 = vld [vmem:[%s3436] sm:$0xff]
    %v3438 = vld [vmem:[%s3436 + $0x8] sm:$0xff]
    %v3439 = vld [vmem:[%s3436 + $0x10] sm:$0xff]
    %v3440 = vld [vmem:[%s3436 + $0x18] sm:$0xff]
    %v3441 = vld [vmem:[%s3436 + $0x20] sm:$0xff]
    %v3442 = vld [vmem:[%s3436 + $0x28] sm:$0xff]
    %v3443 = vld [vmem:[%s3436 + $0x30] sm:$0xff]
    %v3444 = vld [vmem:[%s3436 + $0x38] sm:$0xff]
    %v3445 = vld [vmem:[%s3436 + $0x40] sm:$0xff]
    %v3446 = vld [vmem:[%s3436 + $0x48] sm:$0xff]
    %v3447 = vld [vmem:[%s3436 + $0x50] sm:$0xff]
    %v3448 = vld [vmem:[%s3436 + $0x58] sm:$0xff]
    %v3449 = vld [vmem:[%s3436 + $0x60] sm:$0xff]
    %v3450 = vld [vmem:[%s3436 + $0x68] sm:$0xff]
    %v3451 = vld [vmem:[%s3436 + $0x70] sm:$0xff]
    %v3452 = vld [vmem:[%s3436 + $0x78] sm:$0xff]
    %v3453 = vld [vmem:[%s3436 + $0x80] sm:$0xff]
    %v3454 = vld [vmem:[%s3436 + $0x88] sm:$0xff]
    %v3455 = vld [vmem:[%s3436 + $0x90] sm:$0xff]
    %v3456 = vld [vmem:[%s3436 + $0x98] sm:$0xff]
    %v3457 = vld [vmem:[%s3436 + $0xa0] sm:$0xff]
    %v3458 = vld [vmem:[%s3436 + $0xa8] sm:$0xff]
    %v3459 = vld [vmem:[%s3436 + $0xb0] sm:$0xff]
    %v3460 = vld [vmem:[%s3436 + $0xb8] sm:$0xff]
    %v3461 = vld [vmem:[%s3436 + $0xc0] sm:$0xff]
    %v3462 = vld [vmem:[%s3436 + $0xc8] sm:$0xff]
    %v3463 = vld [vmem:[%s3436 + $0xd0] sm:$0xff]
    %v3464 = vld [vmem:[%s3436 + $0xd8] sm:$0xff]
    %v3465 = vld [vmem:[%s3436 + $0xe0] sm:$0xff]
    %v3466 = vld [vmem:[%s3436 + $0xe8] sm:$0xff]
    %v3467 = vld [vmem:[%s3436 + $0xf0] sm:$0xff]
    %v3468 = vld [vmem:[%s3436 + $0xf8] sm:$0xff]
    %v3469 = vld [vmem:[%s3436 + $0x100] sm:$0xff]
    %v3470 = vld [vmem:[%s3436 + $0x108] sm:$0xff]
    %v3471 = vld [vmem:[%s3436 + $0x110] sm:$0xff]
    %v3472 = vld [vmem:[%s3436 + $0x118] sm:$0xff]
    %v3473 = vld [vmem:[%s3436 + $0x120] sm:$0xff]
    %v3474 = vld [vmem:[%s3436 + $0x128] sm:$0xff]
    %v3475 = vld [vmem:[%s3436 + $0x130] sm:$0xff]
    %v3476 = vld [vmem:[%s3436 + $0x138] sm:$0xff]
    %3477 = vmatprep.subr.mxu0 0.0
    %3478 = vmatpush1.msra.mxu0 %v3372
    %3479 = vmatprep.subr.mxu0 0.0
    %3480 = vmatpush1.msra.mxu0 %v3373
    %3481 = vmatprep.subr.mxu0 0.0
    %3482 = vmatpush1.msra.mxu0 %v3374
    %3483 = vmatprep.subr.mxu0 0.0
    %3484 = vmatpush1.msra.mxu0 %v3375
    %3485 = vmatprep.subr.mxu0 0.0
    %3486 = vmatpush1.msra.mxu0 %v3376
    %3487 = vmatprep.subr.mxu0 0.0
    %3488 = vmatpush1.msra.mxu0 %v3377
    %3489 = vmatprep.subr.mxu0 0.0
    %3490 = vmatpush1.msra.mxu0 %v3378
    %3491 = vmatprep.subr.mxu0 0.0
    %3492 = vmatpush1.msra.mxu0 %v3379
    %3493 = vmatprep.subr.mxu0 0.0
    %3494 = vmatpush1.msra.mxu0 %v3380
    %3495 = vmatprep.subr.mxu0 0.0
    %3496 = vmatpush1.msra.mxu0 %v3381
    %3497 = vmatprep.subr.mxu0 0.0
    %3498 = vmatpush1.msra.mxu0 %v3382
    %3499 = vmatprep.subr.mxu0 0.0
    %3500 = vmatpush1.msra.mxu0 %v3383
    %3501 = vmatprep.subr.mxu0 0.0
    %3502 = vmatpush1.msra.mxu0 %v3384
    %3503 = vmatprep.subr.mxu0 0.0
    %3504 = vmatpush1.msra.mxu0 %v3385
    %3505 = vmatprep.subr.mxu0 0.0
    %3506 = vmatpush1.msra.mxu0 %v3386
    %3507 = vmatprep.subr.mxu0 0.0
    %3508 = vmatpush1.msra.mxu0 %v3387
    %3509 = vmatprep.subr.mxu0 0.0
    %3510 = vmatpush1.msra.mxu0 %v3388
    %3511 = vmatprep.subr.mxu0 0.0
    %3512 = vmatpush1.msra.mxu0 %v3389
    %3513 = vmatprep.subr.mxu0 0.0
    %3514 = vmatpush1.msra.mxu0 %v3390
    %3515 = vmatprep.subr.mxu0 0.0
    %3516 = vmatpush1.msra.mxu0 %v3391
    %3517 = vmatprep.subr.mxu0 0.0
    %3518 = vmatpush1.msra.mxu0 %v3392
    %3519 = vmatprep.subr.mxu0 0.0
    %3520 = vmatpush1.msra.mxu0 %v3393
    %3521 = vmatprep.subr.mxu0 0.0
    %3522 = vmatpush1.msra.mxu0 %v3394
    %3523 = vmatprep.subr.mxu0 0.0
    %3524 = vmatpush1.msra.mxu0 %v3395
    %3525 = vmatprep.subr.mxu0 0.0
    %3526 = vmatpush1.msra.mxu0 %v3396
    %3527 = vmatprep.subr.mxu0 0.0
    %3528 = vmatpush1.msra.mxu0 %v3397
    %3529 = vmatprep.subr.mxu0 0.0
    %3530 = vmatpush1.msra.mxu0 %v3398
    %3531 = vmatprep.subr.mxu0 0.0
    %3532 = vmatpush1.msra.mxu0 %v3399
    %3533 = vmatprep.subr.mxu0 0.0
    %3534 = vmatpush1.msra.mxu0 %v3400
    %3535 = vmatprep.subr.mxu0 0.0
    %3536 = vmatpush1.msra.mxu0 %v3401
    %3537 = vmatprep.subr.mxu0 0.0
    %3538 = vmatpush1.msra.mxu0 %v3402
    %3539 = vmatprep.subr.mxu0 0.0
    %3540 = vmatpush1.msra.mxu0 %v3403
    %3541 = vmatprep.mubr.f32.mxu0 %v3438
    %3542 = vmatmul.mubr.f32.gmra.mrb[0].mxu0 %v3437
    %v3543 = vpop.f32.mrb[0].mxu0
    %v3544 = vadd.f32 0.0, %v3543
    %v3545 = vpop.f32.mrb[0].mxu0
    %3546 = vmatprep.mubr.f32.mxu0 %v3442
    %3547 = vmatmul.mubr.f32.gmra.mrb[0].mxu0 %v3441
    %v3548 = vpop.f32.mrb[0].mxu0
    %v3549 = vadd.f32 0.0, %v3548
    %v3550 = vpop.f32.mrb[0].mxu0
    %3551 = vmatprep.mubr.f32.mxu0 %v3446
    %3552 = vmatmul.mubr.f32.gmra.mrb[0].mxu0 %v3445
    %v3553 = vpop.f32.mrb[0].mxu0
    %v3554 = vadd.f32 0.0, %v3553
    %v3555 = vpop.f32.mrb[0].mxu0
    %3556 = vmatprep.mubr.f32.mxu0 %v3450
    %3557 = vmatmul.mubr.f32.gmra.mrb[0].mxu0 %v3449
    %v3558 = vpop.f32.mrb[0].mxu0
    %v3559 = vadd.f32 0.0, %v3558
    %v3560 = vpop.f32.mrb[0].mxu0
    %3561 = vmatprep.mubr.f32.mxu0 %v3454
    %3562 = vmatmul.mubr.f32.gmra.mrb[0].mxu0 %v3453
    %v3563 = vpop.f32.mrb[0].mxu0
    %v3564 = vadd.f32 0.0, %v3563
    %v3565 = vpop.f32.mrb[0].mxu0
    %3566 = vmatprep.mubr.f32.mxu0 %v3458
    %3567 = vmatmul.mubr.f32.gmra.mrb[0].mxu0 %v3457
    %v3568 = vpop.f32.mrb[0].mxu0
    %v3569 = vadd.f32 0.0, %v3568
    %v3570 = vpop.f32.mrb[0].mxu0
    %3571 = vmatprep.mubr.f32.mxu0 %v3462
    %3572 = vmatmul.mubr.f32.gmra.mrb[0].mxu0 %v3461
    %v3573 = vpop.f32.mrb[0].mxu0
    %v3574 = vadd.f32 0.0, %v3573
    %v3575 = vpop.f32.mrb[0].mxu0
    %3576 = vmatprep.mubr.f32.mxu0 %v3466
    %3577 = vmatmul.mubr.f32.gmra.mrb[0].mxu0 %v3465
    %v3578 = vpop.f32.mrb[0].mxu0
    %v3579 = vadd.f32 0.0, %v3578
    %v3580 = vpop.f32.mrb[0].mxu0
    %3581 = vmatprep.mubr.f32.mxu0 %v3470
    %3582 = vmatmul.mubr.f32.gmra.mrb[0].mxu0 %v3469
    %v3583 = vpop.f32.mrb[0].mxu0
    %v3584 = vadd.f32 0.0, %v3583
    %v3585 = vpop.f32.mrb[0].mxu0
    %3586 = vmatprep.mubr.f32.mxu0 %v3474
    %3587 = vmatmul.mubr.f32.gmra.mrb[0].mxu0 %v3473
    %v3588 = vpop.f32.mrb[0].mxu0
    %v3589 = vadd.f32 0.0, %v3588
    %v3590 = vpop.f32.mrb[0].mxu0
    %3591 = vdwg.mxu0
    %3592 = vmatprep.subr.mxu0 0.0
    %3593 = vmatpush1.msra.mxu0 %v3404
    %3594 = vmatprep.subr.mxu0 0.0
    %3595 = vmatpush1.msra.mxu0 %v3405
    %3596 = vmatprep.subr.mxu0 0.0
    %3597 = vmatpush1.msra.mxu0 %v3406
    %3598 = vmatprep.subr.mxu0 0.0
    %3599 = vmatpush1.msra.mxu0 %v3407
    %3600 = vmatprep.subr.mxu0 0.0
    %3601 = vmatpush1.msra.mxu0 %v3408
    %3602 = vmatprep.subr.mxu0 0.0
    %3603 = vmatpush1.msra.mxu0 %v3409
    %3604 = vmatprep.subr.mxu0 0.0
    %3605 = vmatpush1.msra.mxu0 %v3410
    %3606 = vmatprep.subr.mxu0 0.0
    %3607 = vmatpush1.msra.mxu0 %v3411
    %3608 = vmatprep.subr.mxu0 0.0
    %3609 = vmatpush1.msra.mxu0 %v3412
    %3610 = vmatprep.subr.mxu0 0.0
    %3611 = vmatpush1.msra.mxu0 %v3413
    %3612 = vmatprep.subr.mxu0 0.0
    %3613 = vmatpush1.msra.mxu0 %v3414
    %3614 = vmatprep.subr.mxu0 0.0
    %3615 = vmatpush1.msra.mxu0 %v3415
    %3616 = vmatprep.subr.mxu0 0.0
    %3617 = vmatpush1.msra.mxu0 %v3416
    %3618 = vmatprep.subr.mxu0 0.0
    %3619 = vmatpush1.msra.mxu0 %v3417
    %3620 = vmatprep.subr.mxu0 0.0
    %3621 = vmatpush1.msra.mxu0 %v3418
    %3622 = vmatprep.subr.mxu0 0.0
    %3623 = vmatpush1.msra.mxu0 %v3419
    %3624 = vmatprep.subr.mxu0 0.0
    %3625 = vmatpush1.msra.mxu0 %v3420
    %3626 = vmatprep.subr.mxu0 0.0
    %3627 = vmatpush1.msra.mxu0 %v3421
    %3628 = vmatprep.subr.mxu0 0.0
    %3629 = vmatpush1.msra.mxu0 %v3422
    %3630 = vmatprep.subr.mxu0 0.0
    %3631 = vmatpush1.msra.mxu0 %v3423
    %3632 = vmatprep.subr.mxu0 0.0
    %3633 = vmatpush1.msra.mxu0 %v3424
    %3634 = vmatprep.subr.mxu0 0.0
    %3635 = vmatpush1.msra.mxu0 %v3425
    %3636 = vmatprep.subr.mxu0 0.0
    %3637 = vmatpush1.msra.mxu0 %v3426
    %3638 = vmatprep.subr.mxu0 0.0
    %3639 = vmatpush1.msra.mxu0 %v3427
    %3640 = vmatprep.subr.mxu0 0.0
    %3641 = vmatpush1.msra.mxu0 %v3428
    %3642 = vmatprep.subr.mxu0 0.0
    %3643 = vmatpush1.msra.mxu0 %v3429
    %3644 = vmatprep.subr.mxu0 0.0
    %3645 = vmatpush1.msra.mxu0 %v3430
    %3646 = vmatprep.subr.mxu0 0.0
    %3647 = vmatpush1.msra.mxu0 %v3431
    %3648 = vmatprep.subr.mxu0 0.0
    %3649 = vmatpush1.msra.mxu0 %v3432
    %3650 = vmatprep.subr.mxu0 0.0
    %3651 = vmatpush1.msra.mxu0 %v3433
    %3652 = vmatprep.subr.mxu0 0.0
    %3653 = vmatpush1.msra.mxu0 %v3434
    %3654 = vmatprep.subr.mxu0 0.0
    %3655 = vmatpush1.msra.mxu0 %v3435
    %3656 = vmatprep.mubr.f32.mxu0 %v3440
    %3657 = vmatmul.mubr.f32.gmra.mrb[0].mxu0 %v3439
    %v3658 = vpop.f32.mrb[0].mxu0
    %v3659 = vadd.f32 %v3544, %v3658
    %v3660 = vpop.f32.mrb[0].mxu0
    %3661 = vmatprep.mubr.f32.mxu0 %v3444
    %3662 = vmatmul.mubr.f32.gmra.mrb[0].mxu0 %v3443
    %v3663 = vpop.f32.mrb[0].mxu0
    %v3664 = vadd.f32 %v3549, %v3663
    %v3665 = vpop.f32.mrb[0].mxu0
    %3666 = vmatprep.mubr.f32.mxu0 %v3448
    %3667 = vmatmul.mubr.f32.gmra.mrb[0].mxu0 %v3447
    %v3668 = vpop.f32.mrb[0].mxu0
    %v3669 = vadd.f32 %v3554, %v3668
    %v3670 = vpop.f32.mrb[0].mxu0
    %3671 = vmatprep.mubr.f32.mxu0 %v3452
    %3672 = vmatmul.mubr.f32.gmra.mrb[0].mxu0 %v3451
    %v3673 = vpop.f32.mrb[0].mxu0
    %v3674 = vadd.f32 %v3559, %v3673
    %v3675 = vpop.f32.mrb[0].mxu0
    %3676 = vmatprep.mubr.f32.mxu0 %v3456
    %3677 = vmatmul.mubr.f32.gmra.mrb[0].mxu0 %v3455
    %v3678 = vpop.f32.mrb[0].mxu0
    %v3679 = vadd.f32 %v3564, %v3678
    %v3680 = vpop.f32.mrb[0].mxu0
    %3681 = vmatprep.mubr.f32.mxu0 %v3460
    %3682 = vmatmul.mubr.f32.gmra.mrb[0].mxu0 %v3459
    %v3683 = vpop.f32.mrb[0].mxu0
    %v3684 = vadd.f32 %v3569, %v3683
    %v3685 = vpop.f32.mrb[0].mxu0
    %3686 = vmatprep.mubr.f32.mxu0 %v3464
    %3687 = vmatmul.mubr.f32.gmra.mrb[0].mxu0 %v3463
    %v3688 = vpop.f32.mrb[0].mxu0
    %v3689 = vadd.f32 %v3574, %v3688
    %v3690 = vpop.f32.mrb[0].mxu0
    %3691 = vmatprep.mubr.f32.mxu0 %v3468
    %3692 = vmatmul.mubr.f32.gmra.mrb[0].mxu0 %v3467
    %v3693 = vpop.f32.mrb[0].mxu0
    %v3694 = vadd.f32 %v3579, %v3693
    %v3695 = vpop.f32.mrb[0].mxu0
    %3696 = vmatprep.mubr.f32.mxu0 %v3472
    %3697 = vmatmul.mubr.f32.gmra.mrb[0].mxu0 %v3471
    %v3698 = vpop.f32.mrb[0].mxu0
    %v3699 = vadd.f32 %v3584, %v3698
    %v3700 = vpop.f32.mrb[0].mxu0
    %3701 = vmatprep.mubr.f32.mxu0 %v3476
    %3702 = vmatmul.mubr.f32.gmra.mrb[0].mxu0 %v3475
    %v3703 = vpop.f32.mrb[0].mxu0
    %v3704 = vadd.f32 %v3589, %v3703
    %v3705 = vpop.f32.mrb[0].mxu0
    %3706 = vdwg.mxu0
    %v3707 = vadd.f32 %v2468, %v3659
    %v3708 = vadd.f32 %v2473, %v3664
    %v3709 = vadd.f32 %v2478, %v3669
    %v3710 = vadd.f32 %v2483, %v3674
    %v3711 = vadd.f32 %v2488, %v3679
    %v3712 = vadd.f32 %v2493, %v3684
    %v3713 = vadd.f32 %v2498, %v3689
    %v3714 = vadd.f32 %v2503, %v3694
    %v3715 = vadd.f32 %v2508, %v3699
    %v3716 = vadd.f32 %v2513, %v3704
    %v3717 = vadd.f32 %v2516, %v2633
    %v3718 = vmax.f32 %v3717, 1.0
    %v3719 = vrcp.pop %v3718
    %v3720 = vmul.f32 1.0, %v3719
    %v3722 = vlaneseq
    %v3723 = vshrl.u32 %v3722, 7
    %v3724 = vsub.s32 0, %v3723
    %v3725 = vrot.slane %v3720, %v3724
    %v3727 = vmul.f32 %v3707, %v3725
    %v3728 = vmul.f32 %v3708, %v3725
    %v3729 = vmul.f32 %v3709, %v3725
    %v3730 = vmul.f32 %v3710, %v3725
    %v3731 = vmul.f32 %v3711, %v3725
    %v3732 = vmul.f32 %v3712, %v3725
    %v3733 = vmul.f32 %v3713, %v3725
    %v3734 = vmul.f32 %v3714, %v3725
    %v3735 = vmul.f32 %v3715, %v3725
    %v3736 = vmul.f32 %v3716, %v3725
    %v3737 = vadd.f32 %v3727, %v3728
    %v3738 = vadd.f32 %v3737, %v3729
    %v3739 = vadd.f32 %v3738, %v3730
    %v3740 = vadd.f32 %v3739, %v3731
    %v3741 = vadd.f32 %v3740, %v3732
    %v3742 = vadd.f32 %v3741, %v3733
    %v3743 = vadd.f32 %v3742, %v3734
    %v3744 = vadd.f32 %v3743, %v3735
    %v3745 = vadd.f32 %v3744, %v3736
    %v3746 = vrot.slane %v3745, 4
    %v3747 = vadd.f32 %v3745, %v3746
    %v3748 = vrot.slane %v3747, 2
    %v3749 = vadd.f32 %v3747, %v3748
    %v3750 = vrot.slane %v3749, 1
    %v3751 = vadd.f32 %v3749, %v3750
    %v3752 = vmul.f32 %v3751, 0.0125
    %v3753 = vsub.f32 %v3727, %v3752
    %v3754 = vsub.f32 %v3728, %v3752
    %v3755 = vsub.f32 %v3729, %v3752
    %v3756 = vsub.f32 %v3730, %v3752
    %v3757 = vsub.f32 %v3731, %v3752
    %v3758 = vsub.f32 %v3732, %v3752
    %v3759 = vsub.f32 %v3733, %v3752
    %v3760 = vsub.f32 %v3734, %v3752
    %v3761 = vsub.f32 %v3735, %v3752
    %v3762 = vsub.f32 %v3736, %v3752
    %v3763 = vmul.f32 %v3753, %v3753
    %v3764 = vmul.f32 %v3754, %v3754
    %v3765 = vmul.f32 %v3755, %v3755
    %v3766 = vmul.f32 %v3756, %v3756
    %v3767 = vmul.f32 %v3757, %v3757
    %v3768 = vmul.f32 %v3758, %v3758
    %v3769 = vmul.f32 %v3759, %v3759
    %v3770 = vmul.f32 %v3760, %v3760
    %v3771 = vmul.f32 %v3761, %v3761
    %v3772 = vmul.f32 %v3762, %v3762
    %v3773 = vadd.f32 %v3763, %v3764
    %v3774 = vadd.f32 %v3773, %v3765
    %v3775 = vadd.f32 %v3774, %v3766
    %v3776 = vadd.f32 %v3775, %v3767
    %v3777 = vadd.f32 %v3776, %v3768
    %v3778 = vadd.f32 %v3777, %v3769
    %v3779 = vadd.f32 %v3778, %v3770
    %v3780 = vadd.f32 %v3779, %v3771
    %v3781 = vadd.f32 %v3780, %v3772
    %v3782 = vrot.slane %v3781, 4
    %v3783 = vadd.f32 %v3781, %v3782
    %v3784 = vrot.slane %v3783, 2
    %v3785 = vadd.f32 %v3783, %v3784
    %v3786 = vrot.slane %v3785, 1
    %v3787 = vadd.f32 %v3785, %v3786
    %v3788 = vmul.f32 %v3787, 0.0125
    %v3789 = vadd.f32 %v3788, 1e-05
    %v3790 = vrsqrt.pop %v3789
    %v3791 = vmul.f32 %v3753, %v3790
    %v3792 = vmul.f32 %v3754, %v3790
    %v3793 = vmul.f32 %v3755, %v3790
    %v3794 = vmul.f32 %v3756, %v3790
    %v3795 = vmul.f32 %v3757, %v3790
    %v3796 = vmul.f32 %v3758, %v3790
    %v3797 = vmul.f32 %v3759, %v3790
    %v3798 = vmul.f32 %v3760, %v3790
    %v3799 = vmul.f32 %v3761, %v3790
    %v3800 = vmul.f32 %v3762, %v3790
    %v3801 = vld [vmem:[%s4] sm:$0xff]
    %v3802 = vld [vmem:[%s4 + $0x8] sm:$0xff]
    %v3803 = vld [vmem:[%s4 + $0x10] sm:$0xff]
    %v3804 = vld [vmem:[%s4 + $0x18] sm:$0xff]
    %v3805 = vld [vmem:[%s4 + $0x20] sm:$0xff]
    %v3806 = vld [vmem:[%s4 + $0x28] sm:$0xff]
    %v3807 = vld [vmem:[%s4 + $0x30] sm:$0xff]
    %v3808 = vld [vmem:[%s4 + $0x38] sm:$0xff]
    %v3809 = vld [vmem:[%s4 + $0x40] sm:$0xff]
    %v3810 = vld [vmem:[%s4 + $0x48] sm:$0xff]
    %3812 = vset.pattern.permute.xlu0 0
    %3813 = vperm.xlu0 %3812, %v3801
    %v3814 = vpop.permute.xlu0 %3813
    %3817 = vset.pattern.permute.xlu0 0
    %3818 = vperm.xlu0 %3817, %v3802
    %v3819 = vpop.permute.xlu0 %3818
    %3822 = vset.pattern.permute.xlu0 0
    %3823 = vperm.xlu0 %3822, %v3803
    %v3824 = vpop.permute.xlu0 %3823
    %3827 = vset.pattern.permute.xlu0 0
    %3828 = vperm.xlu0 %3827, %v3804
    %v3829 = vpop.permute.xlu0 %3828
    %3832 = vset.pattern.permute.xlu0 0
    %3833 = vperm.xlu0 %3832, %v3805
    %v3834 = vpop.permute.xlu0 %3833
    %3837 = vset.pattern.permute.xlu0 0
    %3838 = vperm.xlu0 %3837, %v3806
    %v3839 = vpop.permute.xlu0 %3838
    %3842 = vset.pattern.permute.xlu0 0
    %3843 = vperm.xlu0 %3842, %v3807
    %v3844 = vpop.permute.xlu0 %3843
    %3847 = vset.pattern.permute.xlu0 0
    %3848 = vperm.xlu0 %3847, %v3808
    %v3849 = vpop.permute.xlu0 %3848
    %3852 = vset.pattern.permute.xlu0 0
    %3853 = vperm.xlu0 %3852, %v3809
    %v3854 = vpop.permute.xlu0 %3853
    %3857 = vset.pattern.permute.xlu0 0
    %3858 = vperm.xlu0 %3857, %v3810
    %v3859 = vpop.permute.xlu0 %3858
    %v3861 = vmul.f32 %v3791, %v3814
    %v3862 = vmul.f32 %v3792, %v3819
    %v3863 = vmul.f32 %v3793, %v3824
    %v3864 = vmul.f32 %v3794, %v3829
    %v3865 = vmul.f32 %v3795, %v3834
    %v3866 = vmul.f32 %v3796, %v3839
    %v3867 = vmul.f32 %v3797, %v3844
    %v3868 = vmul.f32 %v3798, %v3849
    %v3869 = vmul.f32 %v3799, %v3854
    %v3870 = vmul.f32 %v3800, %v3859
    %v3871 = vld [vmem:[%s5] sm:$0xff]
    %v3872 = vld [vmem:[%s5 + $0x8] sm:$0xff]
    %v3873 = vld [vmem:[%s5 + $0x10] sm:$0xff]
    %v3874 = vld [vmem:[%s5 + $0x18] sm:$0xff]
    %v3875 = vld [vmem:[%s5 + $0x20] sm:$0xff]
    %v3876 = vld [vmem:[%s5 + $0x28] sm:$0xff]
    %v3877 = vld [vmem:[%s5 + $0x30] sm:$0xff]
    %v3878 = vld [vmem:[%s5 + $0x38] sm:$0xff]
    %v3879 = vld [vmem:[%s5 + $0x40] sm:$0xff]
    %v3880 = vld [vmem:[%s5 + $0x48] sm:$0xff]
    %3882 = vset.pattern.permute.xlu0 0
    %3883 = vperm.xlu0 %3882, %v3871
    %v3884 = vpop.permute.xlu0 %3883
    %3887 = vset.pattern.permute.xlu0 0
    %3888 = vperm.xlu0 %3887, %v3872
    %v3889 = vpop.permute.xlu0 %3888
    %3892 = vset.pattern.permute.xlu0 0
    %3893 = vperm.xlu0 %3892, %v3873
    %v3894 = vpop.permute.xlu0 %3893
    %3897 = vset.pattern.permute.xlu0 0
    %3898 = vperm.xlu0 %3897, %v3874
    %v3899 = vpop.permute.xlu0 %3898
    %3902 = vset.pattern.permute.xlu0 0
    %3903 = vperm.xlu0 %3902, %v3875
    %v3904 = vpop.permute.xlu0 %3903
    %3907 = vset.pattern.permute.xlu0 0
    %3908 = vperm.xlu0 %3907, %v3876
    %v3909 = vpop.permute.xlu0 %3908
    %3912 = vset.pattern.permute.xlu0 0
    %3913 = vperm.xlu0 %3912, %v3877
    %v3914 = vpop.permute.xlu0 %3913
    %3917 = vset.pattern.permute.xlu0 0
    %3918 = vperm.xlu0 %3917, %v3878
    %v3919 = vpop.permute.xlu0 %3918
    %3922 = vset.pattern.permute.xlu0 0
    %3923 = vperm.xlu0 %3922, %v3879
    %v3924 = vpop.permute.xlu0 %3923
    %3927 = vset.pattern.permute.xlu0 0
    %3928 = vperm.xlu0 %3927, %v3880
    %v3929 = vpop.permute.xlu0 %3928
    %v3931 = vadd.f32 %v3861, %v3884
    %v3932 = vadd.f32 %v3862, %v3889
    %v3933 = vadd.f32 %v3863, %v3894
    %v3934 = vadd.f32 %v3864, %v3899
    %v3935 = vadd.f32 %v3865, %v3904
    %v3936 = vadd.f32 %v3866, %v3909
    %v3937 = vadd.f32 %v3867, %v3914
    %v3938 = vadd.f32 %v3868, %v3919
    %v3939 = vadd.f32 %v3869, %v3924
    %v3940 = vadd.f32 %v3870, %v3929
    %v3941 = vld [vmem:[%s6] sm:$0xf]
    %v3942 = vld [vmem:[%s7] sm:$0xf]
    %3944 = vset.pattern.permute.xlu0 0
    %3945 = vperm.xlu0 %3944, %v3942
    %v3946 = vpop.permute.xlu0 %3945
    %vm3948 = vcmask 654336
    %v3950 = vsel %vm3948, %v3941, 0
    %3952 = vmatprep.subr.mxu0 0.0
    %3953 = vmatpush1.msra.mxu0 %v3931
    %3954 = vmatprep.subr.mxu0 0.0
    %3955 = vmatpush1.msra.mxu0 %v3932
    %3956 = vmatprep.subr.mxu0 0.0
    %3957 = vmatpush1.msra.mxu0 %v3933
    %3958 = vmatprep.subr.mxu0 0.0
    %3959 = vmatpush1.msra.mxu0 %v3934
    %3960 = vmatprep.subr.mxu0 0.0
    %3961 = vmatpush1.msra.mxu0 %v3935
    %3962 = vmatprep.subr.mxu0 0.0
    %3963 = vmatpush1.msra.mxu0 %v3936
    %3964 = vmatprep.subr.mxu0 0.0
    %3965 = vmatpush1.msra.mxu0 %v3937
    %3966 = vmatprep.subr.mxu0 0.0
    %3967 = vmatpush1.msra.mxu0 %v3938
    %3968 = vmatprep.subr.mxu0 0.0
    %3969 = vmatpush1.msra.mxu0 %v3939
    %3970 = vmatprep.subr.mxu0 0.0
    %3971 = vmatpush1.msra.mxu0 %v3940
    %3972 = vmatprep.subr.mxu0 0.0
    %3973 = vmatpush1.msra.mxu0 0.0
    %3974 = vmatprep.subr.mxu0 0.0
    %3975 = vmatpush1.msra.mxu0 0.0
    %3976 = vmatprep.subr.mxu0 0.0
    %3977 = vmatpush1.msra.mxu0 0.0
    %3978 = vmatprep.subr.mxu0 0.0
    %3979 = vmatpush1.msra.mxu0 0.0
    %3980 = vmatprep.subr.mxu0 0.0
    %3981 = vmatpush1.msra.mxu0 0.0
    %3982 = vmatprep.subr.mxu0 0.0
    %3983 = vmatpush1.msra.mxu0 0.0
    %3984 = vmatprep.subr.mxu0 0.0
    %3985 = vmatpush1.msra.mxu0 0.0
    %3986 = vmatprep.subr.mxu0 0.0
    %3987 = vmatpush1.msra.mxu0 0.0
    %3988 = vmatprep.subr.mxu0 0.0
    %3989 = vmatpush1.msra.mxu0 0.0
    %3990 = vmatprep.subr.mxu0 0.0
    %3991 = vmatpush1.msra.mxu0 0.0
    %3992 = vmatprep.subr.mxu0 0.0
    %3993 = vmatpush1.msra.mxu0 0.0
    %3994 = vmatprep.subr.mxu0 0.0
    %3995 = vmatpush1.msra.mxu0 0.0
    %3996 = vmatprep.subr.mxu0 0.0
    %3997 = vmatpush1.msra.mxu0 0.0
    %3998 = vmatprep.subr.mxu0 0.0
    %3999 = vmatpush1.msra.mxu0 0.0
    %4000 = vmatprep.subr.mxu0 0.0
    %4001 = vmatpush1.msra.mxu0 0.0
    %4002 = vmatprep.subr.mxu0 0.0
    %4003 = vmatpush1.msra.mxu0 0.0
    %4004 = vmatprep.subr.mxu0 0.0
    %4005 = vmatpush1.msra.mxu0 0.0
    %4006 = vmatprep.subr.mxu0 0.0
    %4007 = vmatpush1.msra.mxu0 0.0
    %4008 = vmatprep.subr.mxu0 0.0
    %4009 = vmatpush1.msra.mxu0 0.0
    %4010 = vmatprep.subr.mxu0 0.0
    %4011 = vmatpush1.msra.mxu0 0.0
    %4012 = vmatprep.subr.mxu0 0.0
    %4013 = vmatpush1.msra.mxu0 0.0
    %4014 = vmatprep.subr.mxu0 0.0
    %4015 = vmatpush1.msra.mxu0 0.0
    %4016 = vmatprep.mubr.f32.mxu0 0.0
    %4017 = vmatmul.mubr.f32.gmra.mrb[0].mxu0 %v3950
    %v4018 = vpop.f32.mrb[0].mxu0
    %v4019 = vadd.f32 %v3946, %v4018
    %v4020 = vpop.f32.mrb[0].mxu0
    %4021 = vdwg.mxu0
    %4022 = vst [vmem:[#allocation8] sm:$0xf] %v4019
    // Predicated region
    $region42: #{tpu_custom_call.1} parent=1 // pred_check
      _
    $region43: #{tpu_custom_call.1} parent=1 // pred_check_branch
      %4024 = sbr.rel (0) target = $region45
    $region44: #{tpu_custom_call.1} parent=1 // pred_region
      %s4026 = ssub.s32 256, 256
      %4027 = vsyncadd [#allocation4], %s4026
      %s4028 = sshll.u32 [#allocation7], 4
      %s4029 = int_to_ptr.vmem [resolvable:$true] %s4028
      %4034 = dma.vmem_to_hbm [thread:$0]  %s4029, 256, %s8, [#allocation4], 128, 128, 8
    $region45: #{tpu_custom_call.1} parent=1 // pred_fallthru
      _
    // Predicated region
    $region46: #{tpu_custom_call.1} parent=1 // pred_check
      _
    $region47: #{tpu_custom_call.1} parent=1 // pred_check_branch
      %4036 = sbr.rel (0) target = $region49
    $region48: #{tpu_custom_call.1} parent=1 // pred_region
      %s4038 = ssub.s32 64, 64
      %4039 = vsyncadd [#allocation9], %s4038
      %s4041 = sshll.u32 [#allocation8], 4
      %s4042 = int_to_ptr.vmem [resolvable:$true] %s4041
      %4044 = dma.vmem_to_hbm [thread:$0]  %s4042, 64, %s9, [#allocation9]
    $region49: #{tpu_custom_call.1} parent=1 // pred_fallthru
      _
    // Predicated region
    $region50: #{tpu_custom_call.1} parent=1 // pred_check
      _
    $region51: #{tpu_custom_call.1} parent=1 // pred_check_branch
      %4046 = sbr.rel (0) target = $region53
    $region52: #{tpu_custom_call.1} parent=1 // pred_region
      %4047 = dma.done [#allocation4], 256
    $region53: #{tpu_custom_call.1} parent=1 // pred_fallthru
      _
    // Predicated region
    $region54: #{tpu_custom_call.1} parent=1 // pred_check
      _
    $region55: #{tpu_custom_call.1} parent=1 // pred_check_branch
      %4049 = sbr.rel (0) target = $region57
    $region56: #{tpu_custom_call.1} parent=1 // pred_region
      %4050 = dma.done [#allocation9], 64
    $region57: #{tpu_custom_call.1} parent=1 // pred_fallthru
      _
    %4051 = vsyncpa [#allocation3], 1
    %4052 = vsyncpa [#allocation4], 1
    %4053 = vsyncpa [#allocation9], 1
    %4054 = vsyncpa [#allocation5], 1

</llo_original>
